<compile_context>
chip_gen: v5e
topology: v5e:2x2
jax: 0.10.0
libtpu: 0.0.40
codegen_flags: <defaults>
</compile_context>

<pallas_src>
import functools

import jax
import jax.numpy as jnp
from jax.experimental import pallas as pl
from jax.experimental.pallas import tpu as pltpu

NEG_INF = -1e30  # large finite negative: avoids -inf -> NaN softmax paths


# ----------------------------- kernel helpers ------------------------------

def _layernorm(x, w, b, eps=1e-5):
    mu = jnp.mean(x, axis=-1, keepdims=True)
    var = jnp.mean(jnp.square(x - mu), axis=-1, keepdims=True)
    return (x - mu) * jax.lax.rsqrt(var + eps) * w + b


def _invariant_weight_spec(shape, index_map):
    """BlockSpec for a grid-invariant weight: single-buffered (Buffered(1)).

    Falls back to a plain (double-buffered) BlockSpec if this jax version does
    not support pipeline_mode / Buffered.
    """
    try:
        return pl.BlockSpec(shape, index_map, pipeline_mode=pl.Buffered(1))
    except (AttributeError, TypeError):
        return pl.BlockSpec(shape, index_map)


# ------------------------------ kernels -------------------------------------

def ln_qkv_kernel(x_ref, ln_w_ref, ln_b_ref, wqkv_ref, q_ref, k_ref, v_ref,
                  *, num_heads):
    """Pre-LN + fused QKV projection for one (batch, seq-tile).

    x_ref:    (1, ts, D)  f32
    wqkv_ref: (D, 3D)     bf16  (q columns pre-scaled by 1/sqrt(Dh) on host)
    q/k/v_ref:(1, H, ts, Dh) bf16
    """
    x = x_ref[0]                                            # (ts, D) f32
    _, d_model = x.shape
    d_head = d_model // num_heads

    xn = _layernorm(x, ln_w_ref[...], ln_b_ref[...])        # f32
    qkv = jnp.dot(xn.astype(jnp.bfloat16), wqkv_ref[...],
                  preferred_element_type=jnp.float32)       # (ts, 3D) f32

    for h in range(num_heads):                              # static, tiny
        lo = h * d_head
        hi = lo + d_head
        q_ref[0, h] = qkv[:, lo:hi].astype(q_ref.dtype)
        k_ref[0, h] = qkv[:, d_model + lo:d_model + hi].astype(k_ref.dtype)
        v_ref[0, h] = qkv[:, 2 * d_model + lo:2 * d_model + hi].astype(
            v_ref.dtype)


def flash_attn_proj_kernel(q_ref, k_ref, v_ref, x_ref, wo_ref, o_ref,
                           m_sc, l_sc, acc_sc, *, tq, tk):
    """Causal flash attention + output projection + residual.

    grid = (B, S//tq, S//tk); accumulators live in VMEM scratch across the
    (innermost, 'arbitrary') kv axis.  K/V BlockSpecs are clamped to
    min(ki, qi), so tiles with ki > qi never DMA fresh data and never compute.

    q_ref/k_ref/v_ref: (1, H, tq|tk, Dh) bf16   (q pre-scaled via Wqkv)
    x_ref:             (1, tq, D) f32 residual
    wo_ref:            (D, D)  bf16
    o_ref:             (1, tq, D) f32
    """
    qi = pl.program_id(1)
    ki = pl.program_id(2)

    @pl.when(ki == 0)
    def _():
        m_sc[...] = jnp.full_like(m_sc, NEG_INF)
        l_sc[...] = jnp.zeros_like(l_sc)
        acc_sc[...] = jnp.zeros_like(acc_sc)

    def _accumulate(apply_mask):
        q = q_ref[0]                                        # (H, tq, Dh) bf16
        k = k_ref[0]                                        # (H, tk, Dh) bf16
        v = v_ref[0]                                        # (H, tk, Dh) bf16

        s = jnp.einsum('hqd,hkd->hqk', q, k,
                       preferred_element_type=jnp.float32)  # (H, tq, tk) f32

        if apply_mask:
            # Diagonal tile only; tq == tk so local indices suffice.
            row = jax.lax.broadcasted_iota(jnp.int32, (tq, tk), 0)
            col = jax.lax.broadcasted_iota(jnp.int32, (tq, tk), 1)
            s = jnp.where((row >= col)[None, :, :], s, NEG_INF)

        m_prev = m_sc[...]                                  # (H, tq, 1)
        m_new = jnp.maximum(m_prev, jnp.max(s, axis=-1, keepdims=True))
        alpha = jnp.exp(m_prev - m_new)
        p = jnp.exp(s - m_new)                              # (H, tq, tk) f32

        l_sc[...] = alpha * l_sc[...] + jnp.sum(p, axis=-1, keepdims=True)
        acc_sc[...] = alpha * acc_sc[...] + jnp.einsum(
            'hqk,hkd->hqd', p.astype(v.dtype), v,
            preferred_element_type=jnp.float32)
        m_sc[...] = m_new

    # Fully-unmasked fast path (below the diagonal): no iota / where.
    @pl.when(ki < qi)
    def _():
        _accumulate(apply_mask=False)

    # Diagonal tile: apply the causal mask.
    @pl.when(ki == qi)
    def _():
        _accumulate(apply_mask=True)

    # (ki > qi tiles are causally dead: no compute, and the clamped K/V
    #  index_map means no new DMA either.)

    @pl.when(ki == pl.num_programs(2) - 1)
    def _():
        # Exact reciprocal: runs once per q tile, accuracy is free here.
        ctx = acc_sc[...] / l_sc[...]                       # (H, tq, Dh) f32
        num_heads, _, d_head = ctx.shape
        # (concat_h ctx_h) @ Wo  ==  sum_h ctx_h @ Wo[h*Dh:(h+1)*Dh, :]
        # -> no per-tile head concatenation / VMEM copy.
        out = x_ref[0]                                      # residual, f32
        for h in range(num_heads):                          # static, tiny
            out = out + jnp.dot(
                ctx[h].astype(jnp.bfloat16),
                wo_ref[h * d_head:(h + 1) * d_head, :],
                preferred_element_type=jnp.float32)
        o_ref[0] = out.astype(o_ref.dtype)


def head_kernel(x_ref, ln_w_ref, ln_b_ref, wout_ref, o_ref):
    """Final LayerNorm + bias-free output projection, vocab-tiled.

    x_ref: (1, ts, D) f32   wout_ref: (D, tv) bf16   o_ref: (1, ts, tv) f32
    """
    x = x_ref[0]
    xn = _layernorm(x, ln_w_ref[...], ln_b_ref[...])
    o_ref[0] = jnp.dot(xn.astype(jnp.bfloat16), wout_ref[...],
                       preferred_element_type=jnp.float32).astype(o_ref.dtype)


# ------------------------------ host wrappers -------------------------------

def run_ln_qkv(x, ln_w, ln_b, wqkv_bf16, num_heads, ts):
    B, S, D = x.shape
    assert S % ts == 0 and D % num_heads == 0
    Dh = D // num_heads
    kernel = functools.partial(ln_qkv_kernel, num_heads=num_heads)
    hsd = jax.ShapeDtypeStruct((B, num_heads, S, Dh), jnp.bfloat16)
    spec_hsd = pl.BlockSpec((1, num_heads, ts, Dh), lambda b, s: (b, 0, s, 0))
    return pl.pallas_call(
        kernel,
        out_shape=(hsd, hsd, hsd),
        grid=(B, S // ts),
        in_specs=[
            pl.BlockSpec((1, ts, D), lambda b, s: (b, s, 0)),
            pl.BlockSpec((1, D), lambda b, s: (0, 0)),
            pl.BlockSpec((1, D), lambda b, s: (0, 0)),
            _invariant_weight_spec((D, 3 * D), lambda b, s: (0, 0)),
        ],
        out_specs=(spec_hsd, spec_hsd, spec_hsd),
        compiler_params=pltpu.CompilerParams(
            dimension_semantics=("parallel", "parallel")),
    )(x, ln_w, ln_b, wqkv_bf16)


def run_flash_attn_proj(q, k, v, x, wo_bf16, tq, tk):
    B, H, S, Dh = q.shape
    D = H * Dh
    assert tq == tk, "kv index-map clamp / diagonal mask assume tq == tk"
    assert S % tq == 0
    kernel = functools.partial(flash_attn_proj_kernel, tq=tq, tk=tk)
    # Clamp causally-dead kv tiles to the diagonal block: same block index as
    # the previous live step -> no fresh HBM DMA for ki > qi.
    kv_spec = pl.BlockSpec((1, H, tk, Dh),
                           lambda b, qi, ki: (b, 0, jnp.minimum(ki, qi), 0))
    return pl.pallas_call(
        kernel,
        out_shape=jax.ShapeDtypeStruct((B, S, D), x.dtype),
        grid=(B, S // tq, S // tk),
        in_specs=[
            pl.BlockSpec((1, H, tq, Dh), lambda b, qi, ki: (b, 0, qi, 0)),
            kv_spec,
            kv_spec,
            pl.BlockSpec((1, tq, D), lambda b, qi, ki: (b, qi, 0)),
            _invariant_weight_spec((D, D), lambda b, qi, ki: (0, 0)),
        ],
        out_specs=pl.BlockSpec((1, tq, D), lambda b, qi, ki: (b, qi, 0)),
        scratch_shapes=[
            pltpu.VMEM((H, tq, 1), jnp.float32),   # running max
            pltpu.VMEM((H, tq, 1), jnp.float32),   # running denom
            pltpu.VMEM((H, tq, Dh), jnp.float32),  # running numerator
        ],
        compiler_params=pltpu.CompilerParams(
            dimension_semantics=("parallel", "parallel", "arbitrary")),
    )(q, k, v, x, wo_bf16)


def run_head(x, ln_w, ln_b, wout_bf16, ts, tv):
    B, S, D = x.shape
    V = wout_bf16.shape[1]
    assert S % ts == 0 and V % tv == 0
    return pl.pallas_call(
        head_kernel,
        out_shape=jax.ShapeDtypeStruct((B, S, V), jnp.float32),
        grid=(B, S // ts, V // tv),
        in_specs=[
            pl.BlockSpec((1, ts, D), lambda b, si, vi: (b, si, 0)),
            pl.BlockSpec((1, D), lambda b, si, vi: (0, 0)),
            pl.BlockSpec((1, D), lambda b, si, vi: (0, 0)),
            pl.BlockSpec((D, tv), lambda b, si, vi: (0, vi)),
        ],
        out_specs=pl.BlockSpec((1, ts, tv), lambda b, si, vi: (b, si, vi)),
        compiler_params=pltpu.CompilerParams(
            dimension_semantics=("parallel", "parallel", "parallel")),
    )(x, ln_w, ln_b, wout_bf16)


def speedy_lang_net_forward(tokens, params, num_heads, *,
                            tq=128, tk=128, ts=256, tv=512):
    # NOTE: raise tq=tk to 256 on v6e/v7x (2x256^2 MXU); keep 128 on v5e.
    # embedding lookup (gather) -- plain-JAX glue
    x = jnp.take(params["embedding"], tokens, axis=0)       # (B, S, D) f32
    D = x.shape[-1]
    d_head = D // num_heads
    scale = 1.0 / (d_head ** 0.5)
    for blk in params["attn_layers"]:
        # Fold 1/sqrt(Dh) into the q columns of Wqkv once on the host.
        wqkv = blk["wqkv"]
        wqkv_scaled = jnp.concatenate([wqkv[:, :D] * scale, wqkv[:, D:]],
                                      axis=-1)
        q, k, v = run_ln_qkv(x, blk["ln_w"], blk["ln_b"],
                             wqkv_scaled.astype(jnp.bfloat16), num_heads, ts)
        x = run_flash_attn_proj(q, k, v, x,
                                blk["wo"].astype(jnp.bfloat16), tq, tk)
    return run_head(x, params["norm_w"], params["norm_b"],
                    params["w_out"].astype(jnp.bfloat16), ts, min(tv, params["w_out"].shape[1]))


# --------------------------- pure-JAX reference ------------------------------

def _ref_forward(tokens, params, num_heads):
    x = jnp.take(params["embedding"], tokens, axis=0)
    B, S, D = x.shape
    Dh = D // num_heads
    causal = jnp.tril(jnp.ones((S, S), dtype=bool))
    for blk in params["attn_layers"]:
        xn = _layernorm(x, blk["ln_w"], blk["ln_b"])
        qkv = xn @ blk["wqkv"]
        q, k, v = jnp.split(qkv, 3, axis=-1)
        q = q.reshape(B, S, num_heads, Dh).transpose(0, 2, 1, 3)
        k = k.reshape(B, S, num_heads, Dh).transpose(0, 2, 1, 3)
        v = v.reshape(B, S, num_heads, Dh).transpose(0, 2, 1, 3)
        s = jnp.einsum("bhqd,bhkd->bhqk", q, k) / (Dh ** 0.5)
        s = jnp.where(causal[None, None], s, -jnp.inf)
        p = jax.nn.softmax(s, axis=-1)
        o = jnp.einsum("bhqk,bhkd->bhqd", p, v)
        o = o.transpose(0, 2, 1, 3).reshape(B, S, D)
        x = x + o @ blk["wo"]
    xn = _layernorm(x, params["norm_w"], params["norm_b"])
    return xn @ params["w_out"]


# --------------------------------- main --------------------------------------

if __name__ == "__main__":
    # Lane-dense small config: D, Dh, V multiples of 128; S=512 gives a 4x4
    # kv-tile grid so the clamp / fast-path / masked-diagonal paths all run.
    B, S, D, H, V, L = 2, 512, 256, 2, 512, 2

    key = jax.random.PRNGKey(0)
    keys = jax.random.split(key, 4 + 4 * L)
    ki = iter(keys)

    params = {
        "embedding": 0.02 * jax.random.normal(next(ki), (V, D), jnp.float32),
        "attn_layers": [],
        "norm_w": jnp.ones((1, D), jnp.float32),
        "norm_b": jnp.zeros((1, D), jnp.float32),
        "w_out": 0.02 * jax.random.normal(next(ki), (D, V), jnp.float32),
    }
    for _ in range(L):
        params["attn_layers"].append({
            "ln_w": jnp.ones((1, D), jnp.float32),
            "ln_b": jnp.zeros((1, D), jnp.float32),
            "wqkv": (1.0 / D ** 0.5)
                    * jax.random.normal(next(ki), (D, 3 * D), jnp.float32),
            "wo": (1.0 / D ** 0.5)
                  * jax.random.normal(next(ki), (D, D), jnp.float32),
        })

    tokens = jax.random.randint(next(ki), (B, S), 0, V, dtype=jnp.int32)

    logits = speedy_lang_net_forward(tokens, params, num_heads=H)
    logits = jax.block_until_ready(logits)

    ref = _ref_forward(tokens, params, num_heads=H)
    assert logits.shape == (B, S, V)
    # Loose tolerance: kernel uses bf16 matmul operands.
    assert jnp.allclose(logits, ref, atol=5e-2, rtol=5e-2), "mismatch vs ref"

    print("KERNEL_OK")
</pallas_src>

<mosaic_0001>
module attributes {stable_mosaic.version = 11 : i64} {
  func.func @ln_qkv_kernel(%arg0: i32, %arg1: i32, %arg2: memref<1x256x256xf32, #tpu.memory_space<vmem>>, %arg3: memref<1x256xf32, #tpu.memory_space<vmem>>, %arg4: memref<1x256xf32, #tpu.memory_space<vmem>>, %arg5: memref<256x768xbf16, #tpu.memory_space<vmem>>, %arg6: memref<1x2x256x128xbf16, #tpu.memory_space<vmem>>, %arg7: memref<1x2x256x128xbf16, #tpu.memory_space<vmem>>, %arg8: memref<1x2x256x128xbf16, #tpu.memory_space<vmem>>) attributes {dimension_semantics = [#tpu.dimension_semantics<parallel>, #tpu.dimension_semantics<parallel>], iteration_bounds = array<i64: 2, 2>, scalar_prefetch = 0 : i64, scratch_operands = 0 : i64, tpu.core_type = #tpu.core_type<tc>, window_params = [{transform_indices = @transform_0, window_bounds = array<i64: 1, 256, 256>}, {pipeline_mode = #tpu.pipeline_mode<synchronous>, transform_indices = @transform_1, window_bounds = array<i64: 1, 256>}, {pipeline_mode = #tpu.pipeline_mode<synchronous>, transform_indices = @transform_2, window_bounds = array<i64: 1, 256>}, {pipeline_mode = #tpu.pipeline_mode<synchronous>, transform_indices = @transform_3, window_bounds = array<i64: 256, 768>}, {transform_indices = @transform_4, window_bounds = array<i64: 1, 2, 256, 128>}, {transform_indices = @transform_5, window_bounds = array<i64: 1, 2, 256, 128>}, {transform_indices = @transform_6, window_bounds = array<i64: 1, 2, 256, 128>}]} {
    %c0 = arith.constant 0 : index
    %c0_0 = arith.constant 0 : index
    %c0_1 = arith.constant 0 : index
    %0 = vector.load %arg2[%c0, %c0_0, %c0_1] : memref<1x256x256xf32, #tpu.memory_space<vmem>>, vector<1x256x256xf32>
    %1 = vector.shape_cast %0 : vector<1x256x256xf32> to vector<256x256xf32>
    %c0_2 = arith.constant 0 : index
    %c0_3 = arith.constant 0 : index
    %2 = vector.load %arg3[%c0_2, %c0_3] : memref<1x256xf32, #tpu.memory_space<vmem>>, vector<1x256xf32>
    %c0_4 = arith.constant 0 : index
    %c0_5 = arith.constant 0 : index
    %3 = vector.load %arg4[%c0_4, %c0_5] : memref<1x256xf32, #tpu.memory_space<vmem>>, vector<1x256xf32>
    %cst = arith.constant dense<0.000000e+00> : vector<256xf32>
    %4 = vector.multi_reduction <add>, %1, %cst [1] : vector<256x256xf32> to vector<256xf32>
    %5 = vector.shape_cast %4 : vector<256xf32> to vector<256x1xf32>
    %cst_6 = arith.constant 2.560000e+02 : f32
    %6 = vector.broadcast %cst_6 : f32 to vector<256x1xf32>
    %7 = arith.divf %5, %6 : vector<256x1xf32>
    %8 = vector.broadcast %7 : vector<256x1xf32> to vector<256x256xf32>
    %9 = arith.subf %1, %8 : vector<256x256xf32>
    %10 = arith.mulf %9, %9 : vector<256x256xf32>
    %cst_7 = arith.constant dense<0.000000e+00> : vector<256xf32>
    %11 = vector.multi_reduction <add>, %10, %cst_7 [1] : vector<256x256xf32> to vector<256xf32>
    %12 = vector.shape_cast %11 : vector<256xf32> to vector<256x1xf32>
    %cst_8 = arith.constant 2.560000e+02 : f32
    %13 = vector.broadcast %cst_8 : f32 to vector<256x1xf32>
    %14 = arith.divf %12, %13 : vector<256x1xf32>
    %15 = vector.broadcast %7 : vector<256x1xf32> to vector<256x256xf32>
    %16 = arith.subf %1, %15 : vector<256x256xf32>
    %cst_9 = arith.constant 9.99999974E-6 : f32
    %17 = vector.broadcast %cst_9 : f32 to vector<256x1xf32>
    %18 = arith.addf %14, %17 : vector<256x1xf32>
    %19 = math.rsqrt %18 : vector<256x1xf32>
    %20 = vector.broadcast %19 : vector<256x1xf32> to vector<256x256xf32>
    %21 = arith.mulf %16, %20 : vector<256x256xf32>
    %22 = vector.broadcast %2 : vector<1x256xf32> to vector<256x256xf32>
    %23 = arith.mulf %21, %22 : vector<256x256xf32>
    %24 = vector.broadcast %3 : vector<1x256xf32> to vector<256x256xf32>
    %25 = arith.addf %23, %24 : vector<256x256xf32>
    %26 = arith.truncf %25 : vector<256x256xf32> to vector<256x256xbf16>
    %c0_10 = arith.constant 0 : index
    %c0_11 = arith.constant 0 : index
    %27 = vector.load %arg5[%c0_10, %c0_11] : memref<256x768xbf16, #tpu.memory_space<vmem>>, vector<256x768xbf16>
    %cst_12 = arith.constant dense<0.000000e+00> : vector<256x768xf32>
    %28 = tpu.matmul %26, %27, %cst_12 {dimension_numbers = #tpu.dot_dimension_numbers<[1], [0], [0], [1], [0, 0, 1, 1], [], []>} : vector<256x256xbf16>, vector<256x768xbf16>, vector<256x768xf32> -> vector<256x768xf32>
    %29 = vector.extract_strided_slice %28 {offsets = [0, 0], sizes = [256, 128], strides = [1, 1]} : vector<256x768xf32> to vector<256x128xf32>
    %30 = arith.truncf %29 : vector<256x128xf32> to vector<256x128xbf16>
    %c0_13 = arith.constant 0 : index
    %c0_14 = arith.constant 0 : index
    %c0_15 = arith.constant 0 : index
    %c0_16 = arith.constant 0 : index
    %31 = vector.load %arg6[%c0_13, %c0_14, %c0_15, %c0_16] : memref<1x2x256x128xbf16, #tpu.memory_space<vmem>>, vector<1x1x256x128xbf16>
    %32 = vector.shape_cast %31 : vector<1x1x256x128xbf16> to vector<256x128xbf16>
    %33 = vector.shape_cast %30 : vector<256x128xbf16> to vector<1x1x256x128xbf16>
    tpu.vector_store %arg6[%c0_13, %c0_14, %c0_15, %c0_16], %33 {strides = array<i32>} : memref<1x2x256x128xbf16, #tpu.memory_space<vmem>>, vector<1x1x256x128xbf16>,
    %34 = vector.extract_strided_slice %28 {offsets = [0, 256], sizes = [256, 128], strides = [1, 1]} : vector<256x768xf32> to vector<256x128xf32>
    %35 = arith.truncf %34 : vector<256x128xf32> to vector<256x128xbf16>
    %c0_17 = arith.constant 0 : index
    %c0_18 = arith.constant 0 : index
    %c0_19 = arith.constant 0 : index
    %c0_20 = arith.constant 0 : index
    %36 = vector.load %arg7[%c0_17, %c0_18, %c0_19, %c0_20] : memref<1x2x256x128xbf16, #tpu.memory_space<vmem>>, vector<1x1x256x128xbf16>
    %37 = vector.shape_cast %36 : vector<1x1x256x128xbf16> to vector<256x128xbf16>
    %38 = vector.shape_cast %35 : vector<256x128xbf16> to vector<1x1x256x128xbf16>
    tpu.vector_store %arg7[%c0_17, %c0_18, %c0_19, %c0_20], %38 {strides = array<i32>} : memref<1x2x256x128xbf16, #tpu.memory_space<vmem>>, vector<1x1x256x128xbf16>,
    %39 = vector.extract_strided_slice %28 {offsets = [0, 512], sizes = [256, 128], strides = [1, 1]} : vector<256x768xf32> to vector<256x128xf32>
    %40 = arith.truncf %39 : vector<256x128xf32> to vector<256x128xbf16>
    %c0_21 = arith.constant 0 : index
    %c0_22 = arith.constant 0 : index
    %c0_23 = arith.constant 0 : index
    %c0_24 = arith.constant 0 : index
    %41 = vector.load %arg8[%c0_21, %c0_22, %c0_23, %c0_24] : memref<1x2x256x128xbf16, #tpu.memory_space<vmem>>, vector<1x1x256x128xbf16>
    %42 = vector.shape_cast %41 : vector<1x1x256x128xbf16> to vector<256x128xbf16>
    %43 = vector.shape_cast %40 : vector<256x128xbf16> to vector<1x1x256x128xbf16>
    tpu.vector_store %arg8[%c0_21, %c0_22, %c0_23, %c0_24], %43 {strides = array<i32>} : memref<1x2x256x128xbf16, #tpu.memory_space<vmem>>, vector<1x1x256x128xbf16>,
    %44 = vector.extract_strided_slice %28 {offsets = [0, 128], sizes = [256, 128], strides = [1, 1]} : vector<256x768xf32> to vector<256x128xf32>
    %45 = arith.truncf %44 : vector<256x128xf32> to vector<256x128xbf16>
    %c0_25 = arith.constant 0 : index
    %c1 = arith.constant 1 : index
    %c0_26 = arith.constant 0 : index
    %c0_27 = arith.constant 0 : index
    %46 = vector.load %arg6[%c0_25, %c1, %c0_26, %c0_27] : memref<1x2x256x128xbf16, #tpu.memory_space<vmem>>, vector<1x1x256x128xbf16>
    %47 = vector.shape_cast %46 : vector<1x1x256x128xbf16> to vector<256x128xbf16>
    %48 = vector.shape_cast %45 : vector<256x128xbf16> to vector<1x1x256x128xbf16>
    tpu.vector_store %arg6[%c0_25, %c1, %c0_26, %c0_27], %48 {strides = array<i32>} : memref<1x2x256x128xbf16, #tpu.memory_space<vmem>>, vector<1x1x256x128xbf16>,
    %49 = vector.extract_strided_slice %28 {offsets = [0, 384], sizes = [256, 128], strides = [1, 1]} : vector<256x768xf32> to vector<256x128xf32>
    %50 = arith.truncf %49 : vector<256x128xf32> to vector<256x128xbf16>
    %c0_28 = arith.constant 0 : index
    %c1_29 = arith.constant 1 : index
    %c0_30 = arith.constant 0 : index
    %c0_31 = arith.constant 0 : index
    %51 = vector.load %arg7[%c0_28, %c1_29, %c0_30, %c0_31] : memref<1x2x256x128xbf16, #tpu.memory_space<vmem>>, vector<1x1x256x128xbf16>
    %52 = vector.shape_cast %51 : vector<1x1x256x128xbf16> to vector<256x128xbf16>
    %53 = vector.shape_cast %50 : vector<256x128xbf16> to vector<1x1x256x128xbf16>
    tpu.vector_store %arg7[%c0_28, %c1_29, %c0_30, %c0_31], %53 {strides = array<i32>} : memref<1x2x256x128xbf16, #tpu.memory_space<vmem>>, vector<1x1x256x128xbf16>,
    %54 = vector.extract_strided_slice %28 {offsets = [0, 640], sizes = [256, 128], strides = [1, 1]} : vector<256x768xf32> to vector<256x128xf32>
    %55 = arith.truncf %54 : vector<256x128xf32> to vector<256x128xbf16>
    %c0_32 = arith.constant 0 : index
    %c1_33 = arith.constant 1 : index
    %c0_34 = arith.constant 0 : index
    %c0_35 = arith.constant 0 : index
    %56 = vector.load %arg8[%c0_32, %c1_33, %c0_34, %c0_35] : memref<1x2x256x128xbf16, #tpu.memory_space<vmem>>, vector<1x1x256x128xbf16>
    %57 = vector.shape_cast %56 : vector<1x1x256x128xbf16> to vector<256x128xbf16>
    %58 = vector.shape_cast %55 : vector<256x128xbf16> to vector<1x1x256x128xbf16>
    tpu.vector_store %arg8[%c0_32, %c1_33, %c0_34, %c0_35], %58 {strides = array<i32>} : memref<1x2x256x128xbf16, #tpu.memory_space<vmem>>, vector<1x1x256x128xbf16>,
    return
  }
  func.func @transform_0(%arg0: i32, %arg1: i32) -> (i32, i32, i32) {
    %c0_i32 = arith.constant 0 : i32
    %c0_i32_0 = arith.constant 0 : i32
    return %arg0, %arg1, %c0_i32 : i32, i32, i32
  }
  func.func @transform_1(%arg0: i32, %arg1: i32) -> (i32, i32) {
    %c0_i32 = arith.constant 0 : i32
    %c0_i32_0 = arith.constant 0 : i32
    %c0_i32_1 = arith.constant 0 : i32
    return %c0_i32, %c0_i32_0 : i32, i32
  }
  func.func @transform_2(%arg0: i32, %arg1: i32) -> (i32, i32) {
    %c0_i32 = arith.constant 0 : i32
    %c0_i32_0 = arith.constant 0 : i32
    %c0_i32_1 = arith.constant 0 : i32
    return %c0_i32, %c0_i32_0 : i32, i32
  }
  func.func @transform_3(%arg0: i32, %arg1: i32) -> (i32, i32) {
    %c0_i32 = arith.constant 0 : i32
    %c0_i32_0 = arith.constant 0 : i32
    %c0_i32_1 = arith.constant 0 : i32
    return %c0_i32, %c0_i32_0 : i32, i32
  }
  func.func @transform_4(%arg0: i32, %arg1: i32) -> (i32, i32, i32, i32) {
    %c0_i32 = arith.constant 0 : i32
    %c0_i32_0 = arith.constant 0 : i32
    %c0_i32_1 = arith.constant 0 : i32
    return %arg0, %c0_i32, %arg1, %c0_i32_0 : i32, i32, i32, i32
  }
  func.func @transform_5(%arg0: i32, %arg1: i32) -> (i32, i32, i32, i32) {
    %c0_i32 = arith.constant 0 : i32
    %c0_i32_0 = arith.constant 0 : i32
    %c0_i32_1 = arith.constant 0 : i32
    return %arg0, %c0_i32, %arg1, %c0_i32_0 : i32, i32, i32, i32
  }
  func.func @transform_6(%arg0: i32, %arg1: i32) -> (i32, i32, i32, i32) {
    %c0_i32 = arith.constant 0 : i32
    %c0_i32_0 = arith.constant 0 : i32
    %c0_i32_1 = arith.constant 0 : i32
    return %arg0, %c0_i32, %arg1, %c0_i32_0 : i32, i32, i32, i32
  }
}

</mosaic_0001>

<llo_original>
// kernel: tpu_custom_call.1
$region0: #{tpu_custom_call.1}
  #allocation0 [shape = 'u32[]', space=smem, size = 0x4, offset = 0x4, fixed_abs, tag = 'smem constant byte address 0x4 - core index']
  #allocation1 [shape = 'u32[72,128]{1,0:T(1,128)}', space=vmem, size = 0x9000, scoped, tag = 'internal scratch']
  #allocation14 [shape = 's32[]', space=sflag, size = 0x4, offset = 0, fixed_abs, tag = 'sflag constant byte address 0x0 - dummy sync flag']
  #allocation16 [shape = 's32[]', space=sflag, size = 0x4, offset = 0, fixed_abs, tag = 'sflag constant byte address 0x0 - dummy sync flag']
  #allocation18 [shape = 's32[]', space=sflag, size = 0x4, offset = 0, fixed_abs, tag = 'sflag constant byte address 0x0 - dummy sync flag']
  %s0 = inlined_call_operand.hbm [shape: f32[2,512,256], index: 0, kind: input, shape index: {}]
  %s1 = inlined_call_operand.hbm [shape: f32[1,256], index: 1, kind: input, shape index: {}]
  %s2 = inlined_call_operand.hbm [shape: f32[1,256], index: 2, kind: input, shape index: {}]
  %s3 = inlined_call_operand.hbm [shape: bf16[256,768], index: 3, kind: input, shape index: {}]
  %s4 = inlined_call_operand.hbm [shape: bf16[2,2,512,128], index: 4, kind: output, shape index: {0}]
  %s5 = inlined_call_operand.hbm [shape: bf16[2,2,512,128], index: 5, kind: output, shape index: {1}]
  %s6 = inlined_call_operand.hbm [shape: bf16[2,2,512,128], index: 6, kind: output, shape index: {2}]
  %7 = xla_tuple %s4, %s5, %s6
  %s8 = sld [smem:[#allocation0]]
  $region81: #{tpu_custom_call.1} parent=0
    _
  %s10 = ssub.s32 1, %s8
  %s11 = scalar_select 0, %s10, %s8
  $region1: #{tpu_custom_call.1} parent=0
    #allocation2 [shape = 'u8[524288]{0}', space=vmem, size = 0x80000, scoped, tag = 'input window, operand 0']
    #allocation3 [shape = 's32[2]{0}', space=sflag, size = 0x8, scoped, tag = 'scoped memory for tpu_custom_call.1']
    #allocation4 [shape = 's32[2]{0}', space=sflag, size = 0x8, scoped, tag = 'scoped memory for tpu_custom_call.1']
    #allocation5 [shape = 'u8[1024]{0}', space=vmem, size = 0x400, scoped, tag = 'input window, operand 1, single buffered']
    #allocation6 [shape = 's32[1]{0}', space=sflag, size = 0x4, scoped, tag = 'scoped memory for tpu_custom_call.1']
    #allocation7 [shape = 'u8[1024]{0}', space=vmem, size = 0x400, scoped, tag = 'input window, operand 2, single buffered']
    #allocation8 [shape = 'u8[393216]{0}', space=vmem, size = 0x60000, scoped, tag = 'input window, operand 3, single buffered']
    #allocation9 [shape = 's32[1]{0}', space=sflag, size = 0x4, scoped, tag = 'scoped memory for tpu_custom_call.1']
    #allocation10 [shape = 'u8[262144]{0}', space=vmem, size = 0x40000, scoped, tag = 'output window, operand 0']
    #allocation11 [shape = 'u8[262144]{0}', space=vmem, size = 0x40000, scoped, tag = 'output window, operand 1']
    #allocation12 [shape = 's32[2]{0}', space=sflag, size = 0x8, scoped, tag = 'scoped memory for tpu_custom_call.1']
    #allocation13 [shape = 'u8[262144]{0}', space=vmem, size = 0x40000, scoped, tag = 'output window, operand 2']
    %12 = vsyncpa [#allocation3], 0
    %s13 = scalar_lea.sflag [#allocation3], 1
    %14 = vsyncpa %s13, 0
    %15 = vsyncpa [#allocation6], 0
    %16 = vsyncpa [#allocation9], 0
    %17 = vsyncpa [#allocation4], 0
    %s18 = scalar_lea.sflag [#allocation4], 1
    %19 = vsyncpa %s18, 0
    %20 = vsyncpa [#allocation12], 0
    %s21 = scalar_lea.sflag [#allocation12], 1
    %22 = vsyncpa %s21, 0
    loop: start=0, step=1, limit=6
    $region2: #{tpu_custom_call.1} parent=1 // loop_pre_header
      _
    $region3: #{tpu_custom_call.1} parent=1 // loop_header
      %s24 = sphi 0, %s28
      %p25 = scmp.ge.s32.totalorder %s24, 6
      %s31 = sphi 0, %s43
      %s32 = sphi 0, %s39
      %s33 = sphi 0, %s31
      %s34 = sphi 0, %s32
      %s35 = sphi 0, %s33
      %s36 = sphi 0, %s34
      %s48 = sphi 0, %s50
      %s51 = sphi 0, %s48
      %s52 = sphi 0, %s51
      %s68 = sphi 0, %s52
      %s72 = sphi 0, %s72
      %s74 = sphi 0, %s72
      %s75 = sphi 0, %s74
      %s89 = sphi 0, %s75
      %s93 = sphi 0, %s93
      %s95 = sphi 0, %s93
      %s96 = sphi 0, %s95
      %s110 = sphi 0, %s96
      %s114 = sphi 0, %s114
      %s116 = sphi 0, %s114
      %s117 = sphi 0, %s116
      %s131 = sphi 0, %s117
      %s139 = sphi 0, %s141
      %s142 = sphi 0, %s139
      %s143 = sphi 0, %s142
      %s159 = sphi 0, %s143
      %s167 = sphi 0, %s169
      %s170 = sphi 0, %s167
      %s171 = sphi 0, %s170
      %s187 = sphi 0, %s171
      %s195 = sphi 0, %s197
      %s198 = sphi 0, %s195
      %s199 = sphi 0, %s198
      %s215 = sphi 0, %s199
    $region4: #{tpu_custom_call.1} parent=1 // loop_header_branch
      %27 = sbr.rel (%p25) target = $region8
    $region5: #{tpu_custom_call.1} parent=1 // loop_body
      %s29 = ssub.s32 %s24, 1
      %s30 = ssub.s32 %s24, 2
      %s37 = sadd.s32 1, %s32
      %p38 = scmp.ge.s32.totalorder %s37, 2
      %s39 = scalar_select %p38, 0, %s37
      %s40 = sadd.s32 1, %s31
      %s41 = scalar_select %p38, %s40, %s31
      %p42 = scmp.ge.s32.totalorder %s41, 2
      %s43 = scalar_select %p42, 0, %s41
      %s44 = ssub.s32 %s31, %s43
      %s45 = ssub.s32 %s32, %s39
      %s46 = sor.u32 %s44, %s45
      %p47 = scmp.eq.s32.totalorder %s46, 0
      %s49 = sadd.s32 %s48, 1
      %s50 = scalar_select %p47, %s48, %s49
      %p53 = pneg %p47
      %p54 = scmp.eq.s32.totalorder %s24, 3
      %p55 = por %p53, %p54
      %p56 = scmp.ne.s32.totalorder %s48, %s51
      %p57 = scmp.eq.s32.totalorder %s24, 0
      %p58 = por %p56, %p57
      %p59 = scmp.ne.s32.totalorder %s48, %s51
      %p60 = scmp.eq.s32.totalorder %s29, 3
      %p61 = por %p59, %p60
      %p62 = scmp.ne.s32.totalorder %s51, %s52
      %p63 = scmp.eq.s32.totalorder %s29, 0
      %p64 = por %p62, %p63
      %p65 = scmp.ne.s32.totalorder %s51, %s52
      %p66 = scmp.eq.s32.totalorder %s30, 3
      %p67 = por %p65, %p66
      %p69 = scmp.ne.s32.totalorder %s52, %s68
      %p70 = scmp.eq.s32.totalorder %s30, 0
      %p71 = por %p69, %p70
      %s73 = sadd.s32 %s72, 1
      %p76 = scmp.eq.s32.totalorder %s24, 3
      %p77 = scmp.ne.s32.totalorder %s72, %s74
      %p78 = scmp.eq.s32.totalorder %s24, 0
      %p79 = por %p77, %p78
      %p80 = scmp.ne.s32.totalorder %s72, %s74
      %p81 = scmp.eq.s32.totalorder %s29, 3
      %p82 = por %p80, %p81
      %p83 = scmp.ne.s32.totalorder %s74, %s75
      %p84 = scmp.eq.s32.totalorder %s29, 0
      %p85 = por %p83, %p84
      %p86 = scmp.ne.s32.totalorder %s74, %s75
      %p87 = scmp.eq.s32.totalorder %s30, 3
      %p88 = por %p86, %p87
      %p90 = scmp.ne.s32.totalorder %s75, %s89
      %p91 = scmp.eq.s32.totalorder %s30, 0
      %p92 = por %p90, %p91
      %s94 = sadd.s32 %s93, 1
      %p97 = scmp.eq.s32.totalorder %s24, 3
      %p98 = scmp.ne.s32.totalorder %s93, %s95
      %p99 = scmp.eq.s32.totalorder %s24, 0
      %p100 = por %p98, %p99
      %p101 = scmp.ne.s32.totalorder %s93, %s95
      %p102 = scmp.eq.s32.totalorder %s29, 3
      %p103 = por %p101, %p102
      %p104 = scmp.ne.s32.totalorder %s95, %s96
      %p105 = scmp.eq.s32.totalorder %s29, 0
      %p106 = por %p104, %p105
      %p107 = scmp.ne.s32.totalorder %s95, %s96
      %p108 = scmp.eq.s32.totalorder %s30, 3
      %p109 = por %p107, %p108
      %p111 = scmp.ne.s32.totalorder %s96, %s110
      %p112 = scmp.eq.s32.totalorder %s30, 0
      %p113 = por %p111, %p112
      %s115 = sadd.s32 %s114, 1
      %p118 = scmp.eq.s32.totalorder %s24, 3
      %p119 = scmp.ne.s32.totalorder %s114, %s116
      %p120 = scmp.eq.s32.totalorder %s24, 0
      %p121 = por %p119, %p120
      %p122 = scmp.ne.s32.totalorder %s114, %s116
      %p123 = scmp.eq.s32.totalorder %s29, 3
      %p124 = por %p122, %p123
      %p125 = scmp.ne.s32.totalorder %s116, %s117
      %p126 = scmp.eq.s32.totalorder %s29, 0
      %p127 = por %p125, %p126
      %p128 = scmp.ne.s32.totalorder %s116, %s117
      %p129 = scmp.eq.s32.totalorder %s30, 3
      %p130 = por %p128, %p129
      %p132 = scmp.ne.s32.totalorder %s117, %s131
      %p133 = scmp.eq.s32.totalorder %s30, 0
      %p134 = por %p132, %p133
      %s135 = ssub.s32 %s31, %s43
      %s136 = ssub.s32 %s32, %s39
      %s137 = sor.u32 %s135, %s136
      %p138 = scmp.eq.s32.totalorder %s137, 0
      %s140 = sadd.s32 %s139, 1
      %s141 = scalar_select %p138, %s139, %s140
      %p144 = pneg %p138
      %p145 = scmp.eq.s32.totalorder %s24, 3
      %p146 = por %p144, %p145
      %p147 = scmp.ne.s32.totalorder %s139, %s142
      %p148 = scmp.eq.s32.totalorder %s24, 0
      %p149 = por %p147, %p148
      %p150 = scmp.ne.s32.totalorder %s139, %s142
      %p151 = scmp.eq.s32.totalorder %s29, 3
      %p152 = por %p150, %p151
      %p153 = scmp.ne.s32.totalorder %s142, %s143
      %p154 = scmp.eq.s32.totalorder %s29, 0
      %p155 = por %p153, %p154
      %p156 = scmp.ne.s32.totalorder %s142, %s143
      %p157 = scmp.eq.s32.totalorder %s30, 3
      %p158 = por %p156, %p157
      %p160 = scmp.ne.s32.totalorder %s143, %s159
      %p161 = scmp.eq.s32.totalorder %s30, 0
      %p162 = por %p160, %p161
      %s163 = ssub.s32 %s31, %s43
      %s164 = ssub.s32 %s32, %s39
      %s165 = sor.u32 %s163, %s164
      %p166 = scmp.eq.s32.totalorder %s165, 0
      %s168 = sadd.s32 %s167, 1
      %s169 = scalar_select %p166, %s167, %s168
      %p172 = pneg %p166
      %p173 = scmp.eq.s32.totalorder %s24, 3
      %p174 = por %p172, %p173
      %p175 = scmp.ne.s32.totalorder %s167, %s170
      %p176 = scmp.eq.s32.totalorder %s24, 0
      %p177 = por %p175, %p176
      %p178 = scmp.ne.s32.totalorder %s167, %s170
      %p179 = scmp.eq.s32.totalorder %s29, 3
      %p180 = por %p178, %p179
      %p181 = scmp.ne.s32.totalorder %s170, %s171
      %p182 = scmp.eq.s32.totalorder %s29, 0
      %p183 = por %p181, %p182
      %p184 = scmp.ne.s32.totalorder %s170, %s171
      %p185 = scmp.eq.s32.totalorder %s30, 3
      %p186 = por %p184, %p185
      %p188 = scmp.ne.s32.totalorder %s171, %s187
      %p189 = scmp.eq.s32.totalorder %s30, 0
      %p190 = por %p188, %p189
      %s191 = ssub.s32 %s31, %s43
      %s192 = ssub.s32 %s32, %s39
      %s193 = sor.u32 %s191, %s192
      %p194 = scmp.eq.s32.totalorder %s193, 0
      %s196 = sadd.s32 %s195, 1
      %s197 = scalar_select %p194, %s195, %s196
      %p200 = pneg %p194
      %p201 = scmp.eq.s32.totalorder %s24, 3
      %p202 = por %p200, %p201
      %p203 = scmp.ne.s32.totalorder %s195, %s198
      %p204 = scmp.eq.s32.totalorder %s24, 0
      %p205 = por %p203, %p204
      %p206 = scmp.ne.s32.totalorder %s195, %s198
      %p207 = scmp.eq.s32.totalorder %s29, 3
      %p208 = por %p206, %p207
      %p209 = scmp.ne.s32.totalorder %s198, %s199
      %p210 = scmp.eq.s32.totalorder %s29, 0
      %p211 = por %p209, %p210
      %p212 = scmp.ne.s32.totalorder %s198, %s199
      %p213 = scmp.eq.s32.totalorder %s30, 3
      %p214 = por %p212, %p213
      %p216 = scmp.ne.s32.totalorder %s199, %s215
      %p217 = scmp.eq.s32.totalorder %s30, 0
      %p218 = por %p216, %p217
      %p219 = scmp.le.s32.totalorder 1, %s24
      %p220 = scmp.lt.s32.totalorder %s24, 5
      %p221 = pnand %p219, %p220
      %p222 = pneg %p221
      // Predicated region
      $region9: #{tpu_custom_call.1} parent=5 // pred_check
        _
      $region10: #{tpu_custom_call.1} parent=5 // pred_check_branch
        %224 = sbr.rel (%p221) target = $region12
      $region11: #{tpu_custom_call.1} parent=5 // pred_region
        %s225 = ssub.s32 %s24, 1
        // Predicated region
        $region13: #{tpu_custom_call.1} parent=11 // pred_check
          %p226 = pneg %p85
        $region14: #{tpu_custom_call.1} parent=11 // pred_check_branch
          %228 = sbr.rel (%p226) target = $region16
        $region15: #{tpu_custom_call.1} parent=11 // pred_region
          %230 = vsyncadd [#allocation6], 0
          %s232 = sshll.u32 %s1, 4
          %s233 = int_to_ptr.hbm [resolvable:$true] %s232
          %s234 = sshll.u32 [#allocation5], 4
          %s235 = int_to_ptr.vmem [resolvable:$true] %s234
          %237 = dma.hbm_to_vmem [thread:$0]  %s233, 32, %s235, [#allocation6]
        $region16: #{tpu_custom_call.1} parent=11 // pred_fallthru
          _
        // Predicated region
        $region17: #{tpu_custom_call.1} parent=11 // pred_check
          %p238 = pneg %p106
        $region18: #{tpu_custom_call.1} parent=11 // pred_check_branch
          %240 = sbr.rel (%p238) target = $region20
        $region19: #{tpu_custom_call.1} parent=11 // pred_region
          %242 = vsyncadd [#allocation6], 0
          %s244 = sshll.u32 %s2, 4
          %s245 = int_to_ptr.hbm [resolvable:$true] %s244
          %s246 = sshll.u32 [#allocation7], 4
          %s247 = int_to_ptr.vmem [resolvable:$true] %s246
          %249 = dma.hbm_to_vmem [thread:$0]  %s245, 32, %s247, [#allocation6]
        $region20: #{tpu_custom_call.1} parent=11 // pred_fallthru
          _
        // Predicated region
        $region21: #{tpu_custom_call.1} parent=11 // pred_check
          %p250 = pneg %p127
        $region22: #{tpu_custom_call.1} parent=11 // pred_check_branch
          %252 = sbr.rel (%p250) target = $region24
        $region23: #{tpu_custom_call.1} parent=11 // pred_region
          %254 = vsyncadd [#allocation9], 0
          %s255 = sshll.u32 %s3, 4
          %s256 = int_to_ptr.hbm [resolvable:$true] %s255
          %s257 = sshll.u32 [#allocation8], 4
          %s258 = int_to_ptr.vmem [resolvable:$true] %s257
          %263 = dma.hbm_to_vmem [thread:$0]  %s256, 12288, %s258, [#allocation9], 384, 384, 24
        $region24: #{tpu_custom_call.1} parent=11 // pred_fallthru
          _
      $region12: #{tpu_custom_call.1} parent=5 // pred_fallthru
        _
      %p264 = scmp.lt.s32.totalorder %s24, 4
      // Predicated region
      $region25: #{tpu_custom_call.1} parent=5 // pred_check
        %p265 = pneg %p264
      $region26: #{tpu_custom_call.1} parent=5 // pred_check_branch
        %267 = sbr.rel (%p265) target = $region28
      $region27: #{tpu_custom_call.1} parent=5 // pred_region
        // Predicated region
        $region29: #{tpu_custom_call.1} parent=27 // pred_check
          %p268 = pneg %p58
        $region30: #{tpu_custom_call.1} parent=27 // pred_check_branch
          %270 = sbr.rel (%p268) target = $region32
        $region31: #{tpu_custom_call.1} parent=27 // pred_region
          %s271 = sand.u32 %s48, 1
          %s272 = scalar_lea.sflag [#allocation3], %s271
          %s273 = sand.u32 %s48, 1
          %s274 = smul.addr %s273, 512
          %s275 = scalar_lea.vmem [#allocation2], %s274
          %s276 = smul.u32 32, %s32
          %278 = vsyncadd %s272, 0
          %s279 = smul.addr %s276, 2
          %s280 = smul.addr %s31, 128
          %s281 = sadd.s32 %s279, %s280
          %s282 = smul.addr %s281, 8
          %s283 = scalar_lea.hbm %s0, %s282
          %s284 = sshll.u32 %s283, 4
          %s285 = int_to_ptr.hbm [resolvable:$true] %s284
          %s286 = sshll.u32 %s275, 4
          %s287 = int_to_ptr.vmem [resolvable:$true] %s286
          %292 = dma.hbm_to_vmem [thread:$0]  %s285, 8192, %s287, %s272, 256, 256, 16
        $region32: #{tpu_custom_call.1} parent=27 // pred_fallthru
          _
      $region28: #{tpu_custom_call.1} parent=5 // pred_fallthru
        _
      %p293 = scmp.le.s32.totalorder 1, %s24
      %p294 = scmp.lt.s32.totalorder %s24, 5
      %p295 = pnand %p293, %p294
      %p296 = pneg %p295
      // Predicated region
      $region33: #{tpu_custom_call.1} parent=5 // pred_check
        _
      $region34: #{tpu_custom_call.1} parent=5 // pred_check_branch
        %298 = sbr.rel (%p295) target = $region36
      $region35: #{tpu_custom_call.1} parent=5 // pred_region
        %s299 = ssub.s32 %s24, 1
        %s300 = sand.u32 %s51, 1
        %s301 = scalar_lea.sflag [#allocation3], %s300
        %s302 = sand.u32 %s51, 1
        %s303 = smul.addr %s302, 512
        %s304 = scalar_lea.vmem [#allocation2], %s303
        // Predicated region
        $region37: #{tpu_custom_call.1} parent=35 // pred_check
          %p305 = pneg %p64
        $region38: #{tpu_custom_call.1} parent=35 // pred_check_branch
          %307 = sbr.rel (%p305) target = $region40
        $region39: #{tpu_custom_call.1} parent=35 // pred_region
          %309 = dma.done %s301, 8192
        $region40: #{tpu_custom_call.1} parent=35 // pred_fallthru
          _
        // Predicated region
        $region41: #{tpu_custom_call.1} parent=35 // pred_check
          %p310 = pneg %p85
        $region42: #{tpu_custom_call.1} parent=35 // pred_check_branch
          %312 = sbr.rel (%p310) target = $region44
        $region43: #{tpu_custom_call.1} parent=35 // pred_region
          %314 = dma.done [#allocation6], 32
        $region44: #{tpu_custom_call.1} parent=35 // pred_fallthru
          _
        // Predicated region
        $region45: #{tpu_custom_call.1} parent=35 // pred_check
          %p315 = pneg %p106
        $region46: #{tpu_custom_call.1} parent=35 // pred_check_branch
          %317 = sbr.rel (%p315) target = $region48
        $region47: #{tpu_custom_call.1} parent=35 // pred_region
          %319 = dma.done [#allocation6], 32
        $region48: #{tpu_custom_call.1} parent=35 // pred_fallthru
          _
        // Predicated region
        $region49: #{tpu_custom_call.1} parent=35 // pred_check
          %p320 = pneg %p127
        $region50: #{tpu_custom_call.1} parent=35 // pred_check_branch
          %322 = sbr.rel (%p320) target = $region52
        $region51: #{tpu_custom_call.1} parent=35 // pred_region
          %324 = dma.done [#allocation9], 12288
        $region52: #{tpu_custom_call.1} parent=35 // pred_fallthru
          _
        %s325 = sand.u32 %s51, 1
        %s326 = scalar_lea.sflag [#allocation3], %s325
        %s327 = sand.u32 %s51, 1
        %s328 = smul.addr %s327, 512
        %s329 = scalar_lea.vmem [#allocation2], %s328
        %p330 = pneg %p64
        %p331 = pneg %p61
        %p332 = pneg %p85
        %p333 = pneg %p82
        %p334 = pneg %p106
        %p335 = pneg %p103
        %p336 = pneg %p127
        %p337 = pneg %p124
        %p338 = pneg %p155
        %p339 = pneg %p152
        %s340 = sand.u32 %s142, 1
        %s341 = scalar_lea.sflag [#allocation4], %s340
        %s342 = sand.u32 %s142, 1
        %s343 = smul.addr %s342, 256
        %s344 = scalar_lea.vmem [#allocation10], %s343
        %p345 = pneg %p183
        %p346 = pneg %p180
        %s347 = sand.u32 %s29, 1
        %s348 = scalar_lea.sflag [#allocation12], %s347
        %s349 = sand.u32 %s170, 1
        %s350 = smul.addr %s349, 256
        %s351 = scalar_lea.vmem [#allocation11], %s350
        %p352 = pneg %p211
        %p353 = pneg %p208
        %s354 = sand.u32 %s29, 1
        %s355 = scalar_lea.sflag [#allocation12], %s354
        %s356 = sand.u32 %s198, 1
        %s357 = smul.addr %s356, 256
        %s358 = scalar_lea.vmem [#allocation13], %s357
        %s359 = smul.u32 32, %s34
        %s360 = smul.u32 32, %s34
        %s361 = smul.u32 32, %s34
        %s362 = smul.u32 32, %s34
        %v363 = vld [vmem:[%s304] sm:$0xff]
        %v364 = vld [vmem:[%s304 + $0x8] sm:$0xff]
        %v365 = vld [vmem:[%s304 + $0x10] sm:$0xff]
        %v366 = vld [vmem:[%s304 + $0x18] sm:$0xff]
        %v367 = vld [vmem:[%s304 + $0x20] sm:$0xff]
        %v368 = vld [vmem:[%s304 + $0x28] sm:$0xff]
        %v369 = vld [vmem:[%s304 + $0x30] sm:$0xff]
        %v370 = vld [vmem:[%s304 + $0x38] sm:$0xff]
        %v371 = vld [vmem:[%s304 + $0x40] sm:$0xff]
        %v372 = vld [vmem:[%s304 + $0x48] sm:$0xff]
        %v373 = vld [vmem:[%s304 + $0x50] sm:$0xff]
        %v374 = vld [vmem:[%s304 + $0x58] sm:$0xff]
        %v375 = vld [vmem:[%s304 + $0x60] sm:$0xff]
        %v376 = vld [vmem:[%s304 + $0x68] sm:$0xff]
        %v377 = vld [vmem:[%s304 + $0x70] sm:$0xff]
        %v378 = vld [vmem:[%s304 + $0x78] sm:$0xff]
        %v379 = vld [vmem:[%s304 + $0x80] sm:$0xff]
        %v380 = vld [vmem:[%s304 + $0x88] sm:$0xff]
        %v381 = vld [vmem:[%s304 + $0x90] sm:$0xff]
        %v382 = vld [vmem:[%s304 + $0x98] sm:$0xff]
        %v383 = vld [vmem:[%s304 + $0xa0] sm:$0xff]
        %v384 = vld [vmem:[%s304 + $0xa8] sm:$0xff]
        %v385 = vld [vmem:[%s304 + $0xb0] sm:$0xff]
        %v386 = vld [vmem:[%s304 + $0xb8] sm:$0xff]
        %v387 = vld [vmem:[%s304 + $0xc0] sm:$0xff]
        %v388 = vld [vmem:[%s304 + $0xc8] sm:$0xff]
        %v389 = vld [vmem:[%s304 + $0xd0] sm:$0xff]
        %v390 = vld [vmem:[%s304 + $0xd8] sm:$0xff]
        %v391 = vld [vmem:[%s304 + $0xe0] sm:$0xff]
        %v392 = vld [vmem:[%s304 + $0xe8] sm:$0xff]
        %v393 = vld [vmem:[%s304 + $0xf0] sm:$0xff]
        %v394 = vld [vmem:[%s304 + $0xf8] sm:$0xff]
        %v395 = vld [vmem:[%s304 + $0x100] sm:$0xff]
        %v396 = vld [vmem:[%s304 + $0x108] sm:$0xff]
        %v397 = vld [vmem:[%s304 + $0x110] sm:$0xff]
        %v398 = vld [vmem:[%s304 + $0x118] sm:$0xff]
        %v399 = vld [vmem:[%s304 + $0x120] sm:$0xff]
        %v400 = vld [vmem:[%s304 + $0x128] sm:$0xff]
        %v401 = vld [vmem:[%s304 + $0x130] sm:$0xff]
        %v402 = vld [vmem:[%s304 + $0x138] sm:$0xff]
        %v403 = vld [vmem:[%s304 + $0x140] sm:$0xff]
        %v404 = vld [vmem:[%s304 + $0x148] sm:$0xff]
        %v405 = vld [vmem:[%s304 + $0x150] sm:$0xff]
        %v406 = vld [vmem:[%s304 + $0x158] sm:$0xff]
        %v407 = vld [vmem:[%s304 + $0x160] sm:$0xff]
        %v408 = vld [vmem:[%s304 + $0x168] sm:$0xff]
        %v409 = vld [vmem:[%s304 + $0x170] sm:$0xff]
        %v410 = vld [vmem:[%s304 + $0x178] sm:$0xff]
        %v411 = vld [vmem:[%s304 + $0x180] sm:$0xff]
        %v412 = vld [vmem:[%s304 + $0x188] sm:$0xff]
        %v413 = vld [vmem:[%s304 + $0x190] sm:$0xff]
        %v414 = vld [vmem:[%s304 + $0x198] sm:$0xff]
        %v415 = vld [vmem:[%s304 + $0x1a0] sm:$0xff]
        %v416 = vld [vmem:[%s304 + $0x1a8] sm:$0xff]
        %v417 = vld [vmem:[%s304 + $0x1b0] sm:$0xff]
        %v418 = vld [vmem:[%s304 + $0x1b8] sm:$0xff]
        %v419 = vld [vmem:[%s304 + $0x1c0] sm:$0xff]
        %v420 = vld [vmem:[%s304 + $0x1c8] sm:$0xff]
        %v421 = vld [vmem:[%s304 + $0x1d0] sm:$0xff]
        %v422 = vld [vmem:[%s304 + $0x1d8] sm:$0xff]
        %v423 = vld [vmem:[%s304 + $0x1e0] sm:$0xff]
        %v424 = vld [vmem:[%s304 + $0x1e8] sm:$0xff]
        %v425 = vld [vmem:[%s304 + $0x1f0] sm:$0xff]
        %v426 = vld [vmem:[%s304 + $0x1f8] sm:$0xff]
        %v427 = vld [vmem:[#allocation5] sm:$0x3]
        %v428 = vld [vmem:[#allocation7] sm:$0x3]
        %v429 = vadd.f32 %v363, %v364
        %430 = vadd.xlane.f32.xlu0 %v429
        %v431 = vpop.xlane.xlu0 %430
        %v432 = vadd.f32 %v365, %v366
        %433 = vadd.xlane.f32.xlu0 %v432
        %v434 = vpop.xlane.xlu0 %433
        %v435 = vadd.f32 %v367, %v368
        %436 = vadd.xlane.f32.xlu0 %v435
        %v437 = vpop.xlane.xlu0 %436
        %v438 = vadd.f32 %v369, %v370
        %439 = vadd.xlane.f32.xlu0 %v438
        %v440 = vpop.xlane.xlu0 %439
        %v441 = vadd.f32 %v371, %v372
        %442 = vadd.xlane.f32.xlu0 %v441
        %v443 = vpop.xlane.xlu0 %442
        %v444 = vadd.f32 %v373, %v374
        %445 = vadd.xlane.f32.xlu0 %v444
        %v446 = vpop.xlane.xlu0 %445
        %v447 = vadd.f32 %v375, %v376
        %448 = vadd.xlane.f32.xlu0 %v447
        %v449 = vpop.xlane.xlu0 %448
        %v450 = vadd.f32 %v377, %v378
        %451 = vadd.xlane.f32.xlu0 %v450
        %v452 = vpop.xlane.xlu0 %451
        %v453 = vadd.f32 %v379, %v380
        %454 = vadd.xlane.f32.xlu0 %v453
        %v455 = vpop.xlane.xlu0 %454
        %v456 = vadd.f32 %v381, %v382
        %457 = vadd.xlane.f32.xlu0 %v456
        %v458 = vpop.xlane.xlu0 %457
        %v459 = vadd.f32 %v383, %v384
        %460 = vadd.xlane.f32.xlu0 %v459
        %v461 = vpop.xlane.xlu0 %460
        %v462 = vadd.f32 %v385, %v386
        %463 = vadd.xlane.f32.xlu0 %v462
        %v464 = vpop.xlane.xlu0 %463
        %v465 = vadd.f32 %v387, %v388
        %466 = vadd.xlane.f32.xlu0 %v465
        %v467 = vpop.xlane.xlu0 %466
        %v468 = vadd.f32 %v389, %v390
        %469 = vadd.xlane.f32.xlu0 %v468
        %v470 = vpop.xlane.xlu0 %469
        %v471 = vadd.f32 %v391, %v392
        %472 = vadd.xlane.f32.xlu0 %v471
        %v473 = vpop.xlane.xlu0 %472
        %v474 = vadd.f32 %v393, %v394
        %475 = vadd.xlane.f32.xlu0 %v474
        %v476 = vpop.xlane.xlu0 %475
        %v477 = vadd.f32 %v395, %v396
        %478 = vadd.xlane.f32.xlu0 %v477
        %v479 = vpop.xlane.xlu0 %478
        %v480 = vadd.f32 %v397, %v398
        %481 = vadd.xlane.f32.xlu0 %v480
        %v482 = vpop.xlane.xlu0 %481
        %v483 = vadd.f32 %v399, %v400
        %484 = vadd.xlane.f32.xlu0 %v483
        %v485 = vpop.xlane.xlu0 %484
        %v486 = vadd.f32 %v401, %v402
        %487 = vadd.xlane.f32.xlu0 %v486
        %v488 = vpop.xlane.xlu0 %487
        %v489 = vadd.f32 %v403, %v404
        %490 = vadd.xlane.f32.xlu0 %v489
        %v491 = vpop.xlane.xlu0 %490
        %v492 = vadd.f32 %v405, %v406
        %493 = vadd.xlane.f32.xlu0 %v492
        %v494 = vpop.xlane.xlu0 %493
        %v495 = vadd.f32 %v407, %v408
        %496 = vadd.xlane.f32.xlu0 %v495
        %v497 = vpop.xlane.xlu0 %496
        %v498 = vadd.f32 %v409, %v410
        %499 = vadd.xlane.f32.xlu0 %v498
        %v500 = vpop.xlane.xlu0 %499
        %v501 = vadd.f32 %v411, %v412
        %502 = vadd.xlane.f32.xlu0 %v501
        %v503 = vpop.xlane.xlu0 %502
        %v504 = vadd.f32 %v413, %v414
        %505 = vadd.xlane.f32.xlu0 %v504
        %v506 = vpop.xlane.xlu0 %505
        %v507 = vadd.f32 %v415, %v416
        %508 = vadd.xlane.f32.xlu0 %v507
        %v509 = vpop.xlane.xlu0 %508
        %v510 = vadd.f32 %v417, %v418
        %511 = vadd.xlane.f32.xlu0 %v510
        %v512 = vpop.xlane.xlu0 %511
        %v513 = vadd.f32 %v419, %v420
        %514 = vadd.xlane.f32.xlu0 %v513
        %v515 = vpop.xlane.xlu0 %514
        %v516 = vadd.f32 %v421, %v422
        %517 = vadd.xlane.f32.xlu0 %v516
        %v518 = vpop.xlane.xlu0 %517
        %v519 = vadd.f32 %v423, %v424
        %520 = vadd.xlane.f32.xlu0 %v519
        %v521 = vpop.xlane.xlu0 %520
        %v522 = vadd.f32 %v425, %v426
        %523 = vadd.xlane.f32.xlu0 %v522
        %v524 = vpop.xlane.xlu0 %523
        %v525 = vrcp.pop 256.0
        %v526 = vmul.f32 256.0, %v525
        %v527 = vsub.f32 1.0, %v526
        %v528 = vmul.f32 %v525, %v527
        %v529 = vadd.f32 %v525, %v528
        %vm530 = vweird.f32 %v525
        %v531 = vsel %vm530, %v525, %v529
        %v532 = vmul.f32 %v431, %v531
        %v533 = vmul.f32 %v434, %v531
        %v534 = vmul.f32 %v437, %v531
        %v535 = vmul.f32 %v440, %v531
        %v536 = vmul.f32 %v443, %v531
        %v537 = vmul.f32 %v446, %v531
        %v538 = vmul.f32 %v449, %v531
        %v539 = vmul.f32 %v452, %v531
        %v540 = vmul.f32 %v455, %v531
        %v541 = vmul.f32 %v458, %v531
        %v542 = vmul.f32 %v461, %v531
        %v543 = vmul.f32 %v464, %v531
        %v544 = vmul.f32 %v467, %v531
        %v545 = vmul.f32 %v470, %v531
        %v546 = vmul.f32 %v473, %v531
        %v547 = vmul.f32 %v476, %v531
        %v548 = vmul.f32 %v479, %v531
        %v549 = vmul.f32 %v482, %v531
        %v550 = vmul.f32 %v485, %v531
        %v551 = vmul.f32 %v488, %v531
        %v552 = vmul.f32 %v491, %v531
        %v553 = vmul.f32 %v494, %v531
        %v554 = vmul.f32 %v497, %v531
        %v555 = vmul.f32 %v500, %v531
        %v556 = vmul.f32 %v503, %v531
        %v557 = vmul.f32 %v506, %v531
        %v558 = vmul.f32 %v509, %v531
        %v559 = vmul.f32 %v512, %v531
        %v560 = vmul.f32 %v515, %v531
        %v561 = vmul.f32 %v518, %v531
        %v562 = vmul.f32 %v521, %v531
        %v563 = vmul.f32 %v524, %v531
        %v564 = vsub.f32 %v363, %v532
        %v565 = vsub.f32 %v364, %v532
        %v566 = vsub.f32 %v365, %v533
        %v567 = vsub.f32 %v366, %v533
        %v568 = vsub.f32 %v367, %v534
        %v569 = vsub.f32 %v368, %v534
        %v570 = vsub.f32 %v369, %v535
        %v571 = vsub.f32 %v370, %v535
        %v572 = vsub.f32 %v371, %v536
        %v573 = vsub.f32 %v372, %v536
        %v574 = vsub.f32 %v373, %v537
        %v575 = vsub.f32 %v374, %v537
        %v576 = vsub.f32 %v375, %v538
        %v577 = vsub.f32 %v376, %v538
        %v578 = vsub.f32 %v377, %v539
        %v579 = vsub.f32 %v378, %v539
        %v580 = vsub.f32 %v379, %v540
        %v581 = vsub.f32 %v380, %v540
        %v582 = vsub.f32 %v381, %v541
        %v583 = vsub.f32 %v382, %v541
        %v584 = vsub.f32 %v383, %v542
        %v585 = vsub.f32 %v384, %v542
        %v586 = vsub.f32 %v385, %v543
        %v587 = vsub.f32 %v386, %v543
        %v588 = vsub.f32 %v387, %v544
        %v589 = vsub.f32 %v388, %v544
        %v590 = vsub.f32 %v389, %v545
        %v591 = vsub.f32 %v390, %v545
        %v592 = vsub.f32 %v391, %v546
        %v593 = vsub.f32 %v392, %v546
        %v594 = vsub.f32 %v393, %v547
        %v595 = vsub.f32 %v394, %v547
        %v596 = vsub.f32 %v395, %v548
        %v597 = vsub.f32 %v396, %v548
        %v598 = vsub.f32 %v397, %v549
        %v599 = vsub.f32 %v398, %v549
        %v600 = vsub.f32 %v399, %v550
        %v601 = vsub.f32 %v400, %v550
        %v602 = vsub.f32 %v401, %v551
        %v603 = vsub.f32 %v402, %v551
        %v604 = vsub.f32 %v403, %v552
        %v605 = vsub.f32 %v404, %v552
        %v606 = vsub.f32 %v405, %v553
        %v607 = vsub.f32 %v406, %v553
        %v608 = vsub.f32 %v407, %v554
        %v609 = vsub.f32 %v408, %v554
        %v610 = vsub.f32 %v409, %v555
        %v611 = vsub.f32 %v410, %v555
        %v612 = vsub.f32 %v411, %v556
        %v613 = vsub.f32 %v412, %v556
        %v614 = vsub.f32 %v413, %v557
        %v615 = vsub.f32 %v414, %v557
        %v616 = vsub.f32 %v415, %v558
        %v617 = vsub.f32 %v416, %v558
        %v618 = vsub.f32 %v417, %v559
        %v619 = vsub.f32 %v418, %v559
        %v620 = vsub.f32 %v419, %v560
        %v621 = vsub.f32 %v420, %v560
        %v622 = vsub.f32 %v421, %v561
        %v623 = vsub.f32 %v422, %v561
        %v624 = vsub.f32 %v423, %v562
        %v625 = vsub.f32 %v424, %v562
        %v626 = vsub.f32 %v425, %v563
        %v627 = vsub.f32 %v426, %v563
        %v628 = vmul.f32 %v564, %v564
        %v629 = vmul.f32 %v565, %v565
        %v630 = vmul.f32 %v566, %v566
        %v631 = vmul.f32 %v567, %v567
        %v632 = vmul.f32 %v568, %v568
        %v633 = vmul.f32 %v569, %v569
        %v634 = vmul.f32 %v570, %v570
        %v635 = vmul.f32 %v571, %v571
        %v636 = vmul.f32 %v572, %v572
        %v637 = vmul.f32 %v573, %v573
        %v638 = vmul.f32 %v574, %v574
        %v639 = vmul.f32 %v575, %v575
        %v640 = vmul.f32 %v576, %v576
        %v641 = vmul.f32 %v577, %v577
        %v642 = vmul.f32 %v578, %v578
        %v643 = vmul.f32 %v579, %v579
        %v644 = vmul.f32 %v580, %v580
        %v645 = vmul.f32 %v581, %v581
        %v646 = vmul.f32 %v582, %v582
        %v647 = vmul.f32 %v583, %v583
        %v648 = vmul.f32 %v584, %v584
        %v649 = vmul.f32 %v585, %v585
        %v650 = vmul.f32 %v586, %v586
        %v651 = vmul.f32 %v587, %v587
        %v652 = vmul.f32 %v588, %v588
        %v653 = vmul.f32 %v589, %v589
        %v654 = vmul.f32 %v590, %v590
        %v655 = vmul.f32 %v591, %v591
        %v656 = vmul.f32 %v592, %v592
        %v657 = vmul.f32 %v593, %v593
        %v658 = vmul.f32 %v594, %v594
        %v659 = vmul.f32 %v595, %v595
        %v660 = vmul.f32 %v596, %v596
        %v661 = vmul.f32 %v597, %v597
        %v662 = vmul.f32 %v598, %v598
        %v663 = vmul.f32 %v599, %v599
        %v664 = vmul.f32 %v600, %v600
        %v665 = vmul.f32 %v601, %v601
        %v666 = vmul.f32 %v602, %v602
        %v667 = vmul.f32 %v603, %v603
        %v668 = vmul.f32 %v604, %v604
        %v669 = vmul.f32 %v605, %v605
        %v670 = vmul.f32 %v606, %v606
        %v671 = vmul.f32 %v607, %v607
        %v672 = vmul.f32 %v608, %v608
        %v673 = vmul.f32 %v609, %v609
        %v674 = vmul.f32 %v610, %v610
        %v675 = vmul.f32 %v611, %v611
        %v676 = vmul.f32 %v612, %v612
        %v677 = vmul.f32 %v613, %v613
        %v678 = vmul.f32 %v614, %v614
        %v679 = vmul.f32 %v615, %v615
        %v680 = vmul.f32 %v616, %v616
        %v681 = vmul.f32 %v617, %v617
        %v682 = vmul.f32 %v618, %v618
        %v683 = vmul.f32 %v619, %v619
        %v684 = vmul.f32 %v620, %v620
        %v685 = vmul.f32 %v621, %v621
        %v686 = vmul.f32 %v622, %v622
        %v687 = vmul.f32 %v623, %v623
        %v688 = vmul.f32 %v624, %v624
        %v689 = vmul.f32 %v625, %v625
        %v690 = vmul.f32 %v626, %v626
        %v691 = vmul.f32 %v627, %v627
        %v692 = vadd.f32 %v628, %v629
        %693 = vadd.xlane.f32.xlu0 %v692
        %v694 = vpop.xlane.xlu0 %693
        %v695 = vadd.f32 %v630, %v631
        %696 = vadd.xlane.f32.xlu0 %v695
        %v697 = vpop.xlane.xlu0 %696
        %v698 = vadd.f32 %v632, %v633
        %699 = vadd.xlane.f32.xlu0 %v698
        %v700 = vpop.xlane.xlu0 %699
        %v701 = vadd.f32 %v634, %v635
        %702 = vadd.xlane.f32.xlu0 %v701
        %v703 = vpop.xlane.xlu0 %702
        %v704 = vadd.f32 %v636, %v637
        %705 = vadd.xlane.f32.xlu0 %v704
        %v706 = vpop.xlane.xlu0 %705
        %v707 = vadd.f32 %v638, %v639
        %708 = vadd.xlane.f32.xlu0 %v707
        %v709 = vpop.xlane.xlu0 %708
        %v710 = vadd.f32 %v640, %v641
        %711 = vadd.xlane.f32.xlu0 %v710
        %v712 = vpop.xlane.xlu0 %711
        %v713 = vadd.f32 %v642, %v643
        %714 = vadd.xlane.f32.xlu0 %v713
        %v715 = vpop.xlane.xlu0 %714
        %v716 = vadd.f32 %v644, %v645
        %717 = vadd.xlane.f32.xlu0 %v716
        %v718 = vpop.xlane.xlu0 %717
        %v719 = vadd.f32 %v646, %v647
        %720 = vadd.xlane.f32.xlu0 %v719
        %v721 = vpop.xlane.xlu0 %720
        %v722 = vadd.f32 %v648, %v649
        %723 = vadd.xlane.f32.xlu0 %v722
        %v724 = vpop.xlane.xlu0 %723
        %v725 = vadd.f32 %v650, %v651
        %726 = vadd.xlane.f32.xlu0 %v725
        %v727 = vpop.xlane.xlu0 %726
        %v728 = vadd.f32 %v652, %v653
        %729 = vadd.xlane.f32.xlu0 %v728
        %v730 = vpop.xlane.xlu0 %729
        %v731 = vadd.f32 %v654, %v655
        %732 = vadd.xlane.f32.xlu0 %v731
        %v733 = vpop.xlane.xlu0 %732
        %v734 = vadd.f32 %v656, %v657
        %735 = vadd.xlane.f32.xlu0 %v734
        %v736 = vpop.xlane.xlu0 %735
        %v737 = vadd.f32 %v658, %v659
        %738 = vadd.xlane.f32.xlu0 %v737
        %v739 = vpop.xlane.xlu0 %738
        %v740 = vadd.f32 %v660, %v661
        %741 = vadd.xlane.f32.xlu0 %v740
        %v742 = vpop.xlane.xlu0 %741
        %v743 = vadd.f32 %v662, %v663
        %744 = vadd.xlane.f32.xlu0 %v743
        %v745 = vpop.xlane.xlu0 %744
        %v746 = vadd.f32 %v664, %v665
        %747 = vadd.xlane.f32.xlu0 %v746
        %v748 = vpop.xlane.xlu0 %747
        %v749 = vadd.f32 %v666, %v667
        %750 = vadd.xlane.f32.xlu0 %v749
        %v751 = vpop.xlane.xlu0 %750
        %v752 = vadd.f32 %v668, %v669
        %753 = vadd.xlane.f32.xlu0 %v752
        %v754 = vpop.xlane.xlu0 %753
        %v755 = vadd.f32 %v670, %v671
        %756 = vadd.xlane.f32.xlu0 %v755
        %v757 = vpop.xlane.xlu0 %756
        %v758 = vadd.f32 %v672, %v673
        %759 = vadd.xlane.f32.xlu0 %v758
        %v760 = vpop.xlane.xlu0 %759
        %v761 = vadd.f32 %v674, %v675
        %762 = vadd.xlane.f32.xlu0 %v761
        %v763 = vpop.xlane.xlu0 %762
        %v764 = vadd.f32 %v676, %v677
        %765 = vadd.xlane.f32.xlu0 %v764
        %v766 = vpop.xlane.xlu0 %765
        %v767 = vadd.f32 %v678, %v679
        %768 = vadd.xlane.f32.xlu0 %v767
        %v769 = vpop.xlane.xlu0 %768
        %v770 = vadd.f32 %v680, %v681
        %771 = vadd.xlane.f32.xlu0 %v770
        %v772 = vpop.xlane.xlu0 %771
        %v773 = vadd.f32 %v682, %v683
        %774 = vadd.xlane.f32.xlu0 %v773
        %v775 = vpop.xlane.xlu0 %774
        %v776 = vadd.f32 %v684, %v685
        %777 = vadd.xlane.f32.xlu0 %v776
        %v778 = vpop.xlane.xlu0 %777
        %v779 = vadd.f32 %v686, %v687
        %780 = vadd.xlane.f32.xlu0 %v779
        %v781 = vpop.xlane.xlu0 %780
        %v782 = vadd.f32 %v688, %v689
        %783 = vadd.xlane.f32.xlu0 %v782
        %v784 = vpop.xlane.xlu0 %783
        %v785 = vadd.f32 %v690, %v691
        %786 = vadd.xlane.f32.xlu0 %v785
        %v787 = vpop.xlane.xlu0 %786
        %v788 = vmul.f32 %v694, %v531
        %v789 = vmul.f32 %v697, %v531
        %v790 = vmul.f32 %v700, %v531
        %v791 = vmul.f32 %v703, %v531
        %v792 = vmul.f32 %v706, %v531
        %v793 = vmul.f32 %v709, %v531
        %v794 = vmul.f32 %v712, %v531
        %v795 = vmul.f32 %v715, %v531
        %v796 = vmul.f32 %v718, %v531
        %v797 = vmul.f32 %v721, %v531
        %v798 = vmul.f32 %v724, %v531
        %v799 = vmul.f32 %v727, %v531
        %v800 = vmul.f32 %v730, %v531
        %v801 = vmul.f32 %v733, %v531
        %v802 = vmul.f32 %v736, %v531
        %v803 = vmul.f32 %v739, %v531
        %v804 = vmul.f32 %v742, %v531
        %v805 = vmul.f32 %v745, %v531
        %v806 = vmul.f32 %v748, %v531
        %v807 = vmul.f32 %v751, %v531
        %v808 = vmul.f32 %v754, %v531
        %v809 = vmul.f32 %v757, %v531
        %v810 = vmul.f32 %v760, %v531
        %v811 = vmul.f32 %v763, %v531
        %v812 = vmul.f32 %v766, %v531
        %v813 = vmul.f32 %v769, %v531
        %v814 = vmul.f32 %v772, %v531
        %v815 = vmul.f32 %v775, %v531
        %v816 = vmul.f32 %v778, %v531
        %v817 = vmul.f32 %v781, %v531
        %v818 = vmul.f32 %v784, %v531
        %v819 = vmul.f32 %v787, %v531
        %v820 = vadd.f32 %v788, 1e-05
        %v821 = vadd.f32 %v789, 1e-05
        %v822 = vadd.f32 %v790, 1e-05
        %v823 = vadd.f32 %v791, 1e-05
        %v824 = vadd.f32 %v792, 1e-05
        %v825 = vadd.f32 %v793, 1e-05
        %v826 = vadd.f32 %v794, 1e-05
        %v827 = vadd.f32 %v795, 1e-05
        %v828 = vadd.f32 %v796, 1e-05
        %v829 = vadd.f32 %v797, 1e-05
        %v830 = vadd.f32 %v798, 1e-05
        %v831 = vadd.f32 %v799, 1e-05
        %v832 = vadd.f32 %v800, 1e-05
        %v833 = vadd.f32 %v801, 1e-05
        %v834 = vadd.f32 %v802, 1e-05
        %v835 = vadd.f32 %v803, 1e-05
        %v836 = vadd.f32 %v804, 1e-05
        %v837 = vadd.f32 %v805, 1e-05
        %v838 = vadd.f32 %v806, 1e-05
        %v839 = vadd.f32 %v807, 1e-05
        %v840 = vadd.f32 %v808, 1e-05
        %v841 = vadd.f32 %v809, 1e-05
        %v842 = vadd.f32 %v810, 1e-05
        %v843 = vadd.f32 %v811, 1e-05
        %v844 = vadd.f32 %v812, 1e-05
        %v845 = vadd.f32 %v813, 1e-05
        %v846 = vadd.f32 %v814, 1e-05
        %v847 = vadd.f32 %v815, 1e-05
        %v848 = vadd.f32 %v816, 1e-05
        %v849 = vadd.f32 %v817, 1e-05
        %v850 = vadd.f32 %v818, 1e-05
        %v851 = vadd.f32 %v819, 1e-05
        %v852 = vrsqrt.pop %v820
        %v853 = vmul.f32 %v852, %v820
        %v854 = vmul.f32 %v853, %v852
        %v855 = vmul.f32 0.5, %v854
        %v856 = vsub.f32 1.5, %v855
        %v857 = vmul.f32 %v852, %v856
        %vm858 = vweird.f32 %v820
        %vm859 = vweird.f32 %v852
        %vm860 = vmor %vm858, %vm859
        %v861 = vsel %vm860, %v852, %v857
        %v862 = vrsqrt.pop %v821
        %v863 = vmul.f32 %v862, %v821
        %v864 = vmul.f32 %v863, %v862
        %v865 = vmul.f32 0.5, %v864
        %v866 = vsub.f32 1.5, %v865
        %v867 = vmul.f32 %v862, %v866
        %vm868 = vweird.f32 %v821
        %vm869 = vweird.f32 %v862
        %vm870 = vmor %vm868, %vm869
        %v871 = vsel %vm870, %v862, %v867
        %v872 = vrsqrt.pop %v822
        %v873 = vmul.f32 %v872, %v822
        %v874 = vmul.f32 %v873, %v872
        %v875 = vmul.f32 0.5, %v874
        %v876 = vsub.f32 1.5, %v875
        %v877 = vmul.f32 %v872, %v876
        %vm878 = vweird.f32 %v822
        %vm879 = vweird.f32 %v872
        %vm880 = vmor %vm878, %vm879
        %v881 = vsel %vm880, %v872, %v877
        %v882 = vrsqrt.pop %v823
        %v883 = vmul.f32 %v882, %v823
        %v884 = vmul.f32 %v883, %v882
        %v885 = vmul.f32 0.5, %v884
        %v886 = vsub.f32 1.5, %v885
        %v887 = vmul.f32 %v882, %v886
        %vm888 = vweird.f32 %v823
        %vm889 = vweird.f32 %v882
        %vm890 = vmor %vm888, %vm889
        %v891 = vsel %vm890, %v882, %v887
        %v892 = vrsqrt.pop %v824
        %v893 = vmul.f32 %v892, %v824
        %v894 = vmul.f32 %v893, %v892
        %v895 = vmul.f32 0.5, %v894
        %v896 = vsub.f32 1.5, %v895
        %v897 = vmul.f32 %v892, %v896
        %vm898 = vweird.f32 %v824
        %vm899 = vweird.f32 %v892
        %vm900 = vmor %vm898, %vm899
        %v901 = vsel %vm900, %v892, %v897
        %v902 = vrsqrt.pop %v825
        %v903 = vmul.f32 %v902, %v825
        %v904 = vmul.f32 %v903, %v902
        %v905 = vmul.f32 0.5, %v904
        %v906 = vsub.f32 1.5, %v905
        %v907 = vmul.f32 %v902, %v906
        %vm908 = vweird.f32 %v825
        %vm909 = vweird.f32 %v902
        %vm910 = vmor %vm908, %vm909
        %v911 = vsel %vm910, %v902, %v907
        %v912 = vrsqrt.pop %v826
        %v913 = vmul.f32 %v912, %v826
        %v914 = vmul.f32 %v913, %v912
        %v915 = vmul.f32 0.5, %v914
        %v916 = vsub.f32 1.5, %v915
        %v917 = vmul.f32 %v912, %v916
        %vm918 = vweird.f32 %v826
        %vm919 = vweird.f32 %v912
        %vm920 = vmor %vm918, %vm919
        %v921 = vsel %vm920, %v912, %v917
        %v922 = vrsqrt.pop %v827
        %v923 = vmul.f32 %v922, %v827
        %v924 = vmul.f32 %v923, %v922
        %v925 = vmul.f32 0.5, %v924
        %v926 = vsub.f32 1.5, %v925
        %v927 = vmul.f32 %v922, %v926
        %vm928 = vweird.f32 %v827
        %vm929 = vweird.f32 %v922
        %vm930 = vmor %vm928, %vm929
        %v931 = vsel %vm930, %v922, %v927
        %v932 = vrsqrt.pop %v828
        %v933 = vmul.f32 %v932, %v828
        %v934 = vmul.f32 %v933, %v932
        %v935 = vmul.f32 0.5, %v934
        %v936 = vsub.f32 1.5, %v935
        %v937 = vmul.f32 %v932, %v936
        %vm938 = vweird.f32 %v828
        %vm939 = vweird.f32 %v932
        %vm940 = vmor %vm938, %vm939
        %v941 = vsel %vm940, %v932, %v937
        %v942 = vrsqrt.pop %v829
        %v943 = vmul.f32 %v942, %v829
        %v944 = vmul.f32 %v943, %v942
        %v945 = vmul.f32 0.5, %v944
        %v946 = vsub.f32 1.5, %v945
        %v947 = vmul.f32 %v942, %v946
        %vm948 = vweird.f32 %v829
        %vm949 = vweird.f32 %v942
        %vm950 = vmor %vm948, %vm949
        %v951 = vsel %vm950, %v942, %v947
        %v952 = vrsqrt.pop %v830
        %v953 = vmul.f32 %v952, %v830
        %v954 = vmul.f32 %v953, %v952
        %v955 = vmul.f32 0.5, %v954
        %v956 = vsub.f32 1.5, %v955
        %v957 = vmul.f32 %v952, %v956
        %vm958 = vweird.f32 %v830
        %vm959 = vweird.f32 %v952
        %vm960 = vmor %vm958, %vm959
        %v961 = vsel %vm960, %v952, %v957
        %v962 = vrsqrt.pop %v831
        %v963 = vmul.f32 %v962, %v831
        %v964 = vmul.f32 %v963, %v962
        %v965 = vmul.f32 0.5, %v964
        %v966 = vsub.f32 1.5, %v965
        %v967 = vmul.f32 %v962, %v966
        %vm968 = vweird.f32 %v831
        %vm969 = vweird.f32 %v962
        %vm970 = vmor %vm968, %vm969
        %v971 = vsel %vm970, %v962, %v967
        %v972 = vrsqrt.pop %v832
        %v973 = vmul.f32 %v972, %v832
        %v974 = vmul.f32 %v973, %v972
        %v975 = vmul.f32 0.5, %v974
        %v976 = vsub.f32 1.5, %v975
        %v977 = vmul.f32 %v972, %v976
        %vm978 = vweird.f32 %v832
        %vm979 = vweird.f32 %v972
        %vm980 = vmor %vm978, %vm979
        %v981 = vsel %vm980, %v972, %v977
        %v982 = vrsqrt.pop %v833
        %v983 = vmul.f32 %v982, %v833
        %v984 = vmul.f32 %v983, %v982
        %v985 = vmul.f32 0.5, %v984
        %v986 = vsub.f32 1.5, %v985
        %v987 = vmul.f32 %v982, %v986
        %vm988 = vweird.f32 %v833
        %vm989 = vweird.f32 %v982
        %vm990 = vmor %vm988, %vm989
        %v991 = vsel %vm990, %v982, %v987
        %v992 = vrsqrt.pop %v834
        %v993 = vmul.f32 %v992, %v834
        %v994 = vmul.f32 %v993, %v992
        %v995 = vmul.f32 0.5, %v994
        %v996 = vsub.f32 1.5, %v995
        %v997 = vmul.f32 %v992, %v996
        %vm998 = vweird.f32 %v834
        %vm999 = vweird.f32 %v992
        %vm1000 = vmor %vm998, %vm999
        %v1001 = vsel %vm1000, %v992, %v997
        %v1002 = vrsqrt.pop %v835
        %v1003 = vmul.f32 %v1002, %v835
        %v1004 = vmul.f32 %v1003, %v1002
        %v1005 = vmul.f32 0.5, %v1004
        %v1006 = vsub.f32 1.5, %v1005
        %v1007 = vmul.f32 %v1002, %v1006
        %vm1008 = vweird.f32 %v835
        %vm1009 = vweird.f32 %v1002
        %vm1010 = vmor %vm1008, %vm1009
        %v1011 = vsel %vm1010, %v1002, %v1007
        %v1012 = vrsqrt.pop %v836
        %v1013 = vmul.f32 %v1012, %v836
        %v1014 = vmul.f32 %v1013, %v1012
        %v1015 = vmul.f32 0.5, %v1014
        %v1016 = vsub.f32 1.5, %v1015
        %v1017 = vmul.f32 %v1012, %v1016
        %vm1018 = vweird.f32 %v836
        %vm1019 = vweird.f32 %v1012
        %vm1020 = vmor %vm1018, %vm1019
        %v1021 = vsel %vm1020, %v1012, %v1017
        %v1022 = vrsqrt.pop %v837
        %v1023 = vmul.f32 %v1022, %v837
        %v1024 = vmul.f32 %v1023, %v1022
        %v1025 = vmul.f32 0.5, %v1024
        %v1026 = vsub.f32 1.5, %v1025
        %v1027 = vmul.f32 %v1022, %v1026
        %vm1028 = vweird.f32 %v837
        %vm1029 = vweird.f32 %v1022
        %vm1030 = vmor %vm1028, %vm1029
        %v1031 = vsel %vm1030, %v1022, %v1027
        %v1032 = vrsqrt.pop %v838
        %v1033 = vmul.f32 %v1032, %v838
        %v1034 = vmul.f32 %v1033, %v1032
        %v1035 = vmul.f32 0.5, %v1034
        %v1036 = vsub.f32 1.5, %v1035
        %v1037 = vmul.f32 %v1032, %v1036
        %vm1038 = vweird.f32 %v838
        %vm1039 = vweird.f32 %v1032
        %vm1040 = vmor %vm1038, %vm1039
        %v1041 = vsel %vm1040, %v1032, %v1037
        %v1042 = vrsqrt.pop %v839
        %v1043 = vmul.f32 %v1042, %v839
        %v1044 = vmul.f32 %v1043, %v1042
        %v1045 = vmul.f32 0.5, %v1044
        %v1046 = vsub.f32 1.5, %v1045
        %v1047 = vmul.f32 %v1042, %v1046
        %vm1048 = vweird.f32 %v839
        %vm1049 = vweird.f32 %v1042
        %vm1050 = vmor %vm1048, %vm1049
        %v1051 = vsel %vm1050, %v1042, %v1047
        %v1052 = vrsqrt.pop %v840
        %v1053 = vmul.f32 %v1052, %v840
        %v1054 = vmul.f32 %v1053, %v1052
        %v1055 = vmul.f32 0.5, %v1054
        %v1056 = vsub.f32 1.5, %v1055
        %v1057 = vmul.f32 %v1052, %v1056
        %vm1058 = vweird.f32 %v840
        %vm1059 = vweird.f32 %v1052
        %vm1060 = vmor %vm1058, %vm1059
        %v1061 = vsel %vm1060, %v1052, %v1057
        %v1062 = vrsqrt.pop %v841
        %v1063 = vmul.f32 %v1062, %v841
        %v1064 = vmul.f32 %v1063, %v1062
        %v1065 = vmul.f32 0.5, %v1064
        %v1066 = vsub.f32 1.5, %v1065
        %v1067 = vmul.f32 %v1062, %v1066
        %vm1068 = vweird.f32 %v841
        %vm1069 = vweird.f32 %v1062
        %vm1070 = vmor %vm1068, %vm1069
        %v1071 = vsel %vm1070, %v1062, %v1067
        %v1072 = vrsqrt.pop %v842
        %v1073 = vmul.f32 %v1072, %v842
        %v1074 = vmul.f32 %v1073, %v1072
        %v1075 = vmul.f32 0.5, %v1074
        %v1076 = vsub.f32 1.5, %v1075
        %v1077 = vmul.f32 %v1072, %v1076
        %vm1078 = vweird.f32 %v842
        %vm1079 = vweird.f32 %v1072
        %vm1080 = vmor %vm1078, %vm1079
        %v1081 = vsel %vm1080, %v1072, %v1077
        %v1082 = vrsqrt.pop %v843
        %v1083 = vmul.f32 %v1082, %v843
        %v1084 = vmul.f32 %v1083, %v1082
        %v1085 = vmul.f32 0.5, %v1084
        %v1086 = vsub.f32 1.5, %v1085
        %v1087 = vmul.f32 %v1082, %v1086
        %vm1088 = vweird.f32 %v843
        %vm1089 = vweird.f32 %v1082
        %vm1090 = vmor %vm1088, %vm1089
        %v1091 = vsel %vm1090, %v1082, %v1087
        %v1092 = vrsqrt.pop %v844
        %v1093 = vmul.f32 %v1092, %v844
        %v1094 = vmul.f32 %v1093, %v1092
        %v1095 = vmul.f32 0.5, %v1094
        %v1096 = vsub.f32 1.5, %v1095
        %v1097 = vmul.f32 %v1092, %v1096
        %vm1098 = vweird.f32 %v844
        %vm1099 = vweird.f32 %v1092
        %vm1100 = vmor %vm1098, %vm1099
        %v1101 = vsel %vm1100, %v1092, %v1097
        %v1102 = vrsqrt.pop %v845
        %v1103 = vmul.f32 %v1102, %v845
        %v1104 = vmul.f32 %v1103, %v1102
        %v1105 = vmul.f32 0.5, %v1104
        %v1106 = vsub.f32 1.5, %v1105
        %v1107 = vmul.f32 %v1102, %v1106
        %vm1108 = vweird.f32 %v845
        %vm1109 = vweird.f32 %v1102
        %vm1110 = vmor %vm1108, %vm1109
        %v1111 = vsel %vm1110, %v1102, %v1107
        %v1112 = vrsqrt.pop %v846
        %v1113 = vmul.f32 %v1112, %v846
        %v1114 = vmul.f32 %v1113, %v1112
        %v1115 = vmul.f32 0.5, %v1114
        %v1116 = vsub.f32 1.5, %v1115
        %v1117 = vmul.f32 %v1112, %v1116
        %vm1118 = vweird.f32 %v846
        %vm1119 = vweird.f32 %v1112
        %vm1120 = vmor %vm1118, %vm1119
        %v1121 = vsel %vm1120, %v1112, %v1117
        %v1122 = vrsqrt.pop %v847
        %v1123 = vmul.f32 %v1122, %v847
        %v1124 = vmul.f32 %v1123, %v1122
        %v1125 = vmul.f32 0.5, %v1124
        %v1126 = vsub.f32 1.5, %v1125
        %v1127 = vmul.f32 %v1122, %v1126
        %vm1128 = vweird.f32 %v847
        %vm1129 = vweird.f32 %v1122
        %vm1130 = vmor %vm1128, %vm1129
        %v1131 = vsel %vm1130, %v1122, %v1127
        %v1132 = vrsqrt.pop %v848
        %v1133 = vmul.f32 %v1132, %v848
        %v1134 = vmul.f32 %v1133, %v1132
        %v1135 = vmul.f32 0.5, %v1134
        %v1136 = vsub.f32 1.5, %v1135
        %v1137 = vmul.f32 %v1132, %v1136
        %vm1138 = vweird.f32 %v848
        %vm1139 = vweird.f32 %v1132
        %vm1140 = vmor %vm1138, %vm1139
        %v1141 = vsel %vm1140, %v1132, %v1137
        %v1142 = vrsqrt.pop %v849
        %v1143 = vmul.f32 %v1142, %v849
        %v1144 = vmul.f32 %v1143, %v1142
        %v1145 = vmul.f32 0.5, %v1144
        %v1146 = vsub.f32 1.5, %v1145
        %v1147 = vmul.f32 %v1142, %v1146
        %vm1148 = vweird.f32 %v849
        %vm1149 = vweird.f32 %v1142
        %vm1150 = vmor %vm1148, %vm1149
        %v1151 = vsel %vm1150, %v1142, %v1147
        %v1152 = vrsqrt.pop %v850
        %v1153 = vmul.f32 %v1152, %v850
        %v1154 = vmul.f32 %v1153, %v1152
        %v1155 = vmul.f32 0.5, %v1154
        %v1156 = vsub.f32 1.5, %v1155
        %v1157 = vmul.f32 %v1152, %v1156
        %vm1158 = vweird.f32 %v850
        %vm1159 = vweird.f32 %v1152
        %vm1160 = vmor %vm1158, %vm1159
        %v1161 = vsel %vm1160, %v1152, %v1157
        %v1162 = vrsqrt.pop %v851
        %v1163 = vmul.f32 %v1162, %v851
        %v1164 = vmul.f32 %v1163, %v1162
        %v1165 = vmul.f32 0.5, %v1164
        %v1166 = vsub.f32 1.5, %v1165
        %v1167 = vmul.f32 %v1162, %v1166
        %vm1168 = vweird.f32 %v851
        %vm1169 = vweird.f32 %v1162
        %vm1170 = vmor %vm1168, %vm1169
        %v1171 = vsel %vm1170, %v1162, %v1167
        %v1172 = vmul.f32 %v564, %v861
        %v1173 = vmul.f32 %v565, %v861
        %v1174 = vmul.f32 %v566, %v871
        %v1175 = vmul.f32 %v567, %v871
        %v1176 = vmul.f32 %v568, %v881
        %v1177 = vmul.f32 %v569, %v881
        %v1178 = vmul.f32 %v570, %v891
        %v1179 = vmul.f32 %v571, %v891
        %v1180 = vmul.f32 %v572, %v901
        %v1181 = vmul.f32 %v573, %v901
        %v1182 = vmul.f32 %v574, %v911
        %v1183 = vmul.f32 %v575, %v911
        %v1184 = vmul.f32 %v576, %v921
        %v1185 = vmul.f32 %v577, %v921
        %v1186 = vmul.f32 %v578, %v931
        %v1187 = vmul.f32 %v579, %v931
        %v1188 = vmul.f32 %v580, %v941
        %v1189 = vmul.f32 %v581, %v941
        %v1190 = vmul.f32 %v582, %v951
        %v1191 = vmul.f32 %v583, %v951
        %v1192 = vmul.f32 %v584, %v961
        %v1193 = vmul.f32 %v585, %v961
        %v1194 = vmul.f32 %v586, %v971
        %v1195 = vmul.f32 %v587, %v971
        %v1196 = vmul.f32 %v588, %v981
        %v1197 = vmul.f32 %v589, %v981
        %v1198 = vmul.f32 %v590, %v991
        %v1199 = vmul.f32 %v591, %v991
        %v1200 = vmul.f32 %v592, %v1001
        %v1201 = vmul.f32 %v593, %v1001
        %v1202 = vmul.f32 %v594, %v1011
        %v1203 = vmul.f32 %v595, %v1011
        %v1204 = vmul.f32 %v596, %v1021
        %v1205 = vmul.f32 %v597, %v1021
        %v1206 = vmul.f32 %v598, %v1031
        %v1207 = vmul.f32 %v599, %v1031
        %v1208 = vmul.f32 %v600, %v1041
        %v1209 = vmul.f32 %v601, %v1041
        %v1210 = vmul.f32 %v602, %v1051
        %v1211 = vmul.f32 %v603, %v1051
        %v1212 = vmul.f32 %v604, %v1061
        %v1213 = vmul.f32 %v605, %v1061
        %v1214 = vmul.f32 %v606, %v1071
        %v1215 = vmul.f32 %v607, %v1071
        %v1216 = vmul.f32 %v608, %v1081
        %v1217 = vmul.f32 %v609, %v1081
        %v1218 = vmul.f32 %v610, %v1091
        %v1219 = vmul.f32 %v611, %v1091
        %v1220 = vmul.f32 %v612, %v1101
        %v1221 = vmul.f32 %v613, %v1101
        %v1222 = vmul.f32 %v614, %v1111
        %v1223 = vmul.f32 %v615, %v1111
        %v1224 = vmul.f32 %v616, %v1121
        %v1225 = vmul.f32 %v617, %v1121
        %v1226 = vmul.f32 %v618, %v1131
        %v1227 = vmul.f32 %v619, %v1131
        %v1228 = vmul.f32 %v620, %v1141
        %v1229 = vmul.f32 %v621, %v1141
        %v1230 = vmul.f32 %v622, %v1151
        %v1231 = vmul.f32 %v623, %v1151
        %v1232 = vmul.f32 %v624, %v1161
        %v1233 = vmul.f32 %v625, %v1161
        %v1234 = vmul.f32 %v626, %v1171
        %v1235 = vmul.f32 %v627, %v1171
        %v1237 = vperm.slane %v427, 0
        %v1238 = vperm.slane %v427, 1
        %v1241 = vmul.f32 %v1172, %v1237
        %v1242 = vmul.f32 %v1173, %v1238
        %v1243 = vmul.f32 %v1174, %v1237
        %v1244 = vmul.f32 %v1175, %v1238
        %v1245 = vmul.f32 %v1176, %v1237
        %v1246 = vmul.f32 %v1177, %v1238
        %v1247 = vmul.f32 %v1178, %v1237
        %v1248 = vmul.f32 %v1179, %v1238
        %v1249 = vmul.f32 %v1180, %v1237
        %v1250 = vmul.f32 %v1181, %v1238
        %v1251 = vmul.f32 %v1182, %v1237
        %v1252 = vmul.f32 %v1183, %v1238
        %v1253 = vmul.f32 %v1184, %v1237
        %v1254 = vmul.f32 %v1185, %v1238
        %v1255 = vmul.f32 %v1186, %v1237
        %v1256 = vmul.f32 %v1187, %v1238
        %v1257 = vmul.f32 %v1188, %v1237
        %v1258 = vmul.f32 %v1189, %v1238
        %v1259 = vmul.f32 %v1190, %v1237
        %v1260 = vmul.f32 %v1191, %v1238
        %v1261 = vmul.f32 %v1192, %v1237
        %v1262 = vmul.f32 %v1193, %v1238
        %v1263 = vmul.f32 %v1194, %v1237
        %v1264 = vmul.f32 %v1195, %v1238
        %v1265 = vmul.f32 %v1196, %v1237
        %v1266 = vmul.f32 %v1197, %v1238
        %v1267 = vmul.f32 %v1198, %v1237
        %v1268 = vmul.f32 %v1199, %v1238
        %v1269 = vmul.f32 %v1200, %v1237
        %v1270 = vmul.f32 %v1201, %v1238
        %v1271 = vmul.f32 %v1202, %v1237
        %v1272 = vmul.f32 %v1203, %v1238
        %v1273 = vmul.f32 %v1204, %v1237
        %v1274 = vmul.f32 %v1205, %v1238
        %v1275 = vmul.f32 %v1206, %v1237
        %v1276 = vmul.f32 %v1207, %v1238
        %v1277 = vmul.f32 %v1208, %v1237
        %v1278 = vmul.f32 %v1209, %v1238
        %v1279 = vmul.f32 %v1210, %v1237
        %v1280 = vmul.f32 %v1211, %v1238
        %v1281 = vmul.f32 %v1212, %v1237
        %v1282 = vmul.f32 %v1213, %v1238
        %v1283 = vmul.f32 %v1214, %v1237
        %v1284 = vmul.f32 %v1215, %v1238
        %v1285 = vmul.f32 %v1216, %v1237
        %v1286 = vmul.f32 %v1217, %v1238
        %v1287 = vmul.f32 %v1218, %v1237
        %v1288 = vmul.f32 %v1219, %v1238
        %v1289 = vmul.f32 %v1220, %v1237
        %v1290 = vmul.f32 %v1221, %v1238
        %v1291 = vmul.f32 %v1222, %v1237
        %v1292 = vmul.f32 %v1223, %v1238
        %v1293 = vmul.f32 %v1224, %v1237
        %v1294 = vmul.f32 %v1225, %v1238
        %v1295 = vmul.f32 %v1226, %v1237
        %v1296 = vmul.f32 %v1227, %v1238
        %v1297 = vmul.f32 %v1228, %v1237
        %v1298 = vmul.f32 %v1229, %v1238
        %v1299 = vmul.f32 %v1230, %v1237
        %v1300 = vmul.f32 %v1231, %v1238
        %v1301 = vmul.f32 %v1232, %v1237
        %v1302 = vmul.f32 %v1233, %v1238
        %v1303 = vmul.f32 %v1234, %v1237
        %v1304 = vmul.f32 %v1235, %v1238
        %v1306 = vperm.slane %v428, 0
        %v1307 = vperm.slane %v428, 1
        %v1310 = vadd.f32 %v1241, %v1306
        %v1311 = vadd.f32 %v1242, %v1307
        %v1312 = vadd.f32 %v1243, %v1306
        %v1313 = vadd.f32 %v1244, %v1307
        %v1314 = vadd.f32 %v1245, %v1306
        %v1315 = vadd.f32 %v1246, %v1307
        %v1316 = vadd.f32 %v1247, %v1306
        %v1317 = vadd.f32 %v1248, %v1307
        %v1318 = vadd.f32 %v1249, %v1306
        %v1319 = vadd.f32 %v1250, %v1307
        %v1320 = vadd.f32 %v1251, %v1306
        %v1321 = vadd.f32 %v1252, %v1307
        %v1322 = vadd.f32 %v1253, %v1306
        %v1323 = vadd.f32 %v1254, %v1307
        %v1324 = vadd.f32 %v1255, %v1306
        %v1325 = vadd.f32 %v1256, %v1307
        %v1326 = vadd.f32 %v1257, %v1306
        %v1327 = vadd.f32 %v1258, %v1307
        %v1328 = vadd.f32 %v1259, %v1306
        %v1329 = vadd.f32 %v1260, %v1307
        %v1330 = vadd.f32 %v1261, %v1306
        %v1331 = vadd.f32 %v1262, %v1307
        %v1332 = vadd.f32 %v1263, %v1306
        %v1333 = vadd.f32 %v1264, %v1307
        %v1334 = vadd.f32 %v1265, %v1306
        %v1335 = vadd.f32 %v1266, %v1307
        %v1336 = vadd.f32 %v1267, %v1306
        %v1337 = vadd.f32 %v1268, %v1307
        %v1338 = vadd.f32 %v1269, %v1306
        %v1339 = vadd.f32 %v1270, %v1307
        %v1340 = vadd.f32 %v1271, %v1306
        %v1341 = vadd.f32 %v1272, %v1307
        %v1342 = vadd.f32 %v1273, %v1306
        %v1343 = vadd.f32 %v1274, %v1307
        %v1344 = vadd.f32 %v1275, %v1306
        %v1345 = vadd.f32 %v1276, %v1307
        %v1346 = vadd.f32 %v1277, %v1306
        %v1347 = vadd.f32 %v1278, %v1307
        %v1348 = vadd.f32 %v1279, %v1306
        %v1349 = vadd.f32 %v1280, %v1307
        %v1350 = vadd.f32 %v1281, %v1306
        %v1351 = vadd.f32 %v1282, %v1307
        %v1352 = vadd.f32 %v1283, %v1306
        %v1353 = vadd.f32 %v1284, %v1307
        %v1354 = vadd.f32 %v1285, %v1306
        %v1355 = vadd.f32 %v1286, %v1307
        %v1356 = vadd.f32 %v1287, %v1306
        %v1357 = vadd.f32 %v1288, %v1307
        %v1358 = vadd.f32 %v1289, %v1306
        %v1359 = vadd.f32 %v1290, %v1307
        %v1360 = vadd.f32 %v1291, %v1306
        %v1361 = vadd.f32 %v1292, %v1307
        %v1362 = vadd.f32 %v1293, %v1306
        %v1363 = vadd.f32 %v1294, %v1307
        %v1364 = vadd.f32 %v1295, %v1306
        %v1365 = vadd.f32 %v1296, %v1307
        %v1366 = vadd.f32 %v1297, %v1306
        %v1367 = vadd.f32 %v1298, %v1307
        %v1368 = vadd.f32 %v1299, %v1306
        %v1369 = vadd.f32 %v1300, %v1307
        %v1370 = vadd.f32 %v1301, %v1306
        %v1371 = vadd.f32 %v1302, %v1307
        %v1372 = vadd.f32 %v1303, %v1306
        %v1373 = vadd.f32 %v1304, %v1307
        %v1374 = vpack.c.bf16 %v1312, %v1310
        %v1375 = vpack.c.bf16 %v1313, %v1311
        %v1376 = vpack.c.bf16 %v1316, %v1314
        %v1377 = vpack.c.bf16 %v1317, %v1315
        %v1378 = vpack.c.bf16 %v1320, %v1318
        %v1379 = vpack.c.bf16 %v1321, %v1319
        %v1380 = vpack.c.bf16 %v1324, %v1322
        %v1381 = vpack.c.bf16 %v1325, %v1323
        %v1382 = vpack.c.bf16 %v1328, %v1326
        %v1383 = vpack.c.bf16 %v1329, %v1327
        %v1384 = vpack.c.bf16 %v1332, %v1330
        %v1385 = vpack.c.bf16 %v1333, %v1331
        %v1386 = vpack.c.bf16 %v1336, %v1334
        %v1387 = vpack.c.bf16 %v1337, %v1335
        %v1388 = vpack.c.bf16 %v1340, %v1338
        %v1389 = vpack.c.bf16 %v1341, %v1339
        %v1390 = vpack.c.bf16 %v1344, %v1342
        %v1391 = vpack.c.bf16 %v1345, %v1343
        %v1392 = vpack.c.bf16 %v1348, %v1346
        %v1393 = vpack.c.bf16 %v1349, %v1347
        %v1394 = vpack.c.bf16 %v1352, %v1350
        %v1395 = vpack.c.bf16 %v1353, %v1351
        %v1396 = vpack.c.bf16 %v1356, %v1354
        %v1397 = vpack.c.bf16 %v1357, %v1355
        %v1398 = vpack.c.bf16 %v1360, %v1358
        %v1399 = vpack.c.bf16 %v1361, %v1359
        %v1400 = vpack.c.bf16 %v1364, %v1362
        %v1401 = vpack.c.bf16 %v1365, %v1363
        %v1402 = vpack.c.bf16 %v1368, %v1366
        %v1403 = vpack.c.bf16 %v1369, %v1367
        %v1404 = vpack.c.bf16 %v1372, %v1370
        %v1405 = vpack.c.bf16 %v1373, %v1371
        %v1406 = vld [vmem:[#allocation8] sm:$0xff]
        %v1407 = vld [vmem:[#allocation8 + $0x8] sm:$0xff]
        %v1408 = vld [vmem:[#allocation8 + $0x10] sm:$0xff]
        %v1409 = vld [vmem:[#allocation8 + $0x18] sm:$0xff]
        %v1410 = vld [vmem:[#allocation8 + $0x20] sm:$0xff]
        %v1411 = vld [vmem:[#allocation8 + $0x28] sm:$0xff]
        %v1412 = vld [vmem:[#allocation8 + $0x30] sm:$0xff]
        %v1413 = vld [vmem:[#allocation8 + $0x38] sm:$0xff]
        %v1414 = vld [vmem:[#allocation8 + $0x40] sm:$0xff]
        %v1415 = vld [vmem:[#allocation8 + $0x48] sm:$0xff]
        %v1416 = vld [vmem:[#allocation8 + $0x50] sm:$0xff]
        %v1417 = vld [vmem:[#allocation8 + $0x58] sm:$0xff]
        %v1418 = vld [vmem:[#allocation8 + $0x60] sm:$0xff]
        %v1419 = vld [vmem:[#allocation8 + $0x68] sm:$0xff]
        %v1420 = vld [vmem:[#allocation8 + $0x70] sm:$0xff]
        %v1421 = vld [vmem:[#allocation8 + $0x78] sm:$0xff]
        %v1422 = vld [vmem:[#allocation8 + $0x80] sm:$0xff]
        %v1423 = vld [vmem:[#allocation8 + $0x88] sm:$0xff]
        %v1424 = vld [vmem:[#allocation8 + $0x90] sm:$0xff]
        %v1425 = vld [vmem:[#allocation8 + $0x98] sm:$0xff]
        %v1426 = vld [vmem:[#allocation8 + $0xa0] sm:$0xff]
        %v1427 = vld [vmem:[#allocation8 + $0xa8] sm:$0xff]
        %v1428 = vld [vmem:[#allocation8 + $0xb0] sm:$0xff]
        %v1429 = vld [vmem:[#allocation8 + $0xb8] sm:$0xff]
        %v1430 = vld [vmem:[#allocation8 + $0xc0] sm:$0xff]
        %v1431 = vld [vmem:[#allocation8 + $0xc8] sm:$0xff]
        %v1432 = vld [vmem:[#allocation8 + $0xd0] sm:$0xff]
        %v1433 = vld [vmem:[#allocation8 + $0xd8] sm:$0xff]
        %v1434 = vld [vmem:[#allocation8 + $0xe0] sm:$0xff]
        %v1435 = vld [vmem:[#allocation8 + $0xe8] sm:$0xff]
        %v1436 = vld [vmem:[#allocation8 + $0xf0] sm:$0xff]
        %v1437 = vld [vmem:[#allocation8 + $0xf8] sm:$0xff]
        %v1438 = vld [vmem:[#allocation8 + $0x100] sm:$0xff]
        %v1439 = vld [vmem:[#allocation8 + $0x108] sm:$0xff]
        %v1440 = vld [vmem:[#allocation8 + $0x110] sm:$0xff]
        %v1441 = vld [vmem:[#allocation8 + $0x118] sm:$0xff]
        %v1442 = vld [vmem:[#allocation8 + $0x120] sm:$0xff]
        %v1443 = vld [vmem:[#allocation8 + $0x128] sm:$0xff]
        %v1444 = vld [vmem:[#allocation8 + $0x130] sm:$0xff]
        %v1445 = vld [vmem:[#allocation8 + $0x138] sm:$0xff]
        %v1446 = vld [vmem:[#allocation8 + $0x140] sm:$0xff]
        %v1447 = vld [vmem:[#allocation8 + $0x148] sm:$0xff]
        %v1448 = vld [vmem:[#allocation8 + $0x150] sm:$0xff]
        %v1449 = vld [vmem:[#allocation8 + $0x158] sm:$0xff]
        %v1450 = vld [vmem:[#allocation8 + $0x160] sm:$0xff]
        %v1451 = vld [vmem:[#allocation8 + $0x168] sm:$0xff]
        %v1452 = vld [vmem:[#allocation8 + $0x170] sm:$0xff]
        %v1453 = vld [vmem:[#allocation8 + $0x178] sm:$0xff]
        %v1454 = vld [vmem:[#allocation8 + $0x180] sm:$0xff]
        %v1455 = vld [vmem:[#allocation8 + $0x188] sm:$0xff]
        %v1456 = vld [vmem:[#allocation8 + $0x190] sm:$0xff]
        %v1457 = vld [vmem:[#allocation8 + $0x198] sm:$0xff]
        %v1458 = vld [vmem:[#allocation8 + $0x1a0] sm:$0xff]
        %v1459 = vld [vmem:[#allocation8 + $0x1a8] sm:$0xff]
        %v1460 = vld [vmem:[#allocation8 + $0x1b0] sm:$0xff]
        %v1461 = vld [vmem:[#allocation8 + $0x1b8] sm:$0xff]
        %v1462 = vld [vmem:[#allocation8 + $0x1c0] sm:$0xff]
        %v1463 = vld [vmem:[#allocation8 + $0x1c8] sm:$0xff]
        %v1464 = vld [vmem:[#allocation8 + $0x1d0] sm:$0xff]
        %v1465 = vld [vmem:[#allocation8 + $0x1d8] sm:$0xff]
        %v1466 = vld [vmem:[#allocation8 + $0x1e0] sm:$0xff]
        %v1467 = vld [vmem:[#allocation8 + $0x1e8] sm:$0xff]
        %v1468 = vld [vmem:[#allocation8 + $0x1f0] sm:$0xff]
        %v1469 = vld [vmem:[#allocation8 + $0x1f8] sm:$0xff]
        %v1470 = vld [vmem:[#allocation8 + $0x200] sm:$0xff]
        %v1471 = vld [vmem:[#allocation8 + $0x208] sm:$0xff]
        %v1472 = vld [vmem:[#allocation8 + $0x210] sm:$0xff]
        %v1473 = vld [vmem:[#allocation8 + $0x218] sm:$0xff]
        %v1474 = vld [vmem:[#allocation8 + $0x220] sm:$0xff]
        %v1475 = vld [vmem:[#allocation8 + $0x228] sm:$0xff]
        %v1476 = vld [vmem:[#allocation8 + $0x230] sm:$0xff]
        %v1477 = vld [vmem:[#allocation8 + $0x238] sm:$0xff]
        %v1478 = vld [vmem:[#allocation8 + $0x240] sm:$0xff]
        %v1479 = vld [vmem:[#allocation8 + $0x248] sm:$0xff]
        %v1480 = vld [vmem:[#allocation8 + $0x250] sm:$0xff]
        %v1481 = vld [vmem:[#allocation8 + $0x258] sm:$0xff]
        %v1482 = vld [vmem:[#allocation8 + $0x260] sm:$0xff]
        %v1483 = vld [vmem:[#allocation8 + $0x268] sm:$0xff]
        %v1484 = vld [vmem:[#allocation8 + $0x270] sm:$0xff]
        %v1485 = vld [vmem:[#allocation8 + $0x278] sm:$0xff]
        %v1486 = vld [vmem:[#allocation8 + $0x280] sm:$0xff]
        %v1487 = vld [vmem:[#allocation8 + $0x288] sm:$0xff]
        %v1488 = vld [vmem:[#allocation8 + $0x290] sm:$0xff]
        %v1489 = vld [vmem:[#allocation8 + $0x298] sm:$0xff]
        %v1490 = vld [vmem:[#allocation8 + $0x2a0] sm:$0xff]
        %v1491 = vld [vmem:[#allocation8 + $0x2a8] sm:$0xff]
        %v1492 = vld [vmem:[#allocation8 + $0x2b0] sm:$0xff]
        %v1493 = vld [vmem:[#allocation8 + $0x2b8] sm:$0xff]
        %v1494 = vld [vmem:[#allocation8 + $0x2c0] sm:$0xff]
        %v1495 = vld [vmem:[#allocation8 + $0x2c8] sm:$0xff]
        %v1496 = vld [vmem:[#allocation8 + $0x2d0] sm:$0xff]
        %v1497 = vld [vmem:[#allocation8 + $0x2d8] sm:$0xff]
        %v1498 = vld [vmem:[#allocation8 + $0x2e0] sm:$0xff]
        %v1499 = vld [vmem:[#allocation8 + $0x2e8] sm:$0xff]
        %v1500 = vld [vmem:[#allocation8 + $0x2f0] sm:$0xff]
        %v1501 = vld [vmem:[#allocation8 + $0x2f8] sm:$0xff]
        %v1598 = vunpack.c.l.b16 %v1406
        %v1599 = vunpack.c.h.b16 %v1406
        %v1600 = vunpack.c.l.b16 %v1407
        %v1601 = vunpack.c.h.b16 %v1407
        %v1602 = vunpack.c.l.b16 %v1408
        %v1603 = vunpack.c.h.b16 %v1408
        %v1604 = vunpack.c.l.b16 %v1409
        %v1605 = vunpack.c.h.b16 %v1409
        %v1606 = vunpack.c.l.b16 %v1410
        %v1607 = vunpack.c.h.b16 %v1410
        %v1608 = vunpack.c.l.b16 %v1411
        %v1609 = vunpack.c.h.b16 %v1411
        %v1610 = vunpack.c.l.b16 %v1412
        %v1611 = vunpack.c.h.b16 %v1412
        %v1612 = vunpack.c.l.b16 %v1413
        %v1613 = vunpack.c.h.b16 %v1413
        %v1614 = vunpack.c.l.b16 %v1414
        %v1615 = vunpack.c.h.b16 %v1414
        %v1616 = vunpack.c.l.b16 %v1415
        %v1617 = vunpack.c.h.b16 %v1415
        %v1618 = vunpack.c.l.b16 %v1416
        %v1619 = vunpack.c.h.b16 %v1416
        %v1620 = vunpack.c.l.b16 %v1417
        %v1621 = vunpack.c.h.b16 %v1417
        %v1622 = vunpack.c.l.b16 %v1418
        %v1623 = vunpack.c.h.b16 %v1418
        %v1624 = vunpack.c.l.b16 %v1419
        %v1625 = vunpack.c.h.b16 %v1419
        %v1626 = vunpack.c.l.b16 %v1420
        %v1627 = vunpack.c.h.b16 %v1420
        %v1628 = vunpack.c.l.b16 %v1421
        %v1629 = vunpack.c.h.b16 %v1421
        %v1630 = vunpack.c.l.b16 %v1422
        %v1631 = vunpack.c.h.b16 %v1422
        %v1632 = vunpack.c.l.b16 %v1423
        %v1633 = vunpack.c.h.b16 %v1423
        %v1634 = vunpack.c.l.b16 %v1424
        %v1635 = vunpack.c.h.b16 %v1424
        %v1636 = vunpack.c.l.b16 %v1425
        %v1637 = vunpack.c.h.b16 %v1425
        %v1638 = vunpack.c.l.b16 %v1426
        %v1639 = vunpack.c.h.b16 %v1426
        %v1640 = vunpack.c.l.b16 %v1427
        %v1641 = vunpack.c.h.b16 %v1427
        %v1642 = vunpack.c.l.b16 %v1428
        %v1643 = vunpack.c.h.b16 %v1428
        %v1644 = vunpack.c.l.b16 %v1429
        %v1645 = vunpack.c.h.b16 %v1429
        %v1646 = vunpack.c.l.b16 %v1430
        %v1647 = vunpack.c.h.b16 %v1430
        %v1648 = vunpack.c.l.b16 %v1431
        %v1649 = vunpack.c.h.b16 %v1431
        %v1650 = vunpack.c.l.b16 %v1432
        %v1651 = vunpack.c.h.b16 %v1432
        %v1652 = vunpack.c.l.b16 %v1433
        %v1653 = vunpack.c.h.b16 %v1433
        %v1654 = vunpack.c.l.b16 %v1434
        %v1655 = vunpack.c.h.b16 %v1434
        %v1656 = vunpack.c.l.b16 %v1435
        %v1657 = vunpack.c.h.b16 %v1435
        %v1658 = vunpack.c.l.b16 %v1436
        %v1659 = vunpack.c.h.b16 %v1436
        %v1660 = vunpack.c.l.b16 %v1437
        %v1661 = vunpack.c.h.b16 %v1437
        %v1662 = vunpack.c.l.b16 %v1438
        %v1663 = vunpack.c.h.b16 %v1438
        %v1664 = vunpack.c.l.b16 %v1439
        %v1665 = vunpack.c.h.b16 %v1439
        %v1666 = vunpack.c.l.b16 %v1440
        %v1667 = vunpack.c.h.b16 %v1440
        %v1668 = vunpack.c.l.b16 %v1441
        %v1669 = vunpack.c.h.b16 %v1441
        %v1670 = vunpack.c.l.b16 %v1442
        %v1671 = vunpack.c.h.b16 %v1442
        %v1672 = vunpack.c.l.b16 %v1443
        %v1673 = vunpack.c.h.b16 %v1443
        %v1674 = vunpack.c.l.b16 %v1444
        %v1675 = vunpack.c.h.b16 %v1444
        %v1676 = vunpack.c.l.b16 %v1445
        %v1677 = vunpack.c.h.b16 %v1445
        %v1678 = vunpack.c.l.b16 %v1446
        %v1679 = vunpack.c.h.b16 %v1446
        %v1680 = vunpack.c.l.b16 %v1447
        %v1681 = vunpack.c.h.b16 %v1447
        %v1682 = vunpack.c.l.b16 %v1448
        %v1683 = vunpack.c.h.b16 %v1448
        %v1684 = vunpack.c.l.b16 %v1449
        %v1685 = vunpack.c.h.b16 %v1449
        %v1686 = vunpack.c.l.b16 %v1450
        %v1687 = vunpack.c.h.b16 %v1450
        %v1688 = vunpack.c.l.b16 %v1451
        %v1689 = vunpack.c.h.b16 %v1451
        %v1690 = vunpack.c.l.b16 %v1452
        %v1691 = vunpack.c.h.b16 %v1452
        %v1692 = vunpack.c.l.b16 %v1453
        %v1693 = vunpack.c.h.b16 %v1453
        %v1694 = vunpack.c.l.b16 %v1454
        %v1695 = vunpack.c.h.b16 %v1454
        %v1696 = vunpack.c.l.b16 %v1455
        %v1697 = vunpack.c.h.b16 %v1455
        %v1698 = vunpack.c.l.b16 %v1456
        %v1699 = vunpack.c.h.b16 %v1456
        %v1700 = vunpack.c.l.b16 %v1457
        %v1701 = vunpack.c.h.b16 %v1457
        %v1702 = vunpack.c.l.b16 %v1458
        %v1703 = vunpack.c.h.b16 %v1458
        %v1704 = vunpack.c.l.b16 %v1459
        %v1705 = vunpack.c.h.b16 %v1459
        %v1706 = vunpack.c.l.b16 %v1460
        %v1707 = vunpack.c.h.b16 %v1460
        %v1708 = vunpack.c.l.b16 %v1461
        %v1709 = vunpack.c.h.b16 %v1461
        %v1710 = vunpack.c.l.b16 %v1462
        %v1711 = vunpack.c.h.b16 %v1462
        %v1712 = vunpack.c.l.b16 %v1463
        %v1713 = vunpack.c.h.b16 %v1463
        %v1714 = vunpack.c.l.b16 %v1464
        %v1715 = vunpack.c.h.b16 %v1464
        %v1716 = vunpack.c.l.b16 %v1465
        %v1717 = vunpack.c.h.b16 %v1465
        %v1718 = vunpack.c.l.b16 %v1466
        %v1719 = vunpack.c.h.b16 %v1466
        %v1720 = vunpack.c.l.b16 %v1467
        %v1721 = vunpack.c.h.b16 %v1467
        %v1722 = vunpack.c.l.b16 %v1468
        %v1723 = vunpack.c.h.b16 %v1468
        %v1724 = vunpack.c.l.b16 %v1469
        %v1725 = vunpack.c.h.b16 %v1469
        %v1726 = vunpack.c.l.b16 %v1470
        %v1727 = vunpack.c.h.b16 %v1470
        %v1728 = vunpack.c.l.b16 %v1471
        %v1729 = vunpack.c.h.b16 %v1471
        %v1730 = vunpack.c.l.b16 %v1472
        %v1731 = vunpack.c.h.b16 %v1472
        %v1732 = vunpack.c.l.b16 %v1473
        %v1733 = vunpack.c.h.b16 %v1473
        %v1734 = vunpack.c.l.b16 %v1474
        %v1735 = vunpack.c.h.b16 %v1474
        %v1736 = vunpack.c.l.b16 %v1475
        %v1737 = vunpack.c.h.b16 %v1475
        %v1738 = vunpack.c.l.b16 %v1476
        %v1739 = vunpack.c.h.b16 %v1476
        %v1740 = vunpack.c.l.b16 %v1477
        %v1741 = vunpack.c.h.b16 %v1477
        %v1742 = vunpack.c.l.b16 %v1478
        %v1743 = vunpack.c.h.b16 %v1478
        %v1744 = vunpack.c.l.b16 %v1479
        %v1745 = vunpack.c.h.b16 %v1479
        %v1746 = vunpack.c.l.b16 %v1480
        %v1747 = vunpack.c.h.b16 %v1480
        %v1748 = vunpack.c.l.b16 %v1481
        %v1749 = vunpack.c.h.b16 %v1481
        %v1750 = vunpack.c.l.b16 %v1482
        %v1751 = vunpack.c.h.b16 %v1482
        %v1752 = vunpack.c.l.b16 %v1483
        %v1753 = vunpack.c.h.b16 %v1483
        %v1754 = vunpack.c.l.b16 %v1484
        %v1755 = vunpack.c.h.b16 %v1484
        %v1756 = vunpack.c.l.b16 %v1485
        %v1757 = vunpack.c.h.b16 %v1485
        %v1758 = vunpack.c.l.b16 %v1486
        %v1759 = vunpack.c.h.b16 %v1486
        %v1760 = vunpack.c.l.b16 %v1487
        %v1761 = vunpack.c.h.b16 %v1487
        %v1762 = vunpack.c.l.b16 %v1488
        %v1763 = vunpack.c.h.b16 %v1488
        %v1764 = vunpack.c.l.b16 %v1489
        %v1765 = vunpack.c.h.b16 %v1489
        %v1766 = vunpack.c.l.b16 %v1490
        %v1767 = vunpack.c.h.b16 %v1490
        %v1768 = vunpack.c.l.b16 %v1491
        %v1769 = vunpack.c.h.b16 %v1491
        %v1770 = vunpack.c.l.b16 %v1492
        %v1771 = vunpack.c.h.b16 %v1492
        %v1772 = vunpack.c.l.b16 %v1493
        %v1773 = vunpack.c.h.b16 %v1493
        %v1774 = vunpack.c.l.b16 %v1494
        %v1775 = vunpack.c.h.b16 %v1494
        %v1776 = vunpack.c.l.b16 %v1495
        %v1777 = vunpack.c.h.b16 %v1495
        %v1778 = vunpack.c.l.b16 %v1496
        %v1779 = vunpack.c.h.b16 %v1496
        %v1780 = vunpack.c.l.b16 %v1497
        %v1781 = vunpack.c.h.b16 %v1497
        %v1782 = vunpack.c.l.b16 %v1498
        %v1783 = vunpack.c.h.b16 %v1498
        %v1784 = vunpack.c.l.b16 %v1499
        %v1785 = vunpack.c.h.b16 %v1499
        %v1786 = vunpack.c.l.b16 %v1500
        %v1787 = vunpack.c.h.b16 %v1500
        %v1788 = vunpack.c.l.b16 %v1501
        %v1789 = vunpack.c.h.b16 %v1501
        %v1790 = vpack.c.b16 %v1604, %v1598
        %v1791 = vpack.c.b16 %v1605, %v1599
        %v1792 = vpack.c.b16 %v1606, %v1600
        %v1793 = vpack.c.b16 %v1607, %v1601
        %v1794 = vpack.c.b16 %v1608, %v1602
        %v1795 = vpack.c.b16 %v1609, %v1603
        %v1796 = vpack.c.b16 %v1616, %v1610
        %v1797 = vpack.c.b16 %v1617, %v1611
        %v1798 = vpack.c.b16 %v1618, %v1612
        %v1799 = vpack.c.b16 %v1619, %v1613
        %v1800 = vpack.c.b16 %v1620, %v1614
        %v1801 = vpack.c.b16 %v1621, %v1615
        %v1802 = vpack.c.b16 %v1628, %v1622
        %v1803 = vpack.c.b16 %v1629, %v1623
        %v1804 = vpack.c.b16 %v1630, %v1624
        %v1805 = vpack.c.b16 %v1631, %v1625
        %v1806 = vpack.c.b16 %v1632, %v1626
        %v1807 = vpack.c.b16 %v1633, %v1627
        %v1808 = vpack.c.b16 %v1640, %v1634
        %v1809 = vpack.c.b16 %v1641, %v1635
        %v1810 = vpack.c.b16 %v1642, %v1636
        %v1811 = vpack.c.b16 %v1643, %v1637
        %v1812 = vpack.c.b16 %v1644, %v1638
        %v1813 = vpack.c.b16 %v1645, %v1639
        %v1814 = vpack.c.b16 %v1652, %v1646
        %v1815 = vpack.c.b16 %v1653, %v1647
        %v1816 = vpack.c.b16 %v1654, %v1648
        %v1817 = vpack.c.b16 %v1655, %v1649
        %v1818 = vpack.c.b16 %v1656, %v1650
        %v1819 = vpack.c.b16 %v1657, %v1651
        %v1820 = vpack.c.b16 %v1664, %v1658
        %v1821 = vpack.c.b16 %v1665, %v1659
        %v1822 = vpack.c.b16 %v1666, %v1660
        %v1823 = vpack.c.b16 %v1667, %v1661
        %v1824 = vpack.c.b16 %v1668, %v1662
        %v1825 = vpack.c.b16 %v1669, %v1663
        %v1826 = vpack.c.b16 %v1676, %v1670
        %v1827 = vpack.c.b16 %v1677, %v1671
        %v1828 = vpack.c.b16 %v1678, %v1672
        %v1829 = vpack.c.b16 %v1679, %v1673
        %v1830 = vpack.c.b16 %v1680, %v1674
        %v1831 = vpack.c.b16 %v1681, %v1675
        %v1832 = vpack.c.b16 %v1688, %v1682
        %v1833 = vpack.c.b16 %v1689, %v1683
        %v1834 = vpack.c.b16 %v1690, %v1684
        %v1835 = vpack.c.b16 %v1691, %v1685
        %v1836 = vpack.c.b16 %v1692, %v1686
        %v1837 = vpack.c.b16 %v1693, %v1687
        %v1838 = vpack.c.b16 %v1700, %v1694
        %v1839 = vpack.c.b16 %v1701, %v1695
        %v1840 = vpack.c.b16 %v1702, %v1696
        %v1841 = vpack.c.b16 %v1703, %v1697
        %v1842 = vpack.c.b16 %v1704, %v1698
        %v1843 = vpack.c.b16 %v1705, %v1699
        %v1844 = vpack.c.b16 %v1712, %v1706
        %v1845 = vpack.c.b16 %v1713, %v1707
        %v1846 = vpack.c.b16 %v1714, %v1708
        %v1847 = vpack.c.b16 %v1715, %v1709
        %v1848 = vpack.c.b16 %v1716, %v1710
        %v1849 = vpack.c.b16 %v1717, %v1711
        %v1850 = vpack.c.b16 %v1724, %v1718
        %v1851 = vpack.c.b16 %v1725, %v1719
        %v1852 = vpack.c.b16 %v1726, %v1720
        %v1853 = vpack.c.b16 %v1727, %v1721
        %v1854 = vpack.c.b16 %v1728, %v1722
        %v1855 = vpack.c.b16 %v1729, %v1723
        %v1856 = vpack.c.b16 %v1736, %v1730
        %v1857 = vpack.c.b16 %v1737, %v1731
        %v1858 = vpack.c.b16 %v1738, %v1732
        %v1859 = vpack.c.b16 %v1739, %v1733
        %v1860 = vpack.c.b16 %v1740, %v1734
        %v1861 = vpack.c.b16 %v1741, %v1735
        %v1862 = vpack.c.b16 %v1748, %v1742
        %v1863 = vpack.c.b16 %v1749, %v1743
        %v1864 = vpack.c.b16 %v1750, %v1744
        %v1865 = vpack.c.b16 %v1751, %v1745
        %v1866 = vpack.c.b16 %v1752, %v1746
        %v1867 = vpack.c.b16 %v1753, %v1747
        %v1868 = vpack.c.b16 %v1760, %v1754
        %v1869 = vpack.c.b16 %v1761, %v1755
        %v1870 = vpack.c.b16 %v1762, %v1756
        %v1871 = vpack.c.b16 %v1763, %v1757
        %v1872 = vpack.c.b16 %v1764, %v1758
        %v1873 = vpack.c.b16 %v1765, %v1759
        %v1874 = vpack.c.b16 %v1772, %v1766
        %v1875 = vpack.c.b16 %v1773, %v1767
        %v1876 = vpack.c.b16 %v1774, %v1768
        %v1877 = vpack.c.b16 %v1775, %v1769
        %v1878 = vpack.c.b16 %v1776, %v1770
        %v1879 = vpack.c.b16 %v1777, %v1771
        %v1880 = vpack.c.b16 %v1784, %v1778
        %v1881 = vpack.c.b16 %v1785, %v1779
        %v1882 = vpack.c.b16 %v1786, %v1780
        %v1883 = vpack.c.b16 %v1787, %v1781
        %v1884 = vpack.c.b16 %v1788, %v1782
        %v1885 = vpack.c.b16 %v1789, %v1783
        %1982 = vmatpush.bf16.msra.mxu0 %v1832
        %1983 = vmatpush.bf16.msra.mxu0 %v1826
        %1984 = vmatpush.bf16.msra.mxu0 %v1820
        %1985 = vmatpush.bf16.msra.mxu0 %v1814
        %1986 = vmatpush.bf16.msra.mxu0 %v1808
        %1987 = vmatpush.bf16.msra.mxu0 %v1802
        %1988 = vmatpush.bf16.msra.mxu0 %v1796
        %1989 = vmatpush.bf16.msra.mxu0 %v1790
        %1990 = vmatmul.bf16.gmra.mxu0 %v1374
        %v1991 = vpop.f32.mrf.mxu0
        %v1992 = vadd.f32 0.0, %v1991
        %v1993 = vpop.f32.mrf.mxu0
        %v1994 = vadd.f32 0.0, %v1993
        %1995 = vmatmul.bf16.gmra.mxu0 %v1376
        %v1996 = vpop.f32.mrf.mxu0
        %v1997 = vadd.f32 0.0, %v1996
        %v1998 = vpop.f32.mrf.mxu0
        %v1999 = vadd.f32 0.0, %v1998
        %2000 = vmatmul.bf16.gmra.mxu0 %v1378
        %v2001 = vpop.f32.mrf.mxu0
        %v2002 = vadd.f32 0.0, %v2001
        %v2003 = vpop.f32.mrf.mxu0
        %v2004 = vadd.f32 0.0, %v2003
        %2005 = vmatmul.bf16.gmra.mxu0 %v1380
        %v2006 = vpop.f32.mrf.mxu0
        %v2007 = vadd.f32 0.0, %v2006
        %v2008 = vpop.f32.mrf.mxu0
        %v2009 = vadd.f32 0.0, %v2008
        %2010 = vmatmul.bf16.gmra.mxu0 %v1382
        %v2011 = vpop.f32.mrf.mxu0
        %v2012 = vadd.f32 0.0, %v2011
        %v2013 = vpop.f32.mrf.mxu0
        %v2014 = vadd.f32 0.0, %v2013
        %2015 = vmatmul.bf16.gmra.mxu0 %v1384
        %v2016 = vpop.f32.mrf.mxu0
        %v2017 = vadd.f32 0.0, %v2016
        %v2018 = vpop.f32.mrf.mxu0
        %v2019 = vadd.f32 0.0, %v2018
        %2020 = vmatmul.bf16.gmra.mxu0 %v1386
        %v2021 = vpop.f32.mrf.mxu0
        %v2022 = vadd.f32 0.0, %v2021
        %v2023 = vpop.f32.mrf.mxu0
        %v2024 = vadd.f32 0.0, %v2023
        %2025 = vmatmul.bf16.gmra.mxu0 %v1388
        %v2026 = vpop.f32.mrf.mxu0
        %v2027 = vadd.f32 0.0, %v2026
        %v2028 = vpop.f32.mrf.mxu0
        %v2029 = vadd.f32 0.0, %v2028
        %2030 = vmatmul.bf16.gmra.mxu0 %v1390
        %v2031 = vpop.f32.mrf.mxu0
        %v2032 = vadd.f32 0.0, %v2031
        %v2033 = vpop.f32.mrf.mxu0
        %v2034 = vadd.f32 0.0, %v2033
        %2035 = vmatmul.bf16.gmra.mxu0 %v1392
        %v2036 = vpop.f32.mrf.mxu0
        %v2037 = vadd.f32 0.0, %v2036
        %v2038 = vpop.f32.mrf.mxu0
        %v2039 = vadd.f32 0.0, %v2038
        %2040 = vmatmul.bf16.gmra.mxu0 %v1394
        %v2041 = vpop.f32.mrf.mxu0
        %v2042 = vadd.f32 0.0, %v2041
        %v2043 = vpop.f32.mrf.mxu0
        %v2044 = vadd.f32 0.0, %v2043
        %2045 = vmatmul.bf16.gmra.mxu0 %v1396
        %v2046 = vpop.f32.mrf.mxu0
        %v2047 = vadd.f32 0.0, %v2046
        %v2048 = vpop.f32.mrf.mxu0
        %v2049 = vadd.f32 0.0, %v2048
        %2050 = vmatmul.bf16.gmra.mxu0 %v1398
        %v2051 = vpop.f32.mrf.mxu0
        %v2052 = vadd.f32 0.0, %v2051
        %v2053 = vpop.f32.mrf.mxu0
        %v2054 = vadd.f32 0.0, %v2053
        %2055 = vmatmul.bf16.gmra.mxu0 %v1400
        %v2056 = vpop.f32.mrf.mxu0
        %v2057 = vadd.f32 0.0, %v2056
        %v2058 = vpop.f32.mrf.mxu0
        %v2059 = vadd.f32 0.0, %v2058
        %2060 = vmatmul.bf16.gmra.mxu0 %v1402
        %v2061 = vpop.f32.mrf.mxu0
        %v2062 = vadd.f32 0.0, %v2061
        %v2063 = vpop.f32.mrf.mxu0
        %v2064 = vadd.f32 0.0, %v2063
        %2065 = vmatmul.bf16.gmra.mxu0 %v1404
        %v2066 = vpop.f32.mrf.mxu0
        %v2067 = vadd.f32 0.0, %v2066
        %v2068 = vpop.f32.mrf.mxu0
        %v2069 = vadd.f32 0.0, %v2068
        %2070 = vdwg.mxu0
        %2071 = vmatpush.bf16.msra.mxu0 %v1880
        %2072 = vmatpush.bf16.msra.mxu0 %v1874
        %2073 = vmatpush.bf16.msra.mxu0 %v1868
        %2074 = vmatpush.bf16.msra.mxu0 %v1862
        %2075 = vmatpush.bf16.msra.mxu0 %v1856
        %2076 = vmatpush.bf16.msra.mxu0 %v1850
        %2077 = vmatpush.bf16.msra.mxu0 %v1844
        %2078 = vmatpush.bf16.msra.mxu0 %v1838
        %2079 = vmatmul.bf16.gmra.mxu0 %v1375
        %v2080 = vpop.f32.mrf.mxu0
        %v2081 = vadd.f32 %v1992, %v2080
        %v2082 = vpop.f32.mrf.mxu0
        %v2083 = vadd.f32 %v1994, %v2082
        %2084 = vmatmul.bf16.gmra.mxu0 %v1377
        %v2085 = vpop.f32.mrf.mxu0
        %v2086 = vadd.f32 %v1997, %v2085
        %v2087 = vpop.f32.mrf.mxu0
        %v2088 = vadd.f32 %v1999, %v2087
        %2089 = vmatmul.bf16.gmra.mxu0 %v1379
        %v2090 = vpop.f32.mrf.mxu0
        %v2091 = vadd.f32 %v2002, %v2090
        %v2092 = vpop.f32.mrf.mxu0
        %v2093 = vadd.f32 %v2004, %v2092
        %2094 = vmatmul.bf16.gmra.mxu0 %v1381
        %v2095 = vpop.f32.mrf.mxu0
        %v2096 = vadd.f32 %v2007, %v2095
        %v2097 = vpop.f32.mrf.mxu0
        %v2098 = vadd.f32 %v2009, %v2097
        %2099 = vmatmul.bf16.gmra.mxu0 %v1383
        %v2100 = vpop.f32.mrf.mxu0
        %v2101 = vadd.f32 %v2012, %v2100
        %v2102 = vpop.f32.mrf.mxu0
        %v2103 = vadd.f32 %v2014, %v2102
        %2104 = vmatmul.bf16.gmra.mxu0 %v1385
        %v2105 = vpop.f32.mrf.mxu0
        %v2106 = vadd.f32 %v2017, %v2105
        %v2107 = vpop.f32.mrf.mxu0
        %v2108 = vadd.f32 %v2019, %v2107
        %2109 = vmatmul.bf16.gmra.mxu0 %v1387
        %v2110 = vpop.f32.mrf.mxu0
        %v2111 = vadd.f32 %v2022, %v2110
        %v2112 = vpop.f32.mrf.mxu0
        %v2113 = vadd.f32 %v2024, %v2112
        %2114 = vmatmul.bf16.gmra.mxu0 %v1389
        %v2115 = vpop.f32.mrf.mxu0
        %v2116 = vadd.f32 %v2027, %v2115
        %v2117 = vpop.f32.mrf.mxu0
        %v2118 = vadd.f32 %v2029, %v2117
        %2119 = vmatmul.bf16.gmra.mxu0 %v1391
        %v2120 = vpop.f32.mrf.mxu0
        %v2121 = vadd.f32 %v2032, %v2120
        %v2122 = vpop.f32.mrf.mxu0
        %v2123 = vadd.f32 %v2034, %v2122
        %2124 = vmatmul.bf16.gmra.mxu0 %v1393
        %v2125 = vpop.f32.mrf.mxu0
        %v2126 = vadd.f32 %v2037, %v2125
        %v2127 = vpop.f32.mrf.mxu0
        %v2128 = vadd.f32 %v2039, %v2127
        %2129 = vmatmul.bf16.gmra.mxu0 %v1395
        %v2130 = vpop.f32.mrf.mxu0
        %v2131 = vadd.f32 %v2042, %v2130
        %v2132 = vpop.f32.mrf.mxu0
        %v2133 = vadd.f32 %v2044, %v2132
        %2134 = vmatmul.bf16.gmra.mxu0 %v1397
        %v2135 = vpop.f32.mrf.mxu0
        %v2136 = vadd.f32 %v2047, %v2135
        %v2137 = vpop.f32.mrf.mxu0
        %v2138 = vadd.f32 %v2049, %v2137
        %2139 = vmatmul.bf16.gmra.mxu0 %v1399
        %v2140 = vpop.f32.mrf.mxu0
        %v2141 = vadd.f32 %v2052, %v2140
        %v2142 = vpop.f32.mrf.mxu0
        %v2143 = vadd.f32 %v2054, %v2142
        %2144 = vmatmul.bf16.gmra.mxu0 %v1401
        %v2145 = vpop.f32.mrf.mxu0
        %v2146 = vadd.f32 %v2057, %v2145
        %v2147 = vpop.f32.mrf.mxu0
        %v2148 = vadd.f32 %v2059, %v2147
        %2149 = vmatmul.bf16.gmra.mxu0 %v1403
        %v2150 = vpop.f32.mrf.mxu0
        %v2151 = vadd.f32 %v2062, %v2150
        %v2152 = vpop.f32.mrf.mxu0
        %v2153 = vadd.f32 %v2064, %v2152
        %2154 = vmatmul.bf16.gmra.mxu0 %v1405
        %v2155 = vpop.f32.mrf.mxu0
        %v2156 = vadd.f32 %v2067, %v2155
        %v2157 = vpop.f32.mrf.mxu0
        %v2158 = vadd.f32 %v2069, %v2157
        %2159 = vdwg.mxu0
        %2160 = vmatpush.bf16.msra.mxu0 %v1833
        %2161 = vmatpush.bf16.msra.mxu0 %v1827
        %2162 = vmatpush.bf16.msra.mxu0 %v1821
        %2163 = vmatpush.bf16.msra.mxu0 %v1815
        %2164 = vmatpush.bf16.msra.mxu0 %v1809
        %2165 = vmatpush.bf16.msra.mxu0 %v1803
        %2166 = vmatpush.bf16.msra.mxu0 %v1797
        %2167 = vmatpush.bf16.msra.mxu0 %v1791
        %2168 = vmatmul.bf16.gmra.mxu0 %v1374
        %v2169 = vpop.f32.mrf.mxu0
        %v2170 = vadd.f32 0.0, %v2169
        %v2171 = vpop.f32.mrf.mxu0
        %v2172 = vadd.f32 0.0, %v2171
        %2173 = vmatmul.bf16.gmra.mxu0 %v1376
        %v2174 = vpop.f32.mrf.mxu0
        %v2175 = vadd.f32 0.0, %v2174
        %v2176 = vpop.f32.mrf.mxu0
        %v2177 = vadd.f32 0.0, %v2176
        %2178 = vmatmul.bf16.gmra.mxu0 %v1378
        %v2179 = vpop.f32.mrf.mxu0
        %v2180 = vadd.f32 0.0, %v2179
        %v2181 = vpop.f32.mrf.mxu0
        %v2182 = vadd.f32 0.0, %v2181
        %2183 = vmatmul.bf16.gmra.mxu0 %v1380
        %v2184 = vpop.f32.mrf.mxu0
        %v2185 = vadd.f32 0.0, %v2184
        %v2186 = vpop.f32.mrf.mxu0
        %v2187 = vadd.f32 0.0, %v2186
        %2188 = vmatmul.bf16.gmra.mxu0 %v1382
        %v2189 = vpop.f32.mrf.mxu0
        %v2190 = vadd.f32 0.0, %v2189
        %v2191 = vpop.f32.mrf.mxu0
        %v2192 = vadd.f32 0.0, %v2191
        %2193 = vmatmul.bf16.gmra.mxu0 %v1384
        %v2194 = vpop.f32.mrf.mxu0
        %v2195 = vadd.f32 0.0, %v2194
        %v2196 = vpop.f32.mrf.mxu0
        %v2197 = vadd.f32 0.0, %v2196
        %2198 = vmatmul.bf16.gmra.mxu0 %v1386
        %v2199 = vpop.f32.mrf.mxu0
        %v2200 = vadd.f32 0.0, %v2199
        %v2201 = vpop.f32.mrf.mxu0
        %v2202 = vadd.f32 0.0, %v2201
        %2203 = vmatmul.bf16.gmra.mxu0 %v1388
        %v2204 = vpop.f32.mrf.mxu0
        %v2205 = vadd.f32 0.0, %v2204
        %v2206 = vpop.f32.mrf.mxu0
        %v2207 = vadd.f32 0.0, %v2206
        %2208 = vmatmul.bf16.gmra.mxu0 %v1390
        %v2209 = vpop.f32.mrf.mxu0
        %v2210 = vadd.f32 0.0, %v2209
        %v2211 = vpop.f32.mrf.mxu0
        %v2212 = vadd.f32 0.0, %v2211
        %2213 = vmatmul.bf16.gmra.mxu0 %v1392
        %v2214 = vpop.f32.mrf.mxu0
        %v2215 = vadd.f32 0.0, %v2214
        %v2216 = vpop.f32.mrf.mxu0
        %v2217 = vadd.f32 0.0, %v2216
        %2218 = vmatmul.bf16.gmra.mxu0 %v1394
        %v2219 = vpop.f32.mrf.mxu0
        %v2220 = vadd.f32 0.0, %v2219
        %v2221 = vpop.f32.mrf.mxu0
        %v2222 = vadd.f32 0.0, %v2221
        %2223 = vmatmul.bf16.gmra.mxu0 %v1396
        %v2224 = vpop.f32.mrf.mxu0
        %v2225 = vadd.f32 0.0, %v2224
        %v2226 = vpop.f32.mrf.mxu0
        %v2227 = vadd.f32 0.0, %v2226
        %2228 = vmatmul.bf16.gmra.mxu0 %v1398
        %v2229 = vpop.f32.mrf.mxu0
        %v2230 = vadd.f32 0.0, %v2229
        %v2231 = vpop.f32.mrf.mxu0
        %v2232 = vadd.f32 0.0, %v2231
        %2233 = vmatmul.bf16.gmra.mxu0 %v1400
        %v2234 = vpop.f32.mrf.mxu0
        %v2235 = vadd.f32 0.0, %v2234
        %v2236 = vpop.f32.mrf.mxu0
        %v2237 = vadd.f32 0.0, %v2236
        %2238 = vmatmul.bf16.gmra.mxu0 %v1402
        %v2239 = vpop.f32.mrf.mxu0
        %v2240 = vadd.f32 0.0, %v2239
        %v2241 = vpop.f32.mrf.mxu0
        %v2242 = vadd.f32 0.0, %v2241
        %2243 = vmatmul.bf16.gmra.mxu0 %v1404
        %v2244 = vpop.f32.mrf.mxu0
        %v2245 = vadd.f32 0.0, %v2244
        %v2246 = vpop.f32.mrf.mxu0
        %v2247 = vadd.f32 0.0, %v2246
        %2248 = vdwg.mxu0
        %2249 = vmatpush.bf16.msra.mxu0 %v1881
        %2250 = vmatpush.bf16.msra.mxu0 %v1875
        %2251 = vmatpush.bf16.msra.mxu0 %v1869
        %2252 = vmatpush.bf16.msra.mxu0 %v1863
        %2253 = vmatpush.bf16.msra.mxu0 %v1857
        %2254 = vmatpush.bf16.msra.mxu0 %v1851
        %2255 = vmatpush.bf16.msra.mxu0 %v1845
        %2256 = vmatpush.bf16.msra.mxu0 %v1839
        %2257 = vmatmul.bf16.gmra.mxu0 %v1375
        %v2258 = vpop.f32.mrf.mxu0
        %v2259 = vadd.f32 %v2170, %v2258
        %v2260 = vpop.f32.mrf.mxu0
        %v2261 = vadd.f32 %v2172, %v2260
        %2262 = vmatmul.bf16.gmra.mxu0 %v1377
        %v2263 = vpop.f32.mrf.mxu0
        %v2264 = vadd.f32 %v2175, %v2263
        %v2265 = vpop.f32.mrf.mxu0
        %v2266 = vadd.f32 %v2177, %v2265
        %2267 = vmatmul.bf16.gmra.mxu0 %v1379
        %v2268 = vpop.f32.mrf.mxu0
        %v2269 = vadd.f32 %v2180, %v2268
        %v2270 = vpop.f32.mrf.mxu0
        %v2271 = vadd.f32 %v2182, %v2270
        %2272 = vmatmul.bf16.gmra.mxu0 %v1381
        %v2273 = vpop.f32.mrf.mxu0
        %v2274 = vadd.f32 %v2185, %v2273
        %v2275 = vpop.f32.mrf.mxu0
        %v2276 = vadd.f32 %v2187, %v2275
        %2277 = vmatmul.bf16.gmra.mxu0 %v1383
        %v2278 = vpop.f32.mrf.mxu0
        %v2279 = vadd.f32 %v2190, %v2278
        %v2280 = vpop.f32.mrf.mxu0
        %v2281 = vadd.f32 %v2192, %v2280
        %2282 = vmatmul.bf16.gmra.mxu0 %v1385
        %v2283 = vpop.f32.mrf.mxu0
        %v2284 = vadd.f32 %v2195, %v2283
        %v2285 = vpop.f32.mrf.mxu0
        %v2286 = vadd.f32 %v2197, %v2285
        %2287 = vmatmul.bf16.gmra.mxu0 %v1387
        %v2288 = vpop.f32.mrf.mxu0
        %v2289 = vadd.f32 %v2200, %v2288
        %v2290 = vpop.f32.mrf.mxu0
        %v2291 = vadd.f32 %v2202, %v2290
        %2292 = vmatmul.bf16.gmra.mxu0 %v1389
        %v2293 = vpop.f32.mrf.mxu0
        %v2294 = vadd.f32 %v2205, %v2293
        %v2295 = vpop.f32.mrf.mxu0
        %v2296 = vadd.f32 %v2207, %v2295
        %2297 = vmatmul.bf16.gmra.mxu0 %v1391
        %v2298 = vpop.f32.mrf.mxu0
        %v2299 = vadd.f32 %v2210, %v2298
        %v2300 = vpop.f32.mrf.mxu0
        %v2301 = vadd.f32 %v2212, %v2300
        %2302 = vmatmul.bf16.gmra.mxu0 %v1393
        %v2303 = vpop.f32.mrf.mxu0
        %v2304 = vadd.f32 %v2215, %v2303
        %v2305 = vpop.f32.mrf.mxu0
        %v2306 = vadd.f32 %v2217, %v2305
        %2307 = vmatmul.bf16.gmra.mxu0 %v1395
        %v2308 = vpop.f32.mrf.mxu0
        %v2309 = vadd.f32 %v2220, %v2308
        %v2310 = vpop.f32.mrf.mxu0
        %v2311 = vadd.f32 %v2222, %v2310
        %2312 = vmatmul.bf16.gmra.mxu0 %v1397
        %v2313 = vpop.f32.mrf.mxu0
        %v2314 = vadd.f32 %v2225, %v2313
        %v2315 = vpop.f32.mrf.mxu0
        %v2316 = vadd.f32 %v2227, %v2315
        %2317 = vmatmul.bf16.gmra.mxu0 %v1399
        %v2318 = vpop.f32.mrf.mxu0
        %v2319 = vadd.f32 %v2230, %v2318
        %v2320 = vpop.f32.mrf.mxu0
        %v2321 = vadd.f32 %v2232, %v2320
        %2322 = vmatmul.bf16.gmra.mxu0 %v1401
        %v2323 = vpop.f32.mrf.mxu0
        %v2324 = vadd.f32 %v2235, %v2323
        %v2325 = vpop.f32.mrf.mxu0
        %v2326 = vadd.f32 %v2237, %v2325
        %2327 = vmatmul.bf16.gmra.mxu0 %v1403
        %v2328 = vpop.f32.mrf.mxu0
        %v2329 = vadd.f32 %v2240, %v2328
        %v2330 = vpop.f32.mrf.mxu0
        %v2331 = vadd.f32 %v2242, %v2330
        %2332 = vmatmul.bf16.gmra.mxu0 %v1405
        %v2333 = vpop.f32.mrf.mxu0
        %v2334 = vadd.f32 %v2245, %v2333
        %v2335 = vpop.f32.mrf.mxu0
        %v2336 = vadd.f32 %v2247, %v2335
        %2337 = vdwg.mxu0
        %2338 = vmatpush.bf16.msra.mxu0 %v1834
        %2339 = vmatpush.bf16.msra.mxu0 %v1828
        %2340 = vmatpush.bf16.msra.mxu0 %v1822
        %2341 = vmatpush.bf16.msra.mxu0 %v1816
        %2342 = vmatpush.bf16.msra.mxu0 %v1810
        %2343 = vmatpush.bf16.msra.mxu0 %v1804
        %2344 = vmatpush.bf16.msra.mxu0 %v1798
        %2345 = vmatpush.bf16.msra.mxu0 %v1792
        %2346 = vmatmul.bf16.gmra.mxu0 %v1374
        %v2347 = vpop.f32.mrf.mxu0
        %v2348 = vadd.f32 0.0, %v2347
        %v2349 = vpop.f32.mrf.mxu0
        %v2350 = vadd.f32 0.0, %v2349
        %2351 = vmatmul.bf16.gmra.mxu0 %v1376
        %v2352 = vpop.f32.mrf.mxu0
        %v2353 = vadd.f32 0.0, %v2352
        %v2354 = vpop.f32.mrf.mxu0
        %v2355 = vadd.f32 0.0, %v2354
        %2356 = vmatmul.bf16.gmra.mxu0 %v1378
        %v2357 = vpop.f32.mrf.mxu0
        %v2358 = vadd.f32 0.0, %v2357
        %v2359 = vpop.f32.mrf.mxu0
        %v2360 = vadd.f32 0.0, %v2359
        %2361 = vmatmul.bf16.gmra.mxu0 %v1380
        %v2362 = vpop.f32.mrf.mxu0
        %v2363 = vadd.f32 0.0, %v2362
        %v2364 = vpop.f32.mrf.mxu0
        %v2365 = vadd.f32 0.0, %v2364
        %2366 = vmatmul.bf16.gmra.mxu0 %v1382
        %v2367 = vpop.f32.mrf.mxu0
        %v2368 = vadd.f32 0.0, %v2367
        %v2369 = vpop.f32.mrf.mxu0
        %v2370 = vadd.f32 0.0, %v2369
        %2371 = vmatmul.bf16.gmra.mxu0 %v1384
        %v2372 = vpop.f32.mrf.mxu0
        %v2373 = vadd.f32 0.0, %v2372
        %v2374 = vpop.f32.mrf.mxu0
        %v2375 = vadd.f32 0.0, %v2374
        %2376 = vmatmul.bf16.gmra.mxu0 %v1386
        %v2377 = vpop.f32.mrf.mxu0
        %v2378 = vadd.f32 0.0, %v2377
        %v2379 = vpop.f32.mrf.mxu0
        %v2380 = vadd.f32 0.0, %v2379
        %2381 = vmatmul.bf16.gmra.mxu0 %v1388
        %v2382 = vpop.f32.mrf.mxu0
        %v2383 = vadd.f32 0.0, %v2382
        %v2384 = vpop.f32.mrf.mxu0
        %v2385 = vadd.f32 0.0, %v2384
        %2386 = vmatmul.bf16.gmra.mxu0 %v1390
        %v2387 = vpop.f32.mrf.mxu0
        %v2388 = vadd.f32 0.0, %v2387
        %v2389 = vpop.f32.mrf.mxu0
        %v2390 = vadd.f32 0.0, %v2389
        %2391 = vmatmul.bf16.gmra.mxu0 %v1392
        %v2392 = vpop.f32.mrf.mxu0
        %v2393 = vadd.f32 0.0, %v2392
        %v2394 = vpop.f32.mrf.mxu0
        %v2395 = vadd.f32 0.0, %v2394
        %2396 = vmatmul.bf16.gmra.mxu0 %v1394
        %v2397 = vpop.f32.mrf.mxu0
        %v2398 = vadd.f32 0.0, %v2397
        %v2399 = vpop.f32.mrf.mxu0
        %v2400 = vadd.f32 0.0, %v2399
        %2401 = vmatmul.bf16.gmra.mxu0 %v1396
        %v2402 = vpop.f32.mrf.mxu0
        %v2403 = vadd.f32 0.0, %v2402
        %v2404 = vpop.f32.mrf.mxu0
        %v2405 = vadd.f32 0.0, %v2404
        %2406 = vmatmul.bf16.gmra.mxu0 %v1398
        %v2407 = vpop.f32.mrf.mxu0
        %v2408 = vadd.f32 0.0, %v2407
        %v2409 = vpop.f32.mrf.mxu0
        %v2410 = vadd.f32 0.0, %v2409
        %2411 = vmatmul.bf16.gmra.mxu0 %v1400
        %v2412 = vpop.f32.mrf.mxu0
        %v2413 = vadd.f32 0.0, %v2412
        %v2414 = vpop.f32.mrf.mxu0
        %v2415 = vadd.f32 0.0, %v2414
        %2416 = vmatmul.bf16.gmra.mxu0 %v1402
        %v2417 = vpop.f32.mrf.mxu0
        %v2418 = vadd.f32 0.0, %v2417
        %v2419 = vpop.f32.mrf.mxu0
        %v2420 = vadd.f32 0.0, %v2419
        %2421 = vmatmul.bf16.gmra.mxu0 %v1404
        %v2422 = vpop.f32.mrf.mxu0
        %v2423 = vadd.f32 0.0, %v2422
        %v2424 = vpop.f32.mrf.mxu0
        %v2425 = vadd.f32 0.0, %v2424
        %2426 = vdwg.mxu0
        %2427 = vmatpush.bf16.msra.mxu0 %v1882
        %2428 = vmatpush.bf16.msra.mxu0 %v1876
        %2429 = vmatpush.bf16.msra.mxu0 %v1870
        %2430 = vmatpush.bf16.msra.mxu0 %v1864
        %2431 = vmatpush.bf16.msra.mxu0 %v1858
        %2432 = vmatpush.bf16.msra.mxu0 %v1852
        %2433 = vmatpush.bf16.msra.mxu0 %v1846
        %2434 = vmatpush.bf16.msra.mxu0 %v1840
        %2435 = vmatmul.bf16.gmra.mxu0 %v1375
        %v2436 = vpop.f32.mrf.mxu0
        %v2437 = vadd.f32 %v2348, %v2436
        %v2438 = vpop.f32.mrf.mxu0
        %v2439 = vadd.f32 %v2350, %v2438
        %2440 = vmatmul.bf16.gmra.mxu0 %v1377
        %v2441 = vpop.f32.mrf.mxu0
        %v2442 = vadd.f32 %v2353, %v2441
        %v2443 = vpop.f32.mrf.mxu0
        %v2444 = vadd.f32 %v2355, %v2443
        %2445 = vmatmul.bf16.gmra.mxu0 %v1379
        %v2446 = vpop.f32.mrf.mxu0
        %v2447 = vadd.f32 %v2358, %v2446
        %v2448 = vpop.f32.mrf.mxu0
        %v2449 = vadd.f32 %v2360, %v2448
        %2450 = vmatmul.bf16.gmra.mxu0 %v1381
        %v2451 = vpop.f32.mrf.mxu0
        %v2452 = vadd.f32 %v2363, %v2451
        %v2453 = vpop.f32.mrf.mxu0
        %v2454 = vadd.f32 %v2365, %v2453
        %2455 = vmatmul.bf16.gmra.mxu0 %v1383
        %v2456 = vpop.f32.mrf.mxu0
        %v2457 = vadd.f32 %v2368, %v2456
        %v2458 = vpop.f32.mrf.mxu0
        %v2459 = vadd.f32 %v2370, %v2458
        %2460 = vmatmul.bf16.gmra.mxu0 %v1385
        %v2461 = vpop.f32.mrf.mxu0
        %v2462 = vadd.f32 %v2373, %v2461
        %v2463 = vpop.f32.mrf.mxu0
        %v2464 = vadd.f32 %v2375, %v2463
        %2465 = vmatmul.bf16.gmra.mxu0 %v1387
        %v2466 = vpop.f32.mrf.mxu0
        %v2467 = vadd.f32 %v2378, %v2466
        %v2468 = vpop.f32.mrf.mxu0
        %v2469 = vadd.f32 %v2380, %v2468
        %2470 = vmatmul.bf16.gmra.mxu0 %v1389
        %v2471 = vpop.f32.mrf.mxu0
        %v2472 = vadd.f32 %v2383, %v2471
        %v2473 = vpop.f32.mrf.mxu0
        %v2474 = vadd.f32 %v2385, %v2473
        %2475 = vmatmul.bf16.gmra.mxu0 %v1391
        %v2476 = vpop.f32.mrf.mxu0
        %v2477 = vadd.f32 %v2388, %v2476
        %v2478 = vpop.f32.mrf.mxu0
        %v2479 = vadd.f32 %v2390, %v2478
        %2480 = vmatmul.bf16.gmra.mxu0 %v1393
        %v2481 = vpop.f32.mrf.mxu0
        %v2482 = vadd.f32 %v2393, %v2481
        %v2483 = vpop.f32.mrf.mxu0
        %v2484 = vadd.f32 %v2395, %v2483
        %2485 = vmatmul.bf16.gmra.mxu0 %v1395
        %v2486 = vpop.f32.mrf.mxu0
        %v2487 = vadd.f32 %v2398, %v2486
        %v2488 = vpop.f32.mrf.mxu0
        %v2489 = vadd.f32 %v2400, %v2488
        %2490 = vmatmul.bf16.gmra.mxu0 %v1397
        %v2491 = vpop.f32.mrf.mxu0
        %v2492 = vadd.f32 %v2403, %v2491
        %v2493 = vpop.f32.mrf.mxu0
        %v2494 = vadd.f32 %v2405, %v2493
        %2495 = vmatmul.bf16.gmra.mxu0 %v1399
        %v2496 = vpop.f32.mrf.mxu0
        %v2497 = vadd.f32 %v2408, %v2496
        %v2498 = vpop.f32.mrf.mxu0
        %v2499 = vadd.f32 %v2410, %v2498
        %2500 = vmatmul.bf16.gmra.mxu0 %v1401
        %v2501 = vpop.f32.mrf.mxu0
        %v2502 = vadd.f32 %v2413, %v2501
        %v2503 = vpop.f32.mrf.mxu0
        %v2504 = vadd.f32 %v2415, %v2503
        %2505 = vmatmul.bf16.gmra.mxu0 %v1403
        %v2506 = vpop.f32.mrf.mxu0
        %v2507 = vadd.f32 %v2418, %v2506
        %v2508 = vpop.f32.mrf.mxu0
        %v2509 = vadd.f32 %v2420, %v2508
        %2510 = vmatmul.bf16.gmra.mxu0 %v1405
        %v2511 = vpop.f32.mrf.mxu0
        %v2512 = vadd.f32 %v2423, %v2511
        %v2513 = vpop.f32.mrf.mxu0
        %v2514 = vadd.f32 %v2425, %v2513
        %2515 = vdwg.mxu0
        %2516 = vmatpush.bf16.msra.mxu0 %v1835
        %2517 = vmatpush.bf16.msra.mxu0 %v1829
        %2518 = vmatpush.bf16.msra.mxu0 %v1823
        %2519 = vmatpush.bf16.msra.mxu0 %v1817
        %2520 = vmatpush.bf16.msra.mxu0 %v1811
        %2521 = vmatpush.bf16.msra.mxu0 %v1805
        %2522 = vmatpush.bf16.msra.mxu0 %v1799
        %2523 = vmatpush.bf16.msra.mxu0 %v1793
        %2524 = vmatmul.bf16.gmra.mxu0 %v1374
        %v2525 = vpop.f32.mrf.mxu0
        %v2526 = vadd.f32 0.0, %v2525
        %v2527 = vpop.f32.mrf.mxu0
        %v2528 = vadd.f32 0.0, %v2527
        %2529 = vmatmul.bf16.gmra.mxu0 %v1376
        %v2530 = vpop.f32.mrf.mxu0
        %v2531 = vadd.f32 0.0, %v2530
        %v2532 = vpop.f32.mrf.mxu0
        %v2533 = vadd.f32 0.0, %v2532
        %2534 = vmatmul.bf16.gmra.mxu0 %v1378
        %v2535 = vpop.f32.mrf.mxu0
        %v2536 = vadd.f32 0.0, %v2535
        %v2537 = vpop.f32.mrf.mxu0
        %v2538 = vadd.f32 0.0, %v2537
        %2539 = vmatmul.bf16.gmra.mxu0 %v1380
        %v2540 = vpop.f32.mrf.mxu0
        %v2541 = vadd.f32 0.0, %v2540
        %v2542 = vpop.f32.mrf.mxu0
        %v2543 = vadd.f32 0.0, %v2542
        %2544 = vmatmul.bf16.gmra.mxu0 %v1382
        %v2545 = vpop.f32.mrf.mxu0
        %v2546 = vadd.f32 0.0, %v2545
        %v2547 = vpop.f32.mrf.mxu0
        %v2548 = vadd.f32 0.0, %v2547
        %2549 = vmatmul.bf16.gmra.mxu0 %v1384
        %v2550 = vpop.f32.mrf.mxu0
        %v2551 = vadd.f32 0.0, %v2550
        %v2552 = vpop.f32.mrf.mxu0
        %v2553 = vadd.f32 0.0, %v2552
        %2554 = vmatmul.bf16.gmra.mxu0 %v1386
        %v2555 = vpop.f32.mrf.mxu0
        %v2556 = vadd.f32 0.0, %v2555
        %v2557 = vpop.f32.mrf.mxu0
        %v2558 = vadd.f32 0.0, %v2557
        %2559 = vmatmul.bf16.gmra.mxu0 %v1388
        %v2560 = vpop.f32.mrf.mxu0
        %v2561 = vadd.f32 0.0, %v2560
        %v2562 = vpop.f32.mrf.mxu0
        %v2563 = vadd.f32 0.0, %v2562
        %2564 = vmatmul.bf16.gmra.mxu0 %v1390
        %v2565 = vpop.f32.mrf.mxu0
        %v2566 = vadd.f32 0.0, %v2565
        %v2567 = vpop.f32.mrf.mxu0
        %v2568 = vadd.f32 0.0, %v2567
        %2569 = vmatmul.bf16.gmra.mxu0 %v1392
        %v2570 = vpop.f32.mrf.mxu0
        %v2571 = vadd.f32 0.0, %v2570
        %v2572 = vpop.f32.mrf.mxu0
        %v2573 = vadd.f32 0.0, %v2572
        %2574 = vmatmul.bf16.gmra.mxu0 %v1394
        %v2575 = vpop.f32.mrf.mxu0
        %v2576 = vadd.f32 0.0, %v2575
        %v2577 = vpop.f32.mrf.mxu0
        %v2578 = vadd.f32 0.0, %v2577
        %2579 = vmatmul.bf16.gmra.mxu0 %v1396
        %v2580 = vpop.f32.mrf.mxu0
        %v2581 = vadd.f32 0.0, %v2580
        %v2582 = vpop.f32.mrf.mxu0
        %v2583 = vadd.f32 0.0, %v2582
        %2584 = vmatmul.bf16.gmra.mxu0 %v1398
        %v2585 = vpop.f32.mrf.mxu0
        %v2586 = vadd.f32 0.0, %v2585
        %v2587 = vpop.f32.mrf.mxu0
        %v2588 = vadd.f32 0.0, %v2587
        %2589 = vmatmul.bf16.gmra.mxu0 %v1400
        %v2590 = vpop.f32.mrf.mxu0
        %v2591 = vadd.f32 0.0, %v2590
        %v2592 = vpop.f32.mrf.mxu0
        %v2593 = vadd.f32 0.0, %v2592
        %2594 = vmatmul.bf16.gmra.mxu0 %v1402
        %v2595 = vpop.f32.mrf.mxu0
        %v2596 = vadd.f32 0.0, %v2595
        %v2597 = vpop.f32.mrf.mxu0
        %v2598 = vadd.f32 0.0, %v2597
        %2599 = vmatmul.bf16.gmra.mxu0 %v1404
        %v2600 = vpop.f32.mrf.mxu0
        %v2601 = vadd.f32 0.0, %v2600
        %v2602 = vpop.f32.mrf.mxu0
        %v2603 = vadd.f32 0.0, %v2602
        %2604 = vdwg.mxu0
        %2605 = vmatpush.bf16.msra.mxu0 %v1883
        %2606 = vmatpush.bf16.msra.mxu0 %v1877
        %2607 = vmatpush.bf16.msra.mxu0 %v1871
        %2608 = vmatpush.bf16.msra.mxu0 %v1865
        %2609 = vmatpush.bf16.msra.mxu0 %v1859
        %2610 = vmatpush.bf16.msra.mxu0 %v1853
        %2611 = vmatpush.bf16.msra.mxu0 %v1847
        %2612 = vmatpush.bf16.msra.mxu0 %v1841
        %2613 = vmatmul.bf16.gmra.mxu0 %v1375
        %v2614 = vpop.f32.mrf.mxu0
        %v2615 = vadd.f32 %v2526, %v2614
        %v2616 = vpop.f32.mrf.mxu0
        %v2617 = vadd.f32 %v2528, %v2616
        %2618 = vmatmul.bf16.gmra.mxu0 %v1377
        %v2619 = vpop.f32.mrf.mxu0
        %v2620 = vadd.f32 %v2531, %v2619
        %v2621 = vpop.f32.mrf.mxu0
        %v2622 = vadd.f32 %v2533, %v2621
        %2623 = vmatmul.bf16.gmra.mxu0 %v1379
        %v2624 = vpop.f32.mrf.mxu0
        %v2625 = vadd.f32 %v2536, %v2624
        %v2626 = vpop.f32.mrf.mxu0
        %v2627 = vadd.f32 %v2538, %v2626
        %2628 = vmatmul.bf16.gmra.mxu0 %v1381
        %v2629 = vpop.f32.mrf.mxu0
        %v2630 = vadd.f32 %v2541, %v2629
        %v2631 = vpop.f32.mrf.mxu0
        %v2632 = vadd.f32 %v2543, %v2631
        %2633 = vmatmul.bf16.gmra.mxu0 %v1383
        %v2634 = vpop.f32.mrf.mxu0
        %v2635 = vadd.f32 %v2546, %v2634
        %v2636 = vpop.f32.mrf.mxu0
        %v2637 = vadd.f32 %v2548, %v2636
        %2638 = vmatmul.bf16.gmra.mxu0 %v1385
        %v2639 = vpop.f32.mrf.mxu0
        %v2640 = vadd.f32 %v2551, %v2639
        %v2641 = vpop.f32.mrf.mxu0
        %v2642 = vadd.f32 %v2553, %v2641
        %2643 = vmatmul.bf16.gmra.mxu0 %v1387
        %v2644 = vpop.f32.mrf.mxu0
        %v2645 = vadd.f32 %v2556, %v2644
        %v2646 = vpop.f32.mrf.mxu0
        %v2647 = vadd.f32 %v2558, %v2646
        %2648 = vmatmul.bf16.gmra.mxu0 %v1389
        %v2649 = vpop.f32.mrf.mxu0
        %v2650 = vadd.f32 %v2561, %v2649
        %v2651 = vpop.f32.mrf.mxu0
        %v2652 = vadd.f32 %v2563, %v2651
        %2653 = vmatmul.bf16.gmra.mxu0 %v1391
        %v2654 = vpop.f32.mrf.mxu0
        %v2655 = vadd.f32 %v2566, %v2654
        %v2656 = vpop.f32.mrf.mxu0
        %v2657 = vadd.f32 %v2568, %v2656
        %2658 = vmatmul.bf16.gmra.mxu0 %v1393
        %v2659 = vpop.f32.mrf.mxu0
        %v2660 = vadd.f32 %v2571, %v2659
        %v2661 = vpop.f32.mrf.mxu0
        %v2662 = vadd.f32 %v2573, %v2661
        %2663 = vmatmul.bf16.gmra.mxu0 %v1395
        %v2664 = vpop.f32.mrf.mxu0
        %v2665 = vadd.f32 %v2576, %v2664
        %v2666 = vpop.f32.mrf.mxu0
        %v2667 = vadd.f32 %v2578, %v2666
        %2668 = vmatmul.bf16.gmra.mxu0 %v1397
        %v2669 = vpop.f32.mrf.mxu0
        %v2670 = vadd.f32 %v2581, %v2669
        %v2671 = vpop.f32.mrf.mxu0
        %v2672 = vadd.f32 %v2583, %v2671
        %2673 = vmatmul.bf16.gmra.mxu0 %v1399
        %v2674 = vpop.f32.mrf.mxu0
        %v2675 = vadd.f32 %v2586, %v2674
        %v2676 = vpop.f32.mrf.mxu0
        %v2677 = vadd.f32 %v2588, %v2676
        %2678 = vmatmul.bf16.gmra.mxu0 %v1401
        %v2679 = vpop.f32.mrf.mxu0
        %v2680 = vadd.f32 %v2591, %v2679
        %v2681 = vpop.f32.mrf.mxu0
        %v2682 = vadd.f32 %v2593, %v2681
        %2683 = vmatmul.bf16.gmra.mxu0 %v1403
        %v2684 = vpop.f32.mrf.mxu0
        %v2685 = vadd.f32 %v2596, %v2684
        %v2686 = vpop.f32.mrf.mxu0
        %v2687 = vadd.f32 %v2598, %v2686
        %2688 = vmatmul.bf16.gmra.mxu0 %v1405
        %v2689 = vpop.f32.mrf.mxu0
        %v2690 = vadd.f32 %v2601, %v2689
        %v2691 = vpop.f32.mrf.mxu0
        %v2692 = vadd.f32 %v2603, %v2691
        %2693 = vdwg.mxu0
        %2694 = vmatpush.bf16.msra.mxu0 %v1836
        %2695 = vmatpush.bf16.msra.mxu0 %v1830
        %2696 = vmatpush.bf16.msra.mxu0 %v1824
        %2697 = vmatpush.bf16.msra.mxu0 %v1818
        %2698 = vmatpush.bf16.msra.mxu0 %v1812
        %2699 = vmatpush.bf16.msra.mxu0 %v1806
        %2700 = vmatpush.bf16.msra.mxu0 %v1800
        %2701 = vmatpush.bf16.msra.mxu0 %v1794
        %2702 = vmatmul.bf16.gmra.mxu0 %v1374
        %v2703 = vpop.f32.mrf.mxu0
        %v2704 = vadd.f32 0.0, %v2703
        %v2705 = vpop.f32.mrf.mxu0
        %v2706 = vadd.f32 0.0, %v2705
        %2707 = vmatmul.bf16.gmra.mxu0 %v1376
        %v2708 = vpop.f32.mrf.mxu0
        %v2709 = vadd.f32 0.0, %v2708
        %v2710 = vpop.f32.mrf.mxu0
        %v2711 = vadd.f32 0.0, %v2710
        %2712 = vmatmul.bf16.gmra.mxu0 %v1378
        %v2713 = vpop.f32.mrf.mxu0
        %v2714 = vadd.f32 0.0, %v2713
        %v2715 = vpop.f32.mrf.mxu0
        %v2716 = vadd.f32 0.0, %v2715
        %2717 = vmatmul.bf16.gmra.mxu0 %v1380
        %v2718 = vpop.f32.mrf.mxu0
        %v2719 = vadd.f32 0.0, %v2718
        %v2720 = vpop.f32.mrf.mxu0
        %v2721 = vadd.f32 0.0, %v2720
        %2722 = vmatmul.bf16.gmra.mxu0 %v1382
        %v2723 = vpop.f32.mrf.mxu0
        %v2724 = vadd.f32 0.0, %v2723
        %v2725 = vpop.f32.mrf.mxu0
        %v2726 = vadd.f32 0.0, %v2725
        %2727 = vmatmul.bf16.gmra.mxu0 %v1384
        %v2728 = vpop.f32.mrf.mxu0
        %v2729 = vadd.f32 0.0, %v2728
        %v2730 = vpop.f32.mrf.mxu0
        %v2731 = vadd.f32 0.0, %v2730
        %2732 = vmatmul.bf16.gmra.mxu0 %v1386
        %v2733 = vpop.f32.mrf.mxu0
        %v2734 = vadd.f32 0.0, %v2733
        %v2735 = vpop.f32.mrf.mxu0
        %v2736 = vadd.f32 0.0, %v2735
        %2737 = vmatmul.bf16.gmra.mxu0 %v1388
        %v2738 = vpop.f32.mrf.mxu0
        %v2739 = vadd.f32 0.0, %v2738
        %v2740 = vpop.f32.mrf.mxu0
        %v2741 = vadd.f32 0.0, %v2740
        %2742 = vmatmul.bf16.gmra.mxu0 %v1390
        %v2743 = vpop.f32.mrf.mxu0
        %v2744 = vadd.f32 0.0, %v2743
        %v2745 = vpop.f32.mrf.mxu0
        %v2746 = vadd.f32 0.0, %v2745
        %2747 = vmatmul.bf16.gmra.mxu0 %v1392
        %v2748 = vpop.f32.mrf.mxu0
        %v2749 = vadd.f32 0.0, %v2748
        %v2750 = vpop.f32.mrf.mxu0
        %v2751 = vadd.f32 0.0, %v2750
        %2752 = vmatmul.bf16.gmra.mxu0 %v1394
        %v2753 = vpop.f32.mrf.mxu0
        %v2754 = vadd.f32 0.0, %v2753
        %v2755 = vpop.f32.mrf.mxu0
        %v2756 = vadd.f32 0.0, %v2755
        %2757 = vmatmul.bf16.gmra.mxu0 %v1396
        %v2758 = vpop.f32.mrf.mxu0
        %v2759 = vadd.f32 0.0, %v2758
        %v2760 = vpop.f32.mrf.mxu0
        %v2761 = vadd.f32 0.0, %v2760
        %2762 = vmatmul.bf16.gmra.mxu0 %v1398
        %v2763 = vpop.f32.mrf.mxu0
        %v2764 = vadd.f32 0.0, %v2763
        %v2765 = vpop.f32.mrf.mxu0
        %v2766 = vadd.f32 0.0, %v2765
        %2767 = vmatmul.bf16.gmra.mxu0 %v1400
        %v2768 = vpop.f32.mrf.mxu0
        %v2769 = vadd.f32 0.0, %v2768
        %v2770 = vpop.f32.mrf.mxu0
        %v2771 = vadd.f32 0.0, %v2770
        %2772 = vmatmul.bf16.gmra.mxu0 %v1402
        %v2773 = vpop.f32.mrf.mxu0
        %v2774 = vadd.f32 0.0, %v2773
        %v2775 = vpop.f32.mrf.mxu0
        %v2776 = vadd.f32 0.0, %v2775
        %2777 = vmatmul.bf16.gmra.mxu0 %v1404
        %v2778 = vpop.f32.mrf.mxu0
        %v2779 = vadd.f32 0.0, %v2778
        %v2780 = vpop.f32.mrf.mxu0
        %v2781 = vadd.f32 0.0, %v2780
        %2782 = vdwg.mxu0
        %2783 = vmatpush.bf16.msra.mxu0 %v1884
        %2784 = vmatpush.bf16.msra.mxu0 %v1878
        %2785 = vmatpush.bf16.msra.mxu0 %v1872
        %2786 = vmatpush.bf16.msra.mxu0 %v1866
        %2787 = vmatpush.bf16.msra.mxu0 %v1860
        %2788 = vmatpush.bf16.msra.mxu0 %v1854
        %2789 = vmatpush.bf16.msra.mxu0 %v1848
        %2790 = vmatpush.bf16.msra.mxu0 %v1842
        %2791 = vmatmul.bf16.gmra.mxu0 %v1375
        %v2792 = vpop.f32.mrf.mxu0
        %v2793 = vadd.f32 %v2704, %v2792
        %v2794 = vpop.f32.mrf.mxu0
        %v2795 = vadd.f32 %v2706, %v2794
        %2796 = vmatmul.bf16.gmra.mxu0 %v1377
        %v2797 = vpop.f32.mrf.mxu0
        %v2798 = vadd.f32 %v2709, %v2797
        %v2799 = vpop.f32.mrf.mxu0
        %v2800 = vadd.f32 %v2711, %v2799
        %2801 = vmatmul.bf16.gmra.mxu0 %v1379
        %v2802 = vpop.f32.mrf.mxu0
        %v2803 = vadd.f32 %v2714, %v2802
        %v2804 = vpop.f32.mrf.mxu0
        %v2805 = vadd.f32 %v2716, %v2804
        %2806 = vmatmul.bf16.gmra.mxu0 %v1381
        %v2807 = vpop.f32.mrf.mxu0
        %v2808 = vadd.f32 %v2719, %v2807
        %v2809 = vpop.f32.mrf.mxu0
        %v2810 = vadd.f32 %v2721, %v2809
        %2811 = vmatmul.bf16.gmra.mxu0 %v1383
        %v2812 = vpop.f32.mrf.mxu0
        %v2813 = vadd.f32 %v2724, %v2812
        %v2814 = vpop.f32.mrf.mxu0
        %v2815 = vadd.f32 %v2726, %v2814
        %2816 = vmatmul.bf16.gmra.mxu0 %v1385
        %v2817 = vpop.f32.mrf.mxu0
        %v2818 = vadd.f32 %v2729, %v2817
        %v2819 = vpop.f32.mrf.mxu0
        %v2820 = vadd.f32 %v2731, %v2819
        %2821 = vmatmul.bf16.gmra.mxu0 %v1387
        %v2822 = vpop.f32.mrf.mxu0
        %v2823 = vadd.f32 %v2734, %v2822
        %v2824 = vpop.f32.mrf.mxu0
        %v2825 = vadd.f32 %v2736, %v2824
        %2826 = vmatmul.bf16.gmra.mxu0 %v1389
        %v2827 = vpop.f32.mrf.mxu0
        %v2828 = vadd.f32 %v2739, %v2827
        %v2829 = vpop.f32.mrf.mxu0
        %v2830 = vadd.f32 %v2741, %v2829
        %2831 = vmatmul.bf16.gmra.mxu0 %v1391
        %v2832 = vpop.f32.mrf.mxu0
        %v2833 = vadd.f32 %v2744, %v2832
        %v2834 = vpop.f32.mrf.mxu0
        %v2835 = vadd.f32 %v2746, %v2834
        %2836 = vmatmul.bf16.gmra.mxu0 %v1393
        %v2837 = vpop.f32.mrf.mxu0
        %v2838 = vadd.f32 %v2749, %v2837
        %v2839 = vpop.f32.mrf.mxu0
        %v2840 = vadd.f32 %v2751, %v2839
        %2841 = vmatmul.bf16.gmra.mxu0 %v1395
        %v2842 = vpop.f32.mrf.mxu0
        %v2843 = vadd.f32 %v2754, %v2842
        %v2844 = vpop.f32.mrf.mxu0
        %v2845 = vadd.f32 %v2756, %v2844
        %2846 = vmatmul.bf16.gmra.mxu0 %v1397
        %v2847 = vpop.f32.mrf.mxu0
        %v2848 = vadd.f32 %v2759, %v2847
        %v2849 = vpop.f32.mrf.mxu0
        %v2850 = vadd.f32 %v2761, %v2849
        %2851 = vmatmul.bf16.gmra.mxu0 %v1399
        %v2852 = vpop.f32.mrf.mxu0
        %v2853 = vadd.f32 %v2764, %v2852
        %v2854 = vpop.f32.mrf.mxu0
        %v2855 = vadd.f32 %v2766, %v2854
        %2856 = vmatmul.bf16.gmra.mxu0 %v1401
        %v2857 = vpop.f32.mrf.mxu0
        %v2858 = vadd.f32 %v2769, %v2857
        %v2859 = vpop.f32.mrf.mxu0
        %v2860 = vadd.f32 %v2771, %v2859
        %2861 = vmatmul.bf16.gmra.mxu0 %v1403
        %v2862 = vpop.f32.mrf.mxu0
        %v2863 = vadd.f32 %v2774, %v2862
        %v2864 = vpop.f32.mrf.mxu0
        %v2865 = vadd.f32 %v2776, %v2864
        %2866 = vmatmul.bf16.gmra.mxu0 %v1405
        %v2867 = vpop.f32.mrf.mxu0
        %v2868 = vadd.f32 %v2779, %v2867
        %v2869 = vpop.f32.mrf.mxu0
        %v2870 = vadd.f32 %v2781, %v2869
        %2871 = vdwg.mxu0
        %2872 = vmatpush.bf16.msra.mxu0 %v1837
        %2873 = vmatpush.bf16.msra.mxu0 %v1831
        %2874 = vmatpush.bf16.msra.mxu0 %v1825
        %2875 = vmatpush.bf16.msra.mxu0 %v1819
        %2876 = vmatpush.bf16.msra.mxu0 %v1813
        %2877 = vmatpush.bf16.msra.mxu0 %v1807
        %2878 = vmatpush.bf16.msra.mxu0 %v1801
        %2879 = vmatpush.bf16.msra.mxu0 %v1795
        %2880 = vmatmul.bf16.gmra.mxu0 %v1374
        %v2881 = vpop.f32.mrf.mxu0
        %v2882 = vadd.f32 0.0, %v2881
        %v2883 = vpop.f32.mrf.mxu0
        %v2884 = vadd.f32 0.0, %v2883
        %2885 = vmatmul.bf16.gmra.mxu0 %v1376
        %v2886 = vpop.f32.mrf.mxu0
        %v2887 = vadd.f32 0.0, %v2886
        %v2888 = vpop.f32.mrf.mxu0
        %v2889 = vadd.f32 0.0, %v2888
        %2890 = vmatmul.bf16.gmra.mxu0 %v1378
        %v2891 = vpop.f32.mrf.mxu0
        %v2892 = vadd.f32 0.0, %v2891
        %v2893 = vpop.f32.mrf.mxu0
        %v2894 = vadd.f32 0.0, %v2893
        %2895 = vmatmul.bf16.gmra.mxu0 %v1380
        %v2896 = vpop.f32.mrf.mxu0
        %v2897 = vadd.f32 0.0, %v2896
        %v2898 = vpop.f32.mrf.mxu0
        %v2899 = vadd.f32 0.0, %v2898
        %2900 = vmatmul.bf16.gmra.mxu0 %v1382
        %v2901 = vpop.f32.mrf.mxu0
        %v2902 = vadd.f32 0.0, %v2901
        %v2903 = vpop.f32.mrf.mxu0
        %v2904 = vadd.f32 0.0, %v2903
        %2905 = vmatmul.bf16.gmra.mxu0 %v1384
        %v2906 = vpop.f32.mrf.mxu0
        %v2907 = vadd.f32 0.0, %v2906
        %v2908 = vpop.f32.mrf.mxu0
        %v2909 = vadd.f32 0.0, %v2908
        %2910 = vmatmul.bf16.gmra.mxu0 %v1386
        %v2911 = vpop.f32.mrf.mxu0
        %v2912 = vadd.f32 0.0, %v2911
        %v2913 = vpop.f32.mrf.mxu0
        %v2914 = vadd.f32 0.0, %v2913
        %2915 = vmatmul.bf16.gmra.mxu0 %v1388
        %v2916 = vpop.f32.mrf.mxu0
        %v2917 = vadd.f32 0.0, %v2916
        %v2918 = vpop.f32.mrf.mxu0
        %v2919 = vadd.f32 0.0, %v2918
        %2920 = vmatmul.bf16.gmra.mxu0 %v1390
        %v2921 = vpop.f32.mrf.mxu0
        %v2922 = vadd.f32 0.0, %v2921
        %v2923 = vpop.f32.mrf.mxu0
        %v2924 = vadd.f32 0.0, %v2923
        %2925 = vmatmul.bf16.gmra.mxu0 %v1392
        %v2926 = vpop.f32.mrf.mxu0
        %v2927 = vadd.f32 0.0, %v2926
        %v2928 = vpop.f32.mrf.mxu0
        %v2929 = vadd.f32 0.0, %v2928
        %2930 = vmatmul.bf16.gmra.mxu0 %v1394
        %v2931 = vpop.f32.mrf.mxu0
        %v2932 = vadd.f32 0.0, %v2931
        %v2933 = vpop.f32.mrf.mxu0
        %v2934 = vadd.f32 0.0, %v2933
        %2935 = vmatmul.bf16.gmra.mxu0 %v1396
        %v2936 = vpop.f32.mrf.mxu0
        %v2937 = vadd.f32 0.0, %v2936
        %v2938 = vpop.f32.mrf.mxu0
        %v2939 = vadd.f32 0.0, %v2938
        %2940 = vmatmul.bf16.gmra.mxu0 %v1398
        %v2941 = vpop.f32.mrf.mxu0
        %v2942 = vadd.f32 0.0, %v2941
        %v2943 = vpop.f32.mrf.mxu0
        %v2944 = vadd.f32 0.0, %v2943
        %2945 = vmatmul.bf16.gmra.mxu0 %v1400
        %v2946 = vpop.f32.mrf.mxu0
        %v2947 = vadd.f32 0.0, %v2946
        %v2948 = vpop.f32.mrf.mxu0
        %v2949 = vadd.f32 0.0, %v2948
        %2950 = vmatmul.bf16.gmra.mxu0 %v1402
        %v2951 = vpop.f32.mrf.mxu0
        %v2952 = vadd.f32 0.0, %v2951
        %v2953 = vpop.f32.mrf.mxu0
        %v2954 = vadd.f32 0.0, %v2953
        %2955 = vmatmul.bf16.gmra.mxu0 %v1404
        %v2956 = vpop.f32.mrf.mxu0
        %v2957 = vadd.f32 0.0, %v2956
        %v2958 = vpop.f32.mrf.mxu0
        %v2959 = vadd.f32 0.0, %v2958
        %2960 = vdwg.mxu0
        %2961 = vmatpush.bf16.msra.mxu0 %v1885
        %2962 = vmatpush.bf16.msra.mxu0 %v1879
        %2963 = vmatpush.bf16.msra.mxu0 %v1873
        %2964 = vmatpush.bf16.msra.mxu0 %v1867
        %2965 = vmatpush.bf16.msra.mxu0 %v1861
        %2966 = vmatpush.bf16.msra.mxu0 %v1855
        %2967 = vmatpush.bf16.msra.mxu0 %v1849
        %2968 = vmatpush.bf16.msra.mxu0 %v1843
        %2969 = vmatmul.bf16.gmra.mxu0 %v1375
        %v2970 = vpop.f32.mrf.mxu0
        %v2971 = vadd.f32 %v2882, %v2970
        %v2972 = vpop.f32.mrf.mxu0
        %v2973 = vadd.f32 %v2884, %v2972
        %2974 = vmatmul.bf16.gmra.mxu0 %v1377
        %v2975 = vpop.f32.mrf.mxu0
        %v2976 = vadd.f32 %v2887, %v2975
        %v2977 = vpop.f32.mrf.mxu0
        %v2978 = vadd.f32 %v2889, %v2977
        %2979 = vmatmul.bf16.gmra.mxu0 %v1379
        %v2980 = vpop.f32.mrf.mxu0
        %v2981 = vadd.f32 %v2892, %v2980
        %v2982 = vpop.f32.mrf.mxu0
        %v2983 = vadd.f32 %v2894, %v2982
        %2984 = vmatmul.bf16.gmra.mxu0 %v1381
        %v2985 = vpop.f32.mrf.mxu0
        %v2986 = vadd.f32 %v2897, %v2985
        %v2987 = vpop.f32.mrf.mxu0
        %v2988 = vadd.f32 %v2899, %v2987
        %2989 = vmatmul.bf16.gmra.mxu0 %v1383
        %v2990 = vpop.f32.mrf.mxu0
        %v2991 = vadd.f32 %v2902, %v2990
        %v2992 = vpop.f32.mrf.mxu0
        %v2993 = vadd.f32 %v2904, %v2992
        %2994 = vmatmul.bf16.gmra.mxu0 %v1385
        %v2995 = vpop.f32.mrf.mxu0
        %v2996 = vadd.f32 %v2907, %v2995
        %v2997 = vpop.f32.mrf.mxu0
        %v2998 = vadd.f32 %v2909, %v2997
        %2999 = vmatmul.bf16.gmra.mxu0 %v1387
        %v3000 = vpop.f32.mrf.mxu0
        %v3001 = vadd.f32 %v2912, %v3000
        %v3002 = vpop.f32.mrf.mxu0
        %v3003 = vadd.f32 %v2914, %v3002
        %3004 = vmatmul.bf16.gmra.mxu0 %v1389
        %v3005 = vpop.f32.mrf.mxu0
        %v3006 = vadd.f32 %v2917, %v3005
        %v3007 = vpop.f32.mrf.mxu0
        %v3008 = vadd.f32 %v2919, %v3007
        %3009 = vmatmul.bf16.gmra.mxu0 %v1391
        %v3010 = vpop.f32.mrf.mxu0
        %v3011 = vadd.f32 %v2922, %v3010
        %v3012 = vpop.f32.mrf.mxu0
        %v3013 = vadd.f32 %v2924, %v3012
        %3014 = vmatmul.bf16.gmra.mxu0 %v1393
        %v3015 = vpop.f32.mrf.mxu0
        %v3016 = vadd.f32 %v2927, %v3015
        %v3017 = vpop.f32.mrf.mxu0
        %v3018 = vadd.f32 %v2929, %v3017
        %3019 = vmatmul.bf16.gmra.mxu0 %v1395
        %v3020 = vpop.f32.mrf.mxu0
        %v3021 = vadd.f32 %v2932, %v3020
        %v3022 = vpop.f32.mrf.mxu0
        %v3023 = vadd.f32 %v2934, %v3022
        %3024 = vmatmul.bf16.gmra.mxu0 %v1397
        %v3025 = vpop.f32.mrf.mxu0
        %v3026 = vadd.f32 %v2937, %v3025
        %v3027 = vpop.f32.mrf.mxu0
        %v3028 = vadd.f32 %v2939, %v3027
        %3029 = vmatmul.bf16.gmra.mxu0 %v1399
        %v3030 = vpop.f32.mrf.mxu0
        %v3031 = vadd.f32 %v2942, %v3030
        %v3032 = vpop.f32.mrf.mxu0
        %v3033 = vadd.f32 %v2944, %v3032
        %3034 = vmatmul.bf16.gmra.mxu0 %v1401
        %v3035 = vpop.f32.mrf.mxu0
        %v3036 = vadd.f32 %v2947, %v3035
        %v3037 = vpop.f32.mrf.mxu0
        %v3038 = vadd.f32 %v2949, %v3037
        %3039 = vmatmul.bf16.gmra.mxu0 %v1403
        %v3040 = vpop.f32.mrf.mxu0
        %v3041 = vadd.f32 %v2952, %v3040
        %v3042 = vpop.f32.mrf.mxu0
        %v3043 = vadd.f32 %v2954, %v3042
        %3044 = vmatmul.bf16.gmra.mxu0 %v1405
        %v3045 = vpop.f32.mrf.mxu0
        %v3046 = vadd.f32 %v2957, %v3045
        %v3047 = vpop.f32.mrf.mxu0
        %v3048 = vadd.f32 %v2959, %v3047
        %3049 = vdwg.mxu0
        %v3050 = vpack.c.bf16 %v2081, %v2081
        %v3051 = vpack.c.bf16 %v2083, %v2083
        %v3052 = vpack.c.bf16 %v2086, %v2086
        %v3053 = vpack.c.bf16 %v2088, %v2088
        %v3054 = vpack.c.bf16 %v2091, %v2091
        %v3055 = vpack.c.bf16 %v2093, %v2093
        %v3056 = vpack.c.bf16 %v2096, %v2096
        %v3057 = vpack.c.bf16 %v2098, %v2098
        %v3058 = vpack.c.bf16 %v2101, %v2101
        %v3059 = vpack.c.bf16 %v2103, %v2103
        %v3060 = vpack.c.bf16 %v2106, %v2106
        %v3061 = vpack.c.bf16 %v2108, %v2108
        %v3062 = vpack.c.bf16 %v2111, %v2111
        %v3063 = vpack.c.bf16 %v2113, %v2113
        %v3064 = vpack.c.bf16 %v2116, %v2116
        %v3065 = vpack.c.bf16 %v2118, %v2118
        %v3066 = vpack.c.bf16 %v2121, %v2121
        %v3067 = vpack.c.bf16 %v2123, %v2123
        %v3068 = vpack.c.bf16 %v2126, %v2126
        %v3069 = vpack.c.bf16 %v2128, %v2128
        %v3070 = vpack.c.bf16 %v2131, %v2131
        %v3071 = vpack.c.bf16 %v2133, %v2133
        %v3072 = vpack.c.bf16 %v2136, %v2136
        %v3073 = vpack.c.bf16 %v2138, %v2138
        %v3074 = vpack.c.bf16 %v2141, %v2141
        %v3075 = vpack.c.bf16 %v2143, %v2143
        %v3076 = vpack.c.bf16 %v2146, %v2146
        %v3077 = vpack.c.bf16 %v2148, %v2148
        %v3078 = vpack.c.bf16 %v2151, %v2151
        %v3079 = vpack.c.bf16 %v2153, %v2153
        %v3080 = vpack.c.bf16 %v2156, %v2156
        %v3081 = vpack.c.bf16 %v2158, %v2158
        %3082 = vst [vmem:[%s344] sm:$0xf] %v3050
        %3083 = vst [vmem:[%s344 + $0x4] sm:$0xf] %v3051
        %3084 = vst [vmem:[%s344 + $0x8] sm:$0xf] %v3052
        %3085 = vst [vmem:[%s344 + $0xc] sm:$0xf] %v3053
        %3086 = vst [vmem:[%s344 + $0x10] sm:$0xf] %v3054
        %3087 = vst [vmem:[%s344 + $0x14] sm:$0xf] %v3055
        %3088 = vst [vmem:[%s344 + $0x18] sm:$0xf] %v3056
        %3089 = vst [vmem:[%s344 + $0x1c] sm:$0xf] %v3057
        %3090 = vst [vmem:[%s344 + $0x20] sm:$0xf] %v3058
        %3091 = vst [vmem:[%s344 + $0x24] sm:$0xf] %v3059
        %3092 = vst [vmem:[%s344 + $0x28] sm:$0xf] %v3060
        %3093 = vst [vmem:[%s344 + $0x2c] sm:$0xf] %v3061
        %3094 = vst [vmem:[%s344 + $0x30] sm:$0xf] %v3062
        %3095 = vst [vmem:[%s344 + $0x34] sm:$0xf] %v3063
        %3096 = vst [vmem:[%s344 + $0x38] sm:$0xf] %v3064
        %3097 = vst [vmem:[%s344 + $0x3c] sm:$0xf] %v3065
        %3098 = vst [vmem:[%s344 + $0x40] sm:$0xf] %v3066
        %3099 = vst [vmem:[%s344 + $0x44] sm:$0xf] %v3067
        %3100 = vst [vmem:[%s344 + $0x48] sm:$0xf] %v3068
        %3101 = vst [vmem:[%s344 + $0x4c] sm:$0xf] %v3069
        %3102 = vst [vmem:[%s344 + $0x50] sm:$0xf] %v3070
        %3103 = vst [vmem:[%s344 + $0x54] sm:$0xf] %v3071
        %3104 = vst [vmem:[%s344 + $0x58] sm:$0xf] %v3072
        %3105 = vst [vmem:[%s344 + $0x5c] sm:$0xf] %v3073
        %3106 = vst [vmem:[%s344 + $0x60] sm:$0xf] %v3074
        %3107 = vst [vmem:[%s344 + $0x64] sm:$0xf] %v3075
        %3108 = vst [vmem:[%s344 + $0x68] sm:$0xf] %v3076
        %3109 = vst [vmem:[%s344 + $0x6c] sm:$0xf] %v3077
        %3110 = vst [vmem:[%s344 + $0x70] sm:$0xf] %v3078
        %3111 = vst [vmem:[%s344 + $0x74] sm:$0xf] %v3079
        %3112 = vst [vmem:[%s344 + $0x78] sm:$0xf] %v3080
        %3113 = vst [vmem:[%s344 + $0x7c] sm:$0xf] %v3081
        %v3114 = vpack.c.bf16 %v2437, %v2437
        %v3115 = vpack.c.bf16 %v2439, %v2439
        %v3116 = vpack.c.bf16 %v2442, %v2442
        %v3117 = vpack.c.bf16 %v2444, %v2444
        %v3118 = vpack.c.bf16 %v2447, %v2447
        %v3119 = vpack.c.bf16 %v2449, %v2449
        %v3120 = vpack.c.bf16 %v2452, %v2452
        %v3121 = vpack.c.bf16 %v2454, %v2454
        %v3122 = vpack.c.bf16 %v2457, %v2457
        %v3123 = vpack.c.bf16 %v2459, %v2459
        %v3124 = vpack.c.bf16 %v2462, %v2462
        %v3125 = vpack.c.bf16 %v2464, %v2464
        %v3126 = vpack.c.bf16 %v2467, %v2467
        %v3127 = vpack.c.bf16 %v2469, %v2469
        %v3128 = vpack.c.bf16 %v2472, %v2472
        %v3129 = vpack.c.bf16 %v2474, %v2474
        %v3130 = vpack.c.bf16 %v2477, %v2477
        %v3131 = vpack.c.bf16 %v2479, %v2479
        %v3132 = vpack.c.bf16 %v2482, %v2482
        %v3133 = vpack.c.bf16 %v2484, %v2484
        %v3134 = vpack.c.bf16 %v2487, %v2487
        %v3135 = vpack.c.bf16 %v2489, %v2489
        %v3136 = vpack.c.bf16 %v2492, %v2492
        %v3137 = vpack.c.bf16 %v2494, %v2494
        %v3138 = vpack.c.bf16 %v2497, %v2497
        %v3139 = vpack.c.bf16 %v2499, %v2499
        %v3140 = vpack.c.bf16 %v2502, %v2502
        %v3141 = vpack.c.bf16 %v2504, %v2504
        %v3142 = vpack.c.bf16 %v2507, %v2507
        %v3143 = vpack.c.bf16 %v2509, %v2509
        %v3144 = vpack.c.bf16 %v2512, %v2512
        %v3145 = vpack.c.bf16 %v2514, %v2514
        %3146 = vst [vmem:[%s351] sm:$0xf] %v3114
        %3147 = vst [vmem:[%s351 + $0x4] sm:$0xf] %v3115
        %3148 = vst [vmem:[%s351 + $0x8] sm:$0xf] %v3116
        %3149 = vst [vmem:[%s351 + $0xc] sm:$0xf] %v3117
        %3150 = vst [vmem:[%s351 + $0x10] sm:$0xf] %v3118
        %3151 = vst [vmem:[%s351 + $0x14] sm:$0xf] %v3119
        %3152 = vst [vmem:[%s351 + $0x18] sm:$0xf] %v3120
        %3153 = vst [vmem:[%s351 + $0x1c] sm:$0xf] %v3121
        %3154 = vst [vmem:[%s351 + $0x20] sm:$0xf] %v3122
        %3155 = vst [vmem:[%s351 + $0x24] sm:$0xf] %v3123
        %3156 = vst [vmem:[%s351 + $0x28] sm:$0xf] %v3124
        %3157 = vst [vmem:[%s351 + $0x2c] sm:$0xf] %v3125
        %3158 = vst [vmem:[%s351 + $0x30] sm:$0xf] %v3126
        %3159 = vst [vmem:[%s351 + $0x34] sm:$0xf] %v3127
        %3160 = vst [vmem:[%s351 + $0x38] sm:$0xf] %v3128
        %3161 = vst [vmem:[%s351 + $0x3c] sm:$0xf] %v3129
        %3162 = vst [vmem:[%s351 + $0x40] sm:$0xf] %v3130
        %3163 = vst [vmem:[%s351 + $0x44] sm:$0xf] %v3131
        %3164 = vst [vmem:[%s351 + $0x48] sm:$0xf] %v3132
        %3165 = vst [vmem:[%s351 + $0x4c] sm:$0xf] %v3133
        %3166 = vst [vmem:[%s351 + $0x50] sm:$0xf] %v3134
        %3167 = vst [vmem:[%s351 + $0x54] sm:$0xf] %v3135
        %3168 = vst [vmem:[%s351 + $0x58] sm:$0xf] %v3136
        %3169 = vst [vmem:[%s351 + $0x5c] sm:$0xf] %v3137
        %3170 = vst [vmem:[%s351 + $0x60] sm:$0xf] %v3138
        %3171 = vst [vmem:[%s351 + $0x64] sm:$0xf] %v3139
        %3172 = vst [vmem:[%s351 + $0x68] sm:$0xf] %v3140
        %3173 = vst [vmem:[%s351 + $0x6c] sm:$0xf] %v3141
        %3174 = vst [vmem:[%s351 + $0x70] sm:$0xf] %v3142
        %3175 = vst [vmem:[%s351 + $0x74] sm:$0xf] %v3143
        %3176 = vst [vmem:[%s351 + $0x78] sm:$0xf] %v3144
        %3177 = vst [vmem:[%s351 + $0x7c] sm:$0xf] %v3145
        %v3178 = vpack.c.bf16 %v2793, %v2793
        %v3179 = vpack.c.bf16 %v2795, %v2795
        %v3180 = vpack.c.bf16 %v2798, %v2798
        %v3181 = vpack.c.bf16 %v2800, %v2800
        %v3182 = vpack.c.bf16 %v2803, %v2803
        %v3183 = vpack.c.bf16 %v2805, %v2805
        %v3184 = vpack.c.bf16 %v2808, %v2808
        %v3185 = vpack.c.bf16 %v2810, %v2810
        %v3186 = vpack.c.bf16 %v2813, %v2813
        %v3187 = vpack.c.bf16 %v2815, %v2815
        %v3188 = vpack.c.bf16 %v2818, %v2818
        %v3189 = vpack.c.bf16 %v2820, %v2820
        %v3190 = vpack.c.bf16 %v2823, %v2823
        %v3191 = vpack.c.bf16 %v2825, %v2825
        %v3192 = vpack.c.bf16 %v2828, %v2828
        %v3193 = vpack.c.bf16 %v2830, %v2830
        %v3194 = vpack.c.bf16 %v2833, %v2833
        %v3195 = vpack.c.bf16 %v2835, %v2835
        %v3196 = vpack.c.bf16 %v2838, %v2838
        %v3197 = vpack.c.bf16 %v2840, %v2840
        %v3198 = vpack.c.bf16 %v2843, %v2843
        %v3199 = vpack.c.bf16 %v2845, %v2845
        %v3200 = vpack.c.bf16 %v2848, %v2848
        %v3201 = vpack.c.bf16 %v2850, %v2850
        %v3202 = vpack.c.bf16 %v2853, %v2853
        %v3203 = vpack.c.bf16 %v2855, %v2855
        %v3204 = vpack.c.bf16 %v2858, %v2858
        %v3205 = vpack.c.bf16 %v2860, %v2860
        %v3206 = vpack.c.bf16 %v2863, %v2863
        %v3207 = vpack.c.bf16 %v2865, %v2865
        %v3208 = vpack.c.bf16 %v2868, %v2868
        %v3209 = vpack.c.bf16 %v2870, %v2870
        %3210 = vst [vmem:[%s358] sm:$0xf] %v3178
        %3211 = vst [vmem:[%s358 + $0x4] sm:$0xf] %v3179
        %3212 = vst [vmem:[%s358 + $0x8] sm:$0xf] %v3180
        %3213 = vst [vmem:[%s358 + $0xc] sm:$0xf] %v3181
        %3214 = vst [vmem:[%s358 + $0x10] sm:$0xf] %v3182
        %3215 = vst [vmem:[%s358 + $0x14] sm:$0xf] %v3183
        %3216 = vst [vmem:[%s358 + $0x18] sm:$0xf] %v3184
        %3217 = vst [vmem:[%s358 + $0x1c] sm:$0xf] %v3185
        %3218 = vst [vmem:[%s358 + $0x20] sm:$0xf] %v3186
        %3219 = vst [vmem:[%s358 + $0x24] sm:$0xf] %v3187
        %3220 = vst [vmem:[%s358 + $0x28] sm:$0xf] %v3188
        %3221 = vst [vmem:[%s358 + $0x2c] sm:$0xf] %v3189
        %3222 = vst [vmem:[%s358 + $0x30] sm:$0xf] %v3190
        %3223 = vst [vmem:[%s358 + $0x34] sm:$0xf] %v3191
        %3224 = vst [vmem:[%s358 + $0x38] sm:$0xf] %v3192
        %3225 = vst [vmem:[%s358 + $0x3c] sm:$0xf] %v3193
        %3226 = vst [vmem:[%s358 + $0x40] sm:$0xf] %v3194
        %3227 = vst [vmem:[%s358 + $0x44] sm:$0xf] %v3195
        %3228 = vst [vmem:[%s358 + $0x48] sm:$0xf] %v3196
        %3229 = vst [vmem:[%s358 + $0x4c] sm:$0xf] %v3197
        %3230 = vst [vmem:[%s358 + $0x50] sm:$0xf] %v3198
        %3231 = vst [vmem:[%s358 + $0x54] sm:$0xf] %v3199
        %3232 = vst [vmem:[%s358 + $0x58] sm:$0xf] %v3200
        %3233 = vst [vmem:[%s358 + $0x5c] sm:$0xf] %v3201
        %3234 = vst [vmem:[%s358 + $0x60] sm:$0xf] %v3202
        %3235 = vst [vmem:[%s358 + $0x64] sm:$0xf] %v3203
        %3236 = vst [vmem:[%s358 + $0x68] sm:$0xf] %v3204
        %3237 = vst [vmem:[%s358 + $0x6c] sm:$0xf] %v3205
        %3238 = vst [vmem:[%s358 + $0x70] sm:$0xf] %v3206
        %3239 = vst [vmem:[%s358 + $0x74] sm:$0xf] %v3207
        %3240 = vst [vmem:[%s358 + $0x78] sm:$0xf] %v3208
        %3241 = vst [vmem:[%s358 + $0x7c] sm:$0xf] %v3209
        %v3242 = vpack.c.bf16 %v2259, %v2259
        %v3243 = vpack.c.bf16 %v2261, %v2261
        %v3244 = vpack.c.bf16 %v2264, %v2264
        %v3245 = vpack.c.bf16 %v2266, %v2266
        %v3246 = vpack.c.bf16 %v2269, %v2269
        %v3247 = vpack.c.bf16 %v2271, %v2271
        %v3248 = vpack.c.bf16 %v2274, %v2274
        %v3249 = vpack.c.bf16 %v2276, %v2276
        %v3250 = vpack.c.bf16 %v2279, %v2279
        %v3251 = vpack.c.bf16 %v2281, %v2281
        %v3252 = vpack.c.bf16 %v2284, %v2284
        %v3253 = vpack.c.bf16 %v2286, %v2286
        %v3254 = vpack.c.bf16 %v2289, %v2289
        %v3255 = vpack.c.bf16 %v2291, %v2291
        %v3256 = vpack.c.bf16 %v2294, %v2294
        %v3257 = vpack.c.bf16 %v2296, %v2296
        %v3258 = vpack.c.bf16 %v2299, %v2299
        %v3259 = vpack.c.bf16 %v2301, %v2301
        %v3260 = vpack.c.bf16 %v2304, %v2304
        %v3261 = vpack.c.bf16 %v2306, %v2306
        %v3262 = vpack.c.bf16 %v2309, %v2309
        %v3263 = vpack.c.bf16 %v2311, %v2311
        %v3264 = vpack.c.bf16 %v2314, %v2314
        %v3265 = vpack.c.bf16 %v2316, %v2316
        %v3266 = vpack.c.bf16 %v2319, %v2319
        %v3267 = vpack.c.bf16 %v2321, %v2321
        %v3268 = vpack.c.bf16 %v2324, %v2324
        %v3269 = vpack.c.bf16 %v2326, %v2326
        %v3270 = vpack.c.bf16 %v2329, %v2329
        %v3271 = vpack.c.bf16 %v2331, %v2331
        %v3272 = vpack.c.bf16 %v2334, %v2334
        %v3273 = vpack.c.bf16 %v2336, %v2336
        %s3274 = scalar_lea.vmem %s344, 128 [#allocation10]
        %3275 = vst [vmem:[%s3274] sm:$0xf] %v3242
        %3276 = vst [vmem:[%s3274 + $0x4] sm:$0xf] %v3243
        %3277 = vst [vmem:[%s3274 + $0x8] sm:$0xf] %v3244
        %3278 = vst [vmem:[%s3274 + $0xc] sm:$0xf] %v3245
        %3279 = vst [vmem:[%s3274 + $0x10] sm:$0xf] %v3246
        %3280 = vst [vmem:[%s3274 + $0x14] sm:$0xf] %v3247
        %3281 = vst [vmem:[%s3274 + $0x18] sm:$0xf] %v3248
        %3282 = vst [vmem:[%s3274 + $0x1c] sm:$0xf] %v3249
        %3283 = vst [vmem:[%s3274 + $0x20] sm:$0xf] %v3250
        %3284 = vst [vmem:[%s3274 + $0x24] sm:$0xf] %v3251
        %3285 = vst [vmem:[%s3274 + $0x28] sm:$0xf] %v3252
        %3286 = vst [vmem:[%s3274 + $0x2c] sm:$0xf] %v3253
        %3287 = vst [vmem:[%s3274 + $0x30] sm:$0xf] %v3254
        %3288 = vst [vmem:[%s3274 + $0x34] sm:$0xf] %v3255
        %3289 = vst [vmem:[%s3274 + $0x38] sm:$0xf] %v3256
        %3290 = vst [vmem:[%s3274 + $0x3c] sm:$0xf] %v3257
        %3291 = vst [vmem:[%s3274 + $0x40] sm:$0xf] %v3258
        %3292 = vst [vmem:[%s3274 + $0x44] sm:$0xf] %v3259
        %3293 = vst [vmem:[%s3274 + $0x48] sm:$0xf] %v3260
        %3294 = vst [vmem:[%s3274 + $0x4c] sm:$0xf] %v3261
        %3295 = vst [vmem:[%s3274 + $0x50] sm:$0xf] %v3262
        %3296 = vst [vmem:[%s3274 + $0x54] sm:$0xf] %v3263
        %3297 = vst [vmem:[%s3274 + $0x58] sm:$0xf] %v3264
        %3298 = vst [vmem:[%s3274 + $0x5c] sm:$0xf] %v3265
        %3299 = vst [vmem:[%s3274 + $0x60] sm:$0xf] %v3266
        %3300 = vst [vmem:[%s3274 + $0x64] sm:$0xf] %v3267
        %3301 = vst [vmem:[%s3274 + $0x68] sm:$0xf] %v3268
        %3302 = vst [vmem:[%s3274 + $0x6c] sm:$0xf] %v3269
        %3303 = vst [vmem:[%s3274 + $0x70] sm:$0xf] %v3270
        %3304 = vst [vmem:[%s3274 + $0x74] sm:$0xf] %v3271
        %3305 = vst [vmem:[%s3274 + $0x78] sm:$0xf] %v3272
        %3306 = vst [vmem:[%s3274 + $0x7c] sm:$0xf] %v3273
        %v3307 = vpack.c.bf16 %v2615, %v2615
        %v3308 = vpack.c.bf16 %v2617, %v2617
        %v3309 = vpack.c.bf16 %v2620, %v2620
        %v3310 = vpack.c.bf16 %v2622, %v2622
        %v3311 = vpack.c.bf16 %v2625, %v2625
        %v3312 = vpack.c.bf16 %v2627, %v2627
        %v3313 = vpack.c.bf16 %v2630, %v2630
        %v3314 = vpack.c.bf16 %v2632, %v2632
        %v3315 = vpack.c.bf16 %v2635, %v2635
        %v3316 = vpack.c.bf16 %v2637, %v2637
        %v3317 = vpack.c.bf16 %v2640, %v2640
        %v3318 = vpack.c.bf16 %v2642, %v2642
        %v3319 = vpack.c.bf16 %v2645, %v2645
        %v3320 = vpack.c.bf16 %v2647, %v2647
        %v3321 = vpack.c.bf16 %v2650, %v2650
        %v3322 = vpack.c.bf16 %v2652, %v2652
        %v3323 = vpack.c.bf16 %v2655, %v2655
        %v3324 = vpack.c.bf16 %v2657, %v2657
        %v3325 = vpack.c.bf16 %v2660, %v2660
        %v3326 = vpack.c.bf16 %v2662, %v2662
        %v3327 = vpack.c.bf16 %v2665, %v2665
        %v3328 = vpack.c.bf16 %v2667, %v2667
        %v3329 = vpack.c.bf16 %v2670, %v2670
        %v3330 = vpack.c.bf16 %v2672, %v2672
        %v3331 = vpack.c.bf16 %v2675, %v2675
        %v3332 = vpack.c.bf16 %v2677, %v2677
        %v3333 = vpack.c.bf16 %v2680, %v2680
        %v3334 = vpack.c.bf16 %v2682, %v2682
        %v3335 = vpack.c.bf16 %v2685, %v2685
        %v3336 = vpack.c.bf16 %v2687, %v2687
        %v3337 = vpack.c.bf16 %v2690, %v2690
        %v3338 = vpack.c.bf16 %v2692, %v2692
        %s3339 = scalar_lea.vmem %s351, 128 [#allocation11]
        %3340 = vst [vmem:[%s3339] sm:$0xf] %v3307
        %3341 = vst [vmem:[%s3339 + $0x4] sm:$0xf] %v3308
        %3342 = vst [vmem:[%s3339 + $0x8] sm:$0xf] %v3309
        %3343 = vst [vmem:[%s3339 + $0xc] sm:$0xf] %v3310
        %3344 = vst [vmem:[%s3339 + $0x10] sm:$0xf] %v3311
        %3345 = vst [vmem:[%s3339 + $0x14] sm:$0xf] %v3312
        %3346 = vst [vmem:[%s3339 + $0x18] sm:$0xf] %v3313
        %3347 = vst [vmem:[%s3339 + $0x1c] sm:$0xf] %v3314
        %3348 = vst [vmem:[%s3339 + $0x20] sm:$0xf] %v3315
        %3349 = vst [vmem:[%s3339 + $0x24] sm:$0xf] %v3316
        %3350 = vst [vmem:[%s3339 + $0x28] sm:$0xf] %v3317
        %3351 = vst [vmem:[%s3339 + $0x2c] sm:$0xf] %v3318
        %3352 = vst [vmem:[%s3339 + $0x30] sm:$0xf] %v3319
        %3353 = vst [vmem:[%s3339 + $0x34] sm:$0xf] %v3320
        %3354 = vst [vmem:[%s3339 + $0x38] sm:$0xf] %v3321
        %3355 = vst [vmem:[%s3339 + $0x3c] sm:$0xf] %v3322
        %3356 = vst [vmem:[%s3339 + $0x40] sm:$0xf] %v3323
        %3357 = vst [vmem:[%s3339 + $0x44] sm:$0xf] %v3324
        %3358 = vst [vmem:[%s3339 + $0x48] sm:$0xf] %v3325
        %3359 = vst [vmem:[%s3339 + $0x4c] sm:$0xf] %v3326
        %3360 = vst [vmem:[%s3339 + $0x50] sm:$0xf] %v3327
        %3361 = vst [vmem:[%s3339 + $0x54] sm:$0xf] %v3328
        %3362 = vst [vmem:[%s3339 + $0x58] sm:$0xf] %v3329
        %3363 = vst [vmem:[%s3339 + $0x5c] sm:$0xf] %v3330
        %3364 = vst [vmem:[%s3339 + $0x60] sm:$0xf] %v3331
        %3365 = vst [vmem:[%s3339 + $0x64] sm:$0xf] %v3332
        %3366 = vst [vmem:[%s3339 + $0x68] sm:$0xf] %v3333
        %3367 = vst [vmem:[%s3339 + $0x6c] sm:$0xf] %v3334
        %3368 = vst [vmem:[%s3339 + $0x70] sm:$0xf] %v3335
        %3369 = vst [vmem:[%s3339 + $0x74] sm:$0xf] %v3336
        %3370 = vst [vmem:[%s3339 + $0x78] sm:$0xf] %v3337
        %3371 = vst [vmem:[%s3339 + $0x7c] sm:$0xf] %v3338
        %v3372 = vpack.c.bf16 %v2971, %v2971
        %v3373 = vpack.c.bf16 %v2973, %v2973
        %v3374 = vpack.c.bf16 %v2976, %v2976
        %v3375 = vpack.c.bf16 %v2978, %v2978
        %v3376 = vpack.c.bf16 %v2981, %v2981
        %v3377 = vpack.c.bf16 %v2983, %v2983
        %v3378 = vpack.c.bf16 %v2986, %v2986
        %v3379 = vpack.c.bf16 %v2988, %v2988
        %v3380 = vpack.c.bf16 %v2991, %v2991
        %v3381 = vpack.c.bf16 %v2993, %v2993
        %v3382 = vpack.c.bf16 %v2996, %v2996
        %v3383 = vpack.c.bf16 %v2998, %v2998
        %v3384 = vpack.c.bf16 %v3001, %v3001
        %v3385 = vpack.c.bf16 %v3003, %v3003
        %v3386 = vpack.c.bf16 %v3006, %v3006
        %v3387 = vpack.c.bf16 %v3008, %v3008
        %v3388 = vpack.c.bf16 %v3011, %v3011
        %v3389 = vpack.c.bf16 %v3013, %v3013
        %v3390 = vpack.c.bf16 %v3016, %v3016
        %v3391 = vpack.c.bf16 %v3018, %v3018
        %v3392 = vpack.c.bf16 %v3021, %v3021
        %v3393 = vpack.c.bf16 %v3023, %v3023
        %v3394 = vpack.c.bf16 %v3026, %v3026
        %v3395 = vpack.c.bf16 %v3028, %v3028
        %v3396 = vpack.c.bf16 %v3031, %v3031
        %v3397 = vpack.c.bf16 %v3033, %v3033
        %v3398 = vpack.c.bf16 %v3036, %v3036
        %v3399 = vpack.c.bf16 %v3038, %v3038
        %v3400 = vpack.c.bf16 %v3041, %v3041
        %v3401 = vpack.c.bf16 %v3043, %v3043
        %v3402 = vpack.c.bf16 %v3046, %v3046
        %v3403 = vpack.c.bf16 %v3048, %v3048
        %s3404 = scalar_lea.vmem %s358, 128 [#allocation13]
        %3405 = vst [vmem:[%s3404] sm:$0xf] %v3372
        %3406 = vst [vmem:[%s3404 + $0x4] sm:$0xf] %v3373
        %3407 = vst [vmem:[%s3404 + $0x8] sm:$0xf] %v3374
        %3408 = vst [vmem:[%s3404 + $0xc] sm:$0xf] %v3375
        %3409 = vst [vmem:[%s3404 + $0x10] sm:$0xf] %v3376
        %3410 = vst [vmem:[%s3404 + $0x14] sm:$0xf] %v3377
        %3411 = vst [vmem:[%s3404 + $0x18] sm:$0xf] %v3378
        %3412 = vst [vmem:[%s3404 + $0x1c] sm:$0xf] %v3379
        %3413 = vst [vmem:[%s3404 + $0x20] sm:$0xf] %v3380
        %3414 = vst [vmem:[%s3404 + $0x24] sm:$0xf] %v3381
        %3415 = vst [vmem:[%s3404 + $0x28] sm:$0xf] %v3382
        %3416 = vst [vmem:[%s3404 + $0x2c] sm:$0xf] %v3383
        %3417 = vst [vmem:[%s3404 + $0x30] sm:$0xf] %v3384
        %3418 = vst [vmem:[%s3404 + $0x34] sm:$0xf] %v3385
        %3419 = vst [vmem:[%s3404 + $0x38] sm:$0xf] %v3386
        %3420 = vst [vmem:[%s3404 + $0x3c] sm:$0xf] %v3387
        %3421 = vst [vmem:[%s3404 + $0x40] sm:$0xf] %v3388
        %3422 = vst [vmem:[%s3404 + $0x44] sm:$0xf] %v3389
        %3423 = vst [vmem:[%s3404 + $0x48] sm:$0xf] %v3390
        %3424 = vst [vmem:[%s3404 + $0x4c] sm:$0xf] %v3391
        %3425 = vst [vmem:[%s3404 + $0x50] sm:$0xf] %v3392
        %3426 = vst [vmem:[%s3404 + $0x54] sm:$0xf] %v3393
        %3427 = vst [vmem:[%s3404 + $0x58] sm:$0xf] %v3394
        %3428 = vst [vmem:[%s3404 + $0x5c] sm:$0xf] %v3395
        %3429 = vst [vmem:[%s3404 + $0x60] sm:$0xf] %v3396
        %3430 = vst [vmem:[%s3404 + $0x64] sm:$0xf] %v3397
        %3431 = vst [vmem:[%s3404 + $0x68] sm:$0xf] %v3398
        %3432 = vst [vmem:[%s3404 + $0x6c] sm:$0xf] %v3399
        %3433 = vst [vmem:[%s3404 + $0x70] sm:$0xf] %v3400
        %3434 = vst [vmem:[%s3404 + $0x74] sm:$0xf] %v3401
        %3435 = vst [vmem:[%s3404 + $0x78] sm:$0xf] %v3402
        %3436 = vst [vmem:[%s3404 + $0x7c] sm:$0xf] %v3403
        %s3437 = sand.u32 %s142, 1
        %s3438 = scalar_lea.sflag [#allocation4], %s3437
        %s3439 = sand.u32 %s142, 1
        %s3440 = smul.addr %s3439, 256
        %s3441 = scalar_lea.vmem [#allocation10], %s3440
        %s3442 = sand.u32 %s29, 1
        %s3443 = scalar_lea.sflag [#allocation12], %s3442
        %s3444 = sand.u32 %s170, 1
        %s3445 = smul.addr %s3444, 256
        %s3446 = scalar_lea.vmem [#allocation11], %s3445
        %s3447 = sand.u32 %s29, 1
        %s3448 = scalar_lea.sflag [#allocation12], %s3447
        %s3449 = sand.u32 %s198, 1
        %s3450 = smul.addr %s3449, 256
        %s3451 = scalar_lea.vmem [#allocation13], %s3450
        // Predicated region
        $region53: #{tpu_custom_call.1} parent=35 // pred_check
          %p3452 = pneg %p152
        $region54: #{tpu_custom_call.1} parent=35 // pred_check_branch
          %3454 = sbr.rel (%p3452) target = $region56
        $region55: #{tpu_custom_call.1} parent=35 // pred_region
          #allocation15 [shape = 'u32[6]{0}', space=smem, size = 0x18, scoped, tag = 'DMA stride descriptor']
          %s3455 = smul.u32 32, %s34
          %3457 = vsyncadd %s3438, 0
          %s3458 = smul.addr %s33, 128
          %s3459 = sadd.s32 %s3455, %s3458
          %s3460 = smul.addr %s3459, 4
          %s3461 = scalar_lea.hbm %s4, %s3460
          %s3463 = sshll.u32 1, 14
          %s3464 = sxor.u32 4294967295, %s3463
          %s3467 = sshll.u32 7, 18
          %s3468 = sxor.u32 4294967295, %s3467
          %s3469 = sand.u32 0, %s3468
          %s3471 = sor.u32 %s3469, 0
          %s3472 = sshll.u32 %s3441, 4
          %s3473 = int_to_ptr.vmem [resolvable:$true] %s3472
          %s3474 = sshll.u32 %s3461, 4
          %s3475 = int_to_ptr.hbm [resolvable:$true] %s3474
          %3481 = sst [smem:[#allocation15]] 2048
          %s3482 = scalar_lea.smem [#allocation15], 1
          %3483 = sst [smem:[%s3482]] 4096
          %s3484 = scalar_lea.smem [#allocation15], 2
          %3485 = sst [smem:[%s3484]] 32
          %s3486 = scalar_lea.smem [#allocation15], 3
          %3487 = sst [smem:[%s3486]] 64
          %s3488 = scalar_lea.smem [#allocation15], 4
          %3489 = sst [smem:[%s3488]] 64
          %s3490 = scalar_lea.smem [#allocation15], 5
          %3491 = sst [smem:[%s3490]] 4
          %3493 = dma.general %s3473, 4096, %s3475, %s3438, [#allocation14], [#allocation15], %s3471, 0
        $region56: #{tpu_custom_call.1} parent=35 // pred_fallthru
          _
        // Predicated region
        $region57: #{tpu_custom_call.1} parent=35 // pred_check
          %p3494 = pneg %p180
        $region58: #{tpu_custom_call.1} parent=35 // pred_check_branch
          %3496 = sbr.rel (%p3494) target = $region60
        $region59: #{tpu_custom_call.1} parent=35 // pred_region
          #allocation17 [shape = 'u32[6]{0}', space=smem, size = 0x18, scoped, tag = 'DMA stride descriptor']
          %s3497 = smul.u32 32, %s34
          %3499 = vsyncadd %s3443, 0
          %s3500 = smul.addr %s33, 128
          %s3501 = sadd.s32 %s3497, %s3500
          %s3502 = smul.addr %s3501, 4
          %s3503 = scalar_lea.hbm %s5, %s3502
          %s3505 = sshll.u32 1, 14
          %s3506 = sxor.u32 4294967295, %s3505
          %s3509 = sshll.u32 7, 18
          %s3510 = sxor.u32 4294967295, %s3509
          %s3511 = sand.u32 0, %s3510
          %s3513 = sor.u32 %s3511, 0
          %s3514 = sshll.u32 %s3446, 4
          %s3515 = int_to_ptr.vmem [resolvable:$true] %s3514
          %s3516 = sshll.u32 %s3503, 4
          %s3517 = int_to_ptr.hbm [resolvable:$true] %s3516
          %3523 = sst [smem:[#allocation17]] 2048
          %s3524 = scalar_lea.smem [#allocation17], 1
          %3525 = sst [smem:[%s3524]] 4096
          %s3526 = scalar_lea.smem [#allocation17], 2
          %3527 = sst [smem:[%s3526]] 32
          %s3528 = scalar_lea.smem [#allocation17], 3
          %3529 = sst [smem:[%s3528]] 64
          %s3530 = scalar_lea.smem [#allocation17], 4
          %3531 = sst [smem:[%s3530]] 64
          %s3532 = scalar_lea.smem [#allocation17], 5
          %3533 = sst [smem:[%s3532]] 4
          %3535 = dma.general %s3515, 4096, %s3517, %s3443, [#allocation16], [#allocation17], %s3513, 0
        $region60: #{tpu_custom_call.1} parent=35 // pred_fallthru
          _
        // Predicated region
        $region61: #{tpu_custom_call.1} parent=35 // pred_check
          %p3536 = pneg %p208
        $region62: #{tpu_custom_call.1} parent=35 // pred_check_branch
          %3538 = sbr.rel (%p3536) target = $region64
        $region63: #{tpu_custom_call.1} parent=35 // pred_region
          #allocation19 [shape = 'u32[6]{0}', space=smem, size = 0x18, scoped, tag = 'DMA stride descriptor']
          %s3539 = smul.u32 32, %s34
          %3541 = vsyncadd %s3448, 0
          %s3542 = smul.addr %s33, 128
          %s3543 = sadd.s32 %s3539, %s3542
          %s3544 = smul.addr %s3543, 4
          %s3545 = scalar_lea.hbm %s6, %s3544
          %s3547 = sshll.u32 1, 14
          %s3548 = sxor.u32 4294967295, %s3547
          %s3551 = sshll.u32 7, 18
          %s3552 = sxor.u32 4294967295, %s3551
          %s3553 = sand.u32 0, %s3552
          %s3555 = sor.u32 %s3553, 0
          %s3556 = sshll.u32 %s3451, 4
          %s3557 = int_to_ptr.vmem [resolvable:$true] %s3556
          %s3558 = sshll.u32 %s3545, 4
          %s3559 = int_to_ptr.hbm [resolvable:$true] %s3558
          %3565 = sst [smem:[#allocation19]] 2048
          %s3566 = scalar_lea.smem [#allocation19], 1
          %3567 = sst [smem:[%s3566]] 4096
          %s3568 = scalar_lea.smem [#allocation19], 2
          %3569 = sst [smem:[%s3568]] 32
          %s3570 = scalar_lea.smem [#allocation19], 3
          %3571 = sst [smem:[%s3570]] 64
          %s3572 = scalar_lea.smem [#allocation19], 4
          %3573 = sst [smem:[%s3572]] 64
          %s3574 = scalar_lea.smem [#allocation19], 5
          %3575 = sst [smem:[%s3574]] 4
          %3577 = dma.general %s3557, 4096, %s3559, %s3448, [#allocation18], [#allocation19], %s3555, 0
        $region64: #{tpu_custom_call.1} parent=35 // pred_fallthru
          _
      $region36: #{tpu_custom_call.1} parent=5 // pred_fallthru
        _
      %p3578 = scmp.le.s32.totalorder 2, %s24
      // Predicated region
      $region65: #{tpu_custom_call.1} parent=5 // pred_check
        %p3579 = pneg %p3578
      $region66: #{tpu_custom_call.1} parent=5 // pred_check_branch
        %3581 = sbr.rel (%p3579) target = $region68
      $region67: #{tpu_custom_call.1} parent=5 // pred_region
        %s3582 = ssub.s32 %s24, 2
        // Predicated region
        $region69: #{tpu_custom_call.1} parent=67 // pred_check
          %p3583 = pneg %p158
        $region70: #{tpu_custom_call.1} parent=67 // pred_check_branch
          %3585 = sbr.rel (%p3583) target = $region72
        $region71: #{tpu_custom_call.1} parent=67 // pred_region
          %s3586 = sand.u32 %s143, 1
          %s3587 = scalar_lea.sflag [#allocation4], %s3586
          %s3588 = sand.u32 %s143, 1
          %s3589 = smul.addr %s3588, 256
          %s3590 = scalar_lea.vmem [#allocation10], %s3589
          %3592 = dma.done %s3587, 4096
        $region72: #{tpu_custom_call.1} parent=67 // pred_fallthru
          _
        // Predicated region
        $region73: #{tpu_custom_call.1} parent=67 // pred_check
          %p3593 = pneg %p186
        $region74: #{tpu_custom_call.1} parent=67 // pred_check_branch
          %3595 = sbr.rel (%p3593) target = $region76
        $region75: #{tpu_custom_call.1} parent=67 // pred_region
          %s3596 = sand.u32 %s30, 1
          %s3597 = scalar_lea.sflag [#allocation12], %s3596
          %s3598 = sand.u32 %s171, 1
          %s3599 = smul.addr %s3598, 256
          %s3600 = scalar_lea.vmem [#allocation11], %s3599
          %3602 = dma.done %s3597, 4096
        $region76: #{tpu_custom_call.1} parent=67 // pred_fallthru
          _
        // Predicated region
        $region77: #{tpu_custom_call.1} parent=67 // pred_check
          %p3603 = pneg %p214
        $region78: #{tpu_custom_call.1} parent=67 // pred_check_branch
          %3605 = sbr.rel (%p3603) target = $region80
        $region79: #{tpu_custom_call.1} parent=67 // pred_region
          %s3606 = sand.u32 %s30, 1
          %s3607 = scalar_lea.sflag [#allocation12], %s3606
          %s3608 = sand.u32 %s199, 1
          %s3609 = smul.addr %s3608, 256
          %s3610 = scalar_lea.vmem [#allocation13], %s3609
          %3612 = dma.done %s3607, 4096
        $region80: #{tpu_custom_call.1} parent=67 // pred_fallthru
          _
      $region68: #{tpu_custom_call.1} parent=5 // pred_fallthru
        _
    $region6: #{tpu_custom_call.1} parent=1 // loop_footer
      %s28 = sadd.s32 1, %s24
    $region7: #{tpu_custom_call.1} parent=1 // loop_footer_branch
      %23 = sbr.rel target = $region3
    $region8: #{tpu_custom_call.1} parent=1 // loop_exit
      _
    %3613 = vsyncpa [#allocation3], 1
    %s3614 = scalar_lea.sflag [#allocation3], 1
    %3615 = vsyncpa %s3614, 1
    %3616 = vsyncpa [#allocation6], 1
    %3617 = vsyncpa [#allocation9], 1
    %3618 = vsyncpa [#allocation4], 1
    %s3619 = scalar_lea.sflag [#allocation4], 1
    %3620 = vsyncpa %s3619, 1
    %3621 = vsyncpa [#allocation12], 1
    %s3622 = scalar_lea.sflag [#allocation12], 1
    %3623 = vsyncpa %s3622, 1

</llo_original>
